<compile_context>
chip_gen: v7x
topology: tpu7x:2x2x1
jax: 0.10.0
libtpu: 0.0.40
codegen_flags: <defaults>
</compile_context>

<pallas_src>
import functools

import numpy as np

import jax
import jax.numpy as jnp
from jax.experimental import pallas as pl
from jax.experimental.pallas import tpu as pltpu

FM = 4
KWS = (11, 11, 11, 6, 6)
EPS = 1e-5
ROW_ALIGN = 256          # row-block granularity (multiple of 8 sublanes, MXU friendly)


def _round_up(n, m):
    return ((n + m - 1) // m) * m


def _mxu_pad():
    """Padding granularity for Toeplitz K/N dims.

    256 matches the 256x256 MXU tile on v6e/v7x; v5e's MXU is 128x128 so 128
    avoids a few wasted zero tiles there.  A wrong guess is harmless (only
    extra zero-FLOPs on a kernel with large MXU headroom)."""
    try:
        kind = jax.devices()[0].device_kind.lower()
    except Exception:
        return 256
    if "v5 lite" in kind or "v5e" in kind or "v5lite" in kind:
        return 128
    return 256


# --------------------------------------------------------------------------
# Kernel: one grid step processes a block of R input rows.
#   x_ref : (R, W)            bf16  input rows (one row = one (n, h) line)
#   tN_ref: (K_l, N_l)        bf16  Toeplitz conv (+ folded BN scale), 0-padded
#   b_ref : (5, Nmax)         f32   per-layer biases (pos-major, ch-minor, 0-padded)
#   o_ref : (R, W_out)        f32   sigmoid outputs
# --------------------------------------------------------------------------
def cnnpred_kernel(x_ref, t1_ref, t2_ref, t3_ref, t4_ref, t5_ref, b_ref,
                   o_ref):

    def layer(a, t_ref, li, last=False):
        n = t_ref.shape[1]
        y = jnp.dot(a, t_ref[...], preferred_element_type=jnp.float32)
        y = y + b_ref[li, :n]                       # per-channel bias, pre-tiled
        if last:
            return jax.nn.sigmoid(y)
        # LeakyReLU(0.2) == max(y, 0.2*y) for slope < 1; bf16 for the next MXU pass.
        return jnp.maximum(y, 0.2 * y).astype(jnp.bfloat16)

    a = x_ref[...]                                  # already bf16
    a = layer(a, t1_ref, 0)
    a = layer(a, t2_ref, 1)
    a = layer(a, t3_ref, 2)
    a = layer(a, t4_ref, 3)
    o_ref[...] = layer(a, t5_ref, 4, last=True)


# --------------------------------------------------------------------------
# Parameter init (mirrors the PyTorch module's shapes, OIHW conv weights).
# --------------------------------------------------------------------------
def init_params(key, fm):
    chs = [1, fm, 2 * fm, 4 * fm, 8 * fm, 1]
    keys = iter(jax.random.split(key, 32))
    convs, bns = [], []
    for li in range(5):
        cin, cout, kw = chs[li], chs[li + 1], KWS[li]
        w = 0.1 * jax.random.normal(next(keys), (cout, cin, 1, kw), jnp.float32)
        convs.append(w)                             # PyTorch OIHW layout
        if li < 4:
            gamma = 1.0 + 0.1 * jax.random.normal(next(keys), (cout,), jnp.float32)
            beta = 0.1 * jax.random.normal(next(keys), (cout,), jnp.float32)
            mean = 0.1 * jax.random.normal(next(keys), (cout,), jnp.float32)
            var = 1.0 + 0.5 * jax.random.uniform(next(keys), (cout,), jnp.float32)
            bns.append((gamma, beta, mean, var))
    b5 = 0.1 * jax.random.normal(next(keys), (1,), jnp.float32)
    return {'convs': convs, 'bns': bns, 'b5': b5}


# --------------------------------------------------------------------------
# One-time (per weight set) host-side preparation: fold BN into Toeplitz
# matmul weights, zero-pad K/N to MXU-friendly multiples, pack biases.
# --------------------------------------------------------------------------
def prepare_weights(params, W, pad_to=None):
    if pad_to is None:
        pad_to = _mxu_pad()
    W_out = W - sum(k - 1 for k in KWS)             # W - 40
    assert W_out >= 1, "input width too small for the conv stack"

    convs = [np.asarray(w, np.float32) for w in params['convs']]
    bns = [tuple(np.asarray(p, np.float32) for p in bn) for bn in params['bns']]
    b5 = np.asarray(params['b5'], np.float32)

    ts, bias_rows, n_pads = [], [], []
    win = W
    k_pad = W                                       # layer-1 K = raw input width
    for li in range(5):
        w = convs[li]
        cout, cin, _, kw = w.shape
        wout = win - kw + 1
        if li < 4:
            gamma, beta, mean, var = bns[li]
            scale = gamma / np.sqrt(var + EPS)      # fold BN (inference) into conv
            bias_c = beta - mean * scale
            n_pad = _round_up(wout * cout, pad_to)  # lane-dense intermediate width
        else:
            scale = None
            bias_c = b5                             # final conv bias (cout == 1)
            n_pad = wout * cout                     # == W_out; sliced in wrapper
        # OIHW (cout,cin,1,kw) -> (kw,cin,cout) -> (kw*cin, cout)
        w2 = np.transpose(w[:, :, 0, :], (2, 1, 0)).reshape(kw * cin, cout)
        if scale is not None:
            w2 = w2 * scale[None, :]
        t = np.zeros((k_pad, n_pad), np.float32)
        for p in range(wout):                       # disjoint column strips
            t[p * cin:(p + kw) * cin, p * cout:(p + 1) * cout] = w2
        ts.append(jnp.asarray(t, jnp.bfloat16))
        brow = np.zeros((n_pad,), np.float32)
        brow[:wout * cout] = np.tile(bias_c, wout)  # position-major, channel-minor
        bias_rows.append(brow)
        n_pads.append(n_pad)
        win, k_pad = wout, n_pad                    # next layer consumes padded width

    nmax = _round_up(max(n_pads), 128)
    bpack = np.zeros((5, nmax), np.float32)
    for li, brow in enumerate(bias_rows):
        bpack[li, :brow.shape[0]] = brow

    return {'W': W, 'W_out': W_out, 'ts': ts, 'bpack': jnp.asarray(bpack)}


# --------------------------------------------------------------------------
# Wrapper: row blocking + pallas_call.  `prep` comes from prepare_weights().
# --------------------------------------------------------------------------
def cnnpred_forward(x_nchw, prep, block_rows=1024):
    W, W_out = prep['W'], prep['W_out']
    N, C, H, Wx = x_nchw.shape
    assert C == 1 and Wx == W
    B = N * H

    block_rows = max(ROW_ALIGN, _round_up(block_rows, ROW_ALIGN))
    # Big blocks to amortize per-step overhead, but keep >= ~4 grid steps when B
    # is large so both v7x TensorCores have work.
    R = min(block_rows,
            max(ROW_ALIGN, _round_up(_round_up(B, ROW_ALIGN) // 4, ROW_ALIGN)))
    B_pad = _round_up(B, R)

    # NCHW (C==1) -> lane-dense bf16 rows (halves input DMA; matmul is bf16).
    x_rows = x_nchw[:, 0, :, :].reshape(B, W).astype(jnp.bfloat16)
    if B_pad != B:
        x_rows = jnp.pad(x_rows, ((0, B_pad - B), (0, 0)))

    ts, bpack = prep['ts'], prep['bpack']

    def const_spec(arr):                            # whole (small) array resident
        return pl.BlockSpec(arr.shape, lambda i: (0, 0))

    in_specs = [pl.BlockSpec((R, W), lambda i: (i, 0))]
    in_specs += [const_spec(t) for t in ts]
    in_specs += [const_spec(bpack)]

    out = pl.pallas_call(
        cnnpred_kernel,
        out_shape=jax.ShapeDtypeStruct((B_pad, W_out), jnp.float32),
        grid=(B_pad // R,),
        in_specs=in_specs,
        # Block width == array width, so the HBM-side output DMA is contiguous.
        out_specs=pl.BlockSpec((R, W_out), lambda i: (i, 0)),
        compiler_params=pltpu.CompilerParams(
            dimension_semantics=("parallel",),
            # Above v5e's 16 MiB default scoped limit; actual use at R=1024 is
            # ~10-12 MiB, far below physical VMEM on v5e/v6e/v7x.
            vmem_limit_bytes=48 * 1024 * 1024,
        ),
    )(x_rows, *ts, bpack)

    # (B_pad, W_out) -> (N, 1, H, W_out)
    return out[:B].reshape(N, H, W_out)[:, None, :, :]


# --------------------------------------------------------------------------
# Pure-JAX reference mirroring the PyTorch module (eval-mode BN), f32.
# --------------------------------------------------------------------------
def reference_forward(x_nchw, params):
    dn = ('NCHW', 'OIHW', 'NCHW')
    y = x_nchw
    for li in range(4):
        w = params['convs'][li]
        gamma, beta, mean, var = params['bns'][li]
        y = jax.lax.conv_general_dilated(y, w, (1, 1), 'VALID',
                                         dimension_numbers=dn)
        y = (gamma.reshape(1, -1, 1, 1) * (y - mean.reshape(1, -1, 1, 1))
             * jax.lax.rsqrt(var.reshape(1, -1, 1, 1) + EPS)
             + beta.reshape(1, -1, 1, 1))
        y = jnp.where(y >= 0, y, 0.2 * y)
    y = jax.lax.conv_general_dilated(y, params['convs'][4], (1, 1), 'VALID',
                                     dimension_numbers=dn)
    y = y + params['b5'].reshape(1, -1, 1, 1)
    return jax.nn.sigmoid(y)


if __name__ == "__main__":
    N, H, W = 16, 20, 48        # W must be >= 41; output width = W - 40 = 8
    key = jax.random.PRNGKey(0)
    k_param, k_x = jax.random.split(key)
    params = init_params(k_param, FM)
    x = jax.random.normal(k_x, (N, 1, H, W), jnp.float32)

    prep = prepare_weights(params, W)       # built once, hoisted out of forward
    fwd = jax.jit(functools.partial(cnnpred_forward, prep=prep, block_rows=1024))
    out = jax.block_until_ready(fwd(x))

    assert out.shape == (N, 1, H, W - 40), out.shape

    ref = reference_forward(x, params)
    # Tolerance covers the bf16 matmul operands (f32 accumulation).
    if not bool(jnp.allclose(out, ref, atol=2e-2, rtol=1e-2)):
        raise SystemExit("KERNEL_MISMATCH")

    print("KERNEL_OK")
</pallas_src>

<mosaic_0001>
module attributes {stable_mosaic.version = 11 : i64} {
  func.func @cnnpred_kernel(%arg0: i32, %arg1: memref<256x48xbf16, #tpu.memory_space<vmem>>, %arg2: memref<48x256xbf16, #tpu.memory_space<vmem>>, %arg3: memref<256x256xbf16, #tpu.memory_space<vmem>>, %arg4: memref<256x512xbf16, #tpu.memory_space<vmem>>, %arg5: memref<512x512xbf16, #tpu.memory_space<vmem>>, %arg6: memref<512x8xbf16, #tpu.memory_space<vmem>>, %arg7: memref<5x512xf32, #tpu.memory_space<vmem>>, %arg8: memref<256x8xf32, #tpu.memory_space<vmem>>) attributes {dimension_semantics = [#tpu.dimension_semantics<parallel>], iteration_bounds = array<i64: 2>, scalar_prefetch = 0 : i64, scratch_operands = 0 : i64, tpu.core_type = #tpu.core_type<tc>, window_params = [{transform_indices = @transform_0, window_bounds = array<i64: 256, 48>}, {pipeline_mode = #tpu.pipeline_mode<synchronous>, transform_indices = @transform_1, window_bounds = array<i64: 48, 256>}, {pipeline_mode = #tpu.pipeline_mode<synchronous>, transform_indices = @transform_2, window_bounds = array<i64: 256, 256>}, {pipeline_mode = #tpu.pipeline_mode<synchronous>, transform_indices = @transform_3, window_bounds = array<i64: 256, 512>}, {pipeline_mode = #tpu.pipeline_mode<synchronous>, transform_indices = @transform_4, window_bounds = array<i64: 512, 512>}, {pipeline_mode = #tpu.pipeline_mode<synchronous>, transform_indices = @transform_5, window_bounds = array<i64: 512, 8>}, {pipeline_mode = #tpu.pipeline_mode<synchronous>, transform_indices = @transform_6, window_bounds = array<i64: 5, 512>}, {transform_indices = @transform_7, window_bounds = array<i64: 256, 8>}]} {
    %c0 = arith.constant 0 : index
    %c0_0 = arith.constant 0 : index
    %0 = vector.load %arg1[%c0, %c0_0] : memref<256x48xbf16, #tpu.memory_space<vmem>>, vector<256x48xbf16>
    %c0_1 = arith.constant 0 : index
    %c0_2 = arith.constant 0 : index
    %1 = vector.load %arg2[%c0_1, %c0_2] : memref<48x256xbf16, #tpu.memory_space<vmem>>, vector<48x256xbf16>
    %cst = arith.constant dense<0.000000e+00> : vector<256x256xf32>
    %2 = tpu.matmul %0, %1, %cst {dimension_numbers = #tpu.dot_dimension_numbers<[1], [0], [0], [1], [0, 0, 1, 1], [], []>} : vector<256x48xbf16>, vector<48x256xbf16>, vector<256x256xf32> -> vector<256x256xf32>
    %c0_3 = arith.constant 0 : index
    %c0_4 = arith.constant 0 : index
    %3 = vector.load %arg7[%c0_3, %c0_4] : memref<5x512xf32, #tpu.memory_space<vmem>>, vector<1x256xf32>
    %4 = vector.shape_cast %3 : vector<1x256xf32> to vector<256xf32>
    %5 = vector.shape_cast %4 : vector<256xf32> to vector<1x256xf32>
    %6 = vector.broadcast %5 : vector<1x256xf32> to vector<256x256xf32>
    %7 = arith.addf %2, %6 : vector<256x256xf32>
    %cst_5 = arith.constant 2.000000e-01 : f32
    %8 = vector.broadcast %cst_5 : f32 to vector<256x256xf32>
    %9 = arith.mulf %8, %7 : vector<256x256xf32>
    %10 = arith.maximumf %7, %9 : vector<256x256xf32>
    %11 = arith.truncf %10 : vector<256x256xf32> to vector<256x256xbf16>
    %c0_6 = arith.constant 0 : index
    %c0_7 = arith.constant 0 : index
    %12 = vector.load %arg3[%c0_6, %c0_7] : memref<256x256xbf16, #tpu.memory_space<vmem>>, vector<256x256xbf16>
    %cst_8 = arith.constant dense<0.000000e+00> : vector<256x256xf32>
    %13 = tpu.matmul %11, %12, %cst_8 {dimension_numbers = #tpu.dot_dimension_numbers<[1], [0], [0], [1], [0, 0, 1, 1], [], []>} : vector<256x256xbf16>, vector<256x256xbf16>, vector<256x256xf32> -> vector<256x256xf32>
    %c1 = arith.constant 1 : index
    %c0_9 = arith.constant 0 : index
    %14 = vector.load %arg7[%c1, %c0_9] : memref<5x512xf32, #tpu.memory_space<vmem>>, vector<1x256xf32>
    %15 = vector.shape_cast %14 : vector<1x256xf32> to vector<256xf32>
    %16 = vector.shape_cast %15 : vector<256xf32> to vector<1x256xf32>
    %17 = vector.broadcast %16 : vector<1x256xf32> to vector<256x256xf32>
    %18 = arith.addf %13, %17 : vector<256x256xf32>
    %cst_10 = arith.constant 2.000000e-01 : f32
    %19 = vector.broadcast %cst_10 : f32 to vector<256x256xf32>
    %20 = arith.mulf %19, %18 : vector<256x256xf32>
    %21 = arith.maximumf %18, %20 : vector<256x256xf32>
    %22 = arith.truncf %21 : vector<256x256xf32> to vector<256x256xbf16>
    %c0_11 = arith.constant 0 : index
    %c0_12 = arith.constant 0 : index
    %23 = vector.load %arg4[%c0_11, %c0_12] : memref<256x512xbf16, #tpu.memory_space<vmem>>, vector<256x512xbf16>
    %cst_13 = arith.constant dense<0.000000e+00> : vector<256x512xf32>
    %24 = tpu.matmul %22, %23, %cst_13 {dimension_numbers = #tpu.dot_dimension_numbers<[1], [0], [0], [1], [0, 0, 1, 1], [], []>} : vector<256x256xbf16>, vector<256x512xbf16>, vector<256x512xf32> -> vector<256x512xf32>
    %c2 = arith.constant 2 : index
    %c0_14 = arith.constant 0 : index
    %25 = vector.load %arg7[%c2, %c0_14] : memref<5x512xf32, #tpu.memory_space<vmem>>, vector<1x512xf32>
    %26 = vector.shape_cast %25 : vector<1x512xf32> to vector<512xf32>
    %27 = vector.shape_cast %26 : vector<512xf32> to vector<1x512xf32>
    %28 = vector.broadcast %27 : vector<1x512xf32> to vector<256x512xf32>
    %29 = arith.addf %24, %28 : vector<256x512xf32>
    %cst_15 = arith.constant 2.000000e-01 : f32
    %30 = vector.broadcast %cst_15 : f32 to vector<256x512xf32>
    %31 = arith.mulf %30, %29 : vector<256x512xf32>
    %32 = arith.maximumf %29, %31 : vector<256x512xf32>
    %33 = arith.truncf %32 : vector<256x512xf32> to vector<256x512xbf16>
    %c0_16 = arith.constant 0 : index
    %c0_17 = arith.constant 0 : index
    %34 = vector.load %arg5[%c0_16, %c0_17] : memref<512x512xbf16, #tpu.memory_space<vmem>>, vector<512x512xbf16>
    %cst_18 = arith.constant dense<0.000000e+00> : vector<256x512xf32>
    %35 = tpu.matmul %33, %34, %cst_18 {dimension_numbers = #tpu.dot_dimension_numbers<[1], [0], [0], [1], [0, 0, 1, 1], [], []>} : vector<256x512xbf16>, vector<512x512xbf16>, vector<256x512xf32> -> vector<256x512xf32>
    %c3 = arith.constant 3 : index
    %c0_19 = arith.constant 0 : index
    %36 = vector.load %arg7[%c3, %c0_19] : memref<5x512xf32, #tpu.memory_space<vmem>>, vector<1x512xf32>
    %37 = vector.shape_cast %36 : vector<1x512xf32> to vector<512xf32>
    %38 = vector.shape_cast %37 : vector<512xf32> to vector<1x512xf32>
    %39 = vector.broadcast %38 : vector<1x512xf32> to vector<256x512xf32>
    %40 = arith.addf %35, %39 : vector<256x512xf32>
    %cst_20 = arith.constant 2.000000e-01 : f32
    %41 = vector.broadcast %cst_20 : f32 to vector<256x512xf32>
    %42 = arith.mulf %41, %40 : vector<256x512xf32>
    %43 = arith.maximumf %40, %42 : vector<256x512xf32>
    %44 = arith.truncf %43 : vector<256x512xf32> to vector<256x512xbf16>
    %c0_21 = arith.constant 0 : index
    %c0_22 = arith.constant 0 : index
    %45 = vector.load %arg6[%c0_21, %c0_22] : memref<512x8xbf16, #tpu.memory_space<vmem>>, vector<512x8xbf16>
    %cst_23 = arith.constant dense<0.000000e+00> : vector<256x8xf32>
    %46 = tpu.matmul %44, %45, %cst_23 {dimension_numbers = #tpu.dot_dimension_numbers<[1], [0], [0], [1], [0, 0, 1, 1], [], []>} : vector<256x512xbf16>, vector<512x8xbf16>, vector<256x8xf32> -> vector<256x8xf32>
    %c4 = arith.constant 4 : index
    %c0_24 = arith.constant 0 : index
    %47 = vector.load %arg7[%c4, %c0_24] : memref<5x512xf32, #tpu.memory_space<vmem>>, vector<1x8xf32>
    %48 = vector.shape_cast %47 : vector<1x8xf32> to vector<8xf32>
    %49 = vector.shape_cast %48 : vector<8xf32> to vector<1x8xf32>
    %50 = vector.broadcast %49 : vector<1x8xf32> to vector<256x8xf32>
    %51 = arith.addf %46, %50 : vector<256x8xf32>
    %52 = arith.negf %51 : vector<256x8xf32>
    %53 = math.exp %52 : vector<256x8xf32>
    %cst_25 = arith.constant 1.000000e+00 : f32
    %54 = vector.broadcast %cst_25 : f32 to vector<256x8xf32>
    %55 = arith.addf %54, %53 : vector<256x8xf32>
    %56 = arith.divf %54, %55 : vector<256x8xf32>
    %c0_26 = arith.constant 0 : index
    %c0_27 = arith.constant 0 : index
    %57 = vector.load %arg8[%c0_26, %c0_27] : memref<256x8xf32, #tpu.memory_space<vmem>>, vector<256x8xf32>
    tpu.vector_store %arg8[%c0_26, %c0_27], %56 {strides = array<i32>} : memref<256x8xf32, #tpu.memory_space<vmem>>, vector<256x8xf32>,
    return
  }
  func.func @transform_0(%arg0: i32) -> (i32, i32) {
    %c0_i32 = arith.constant 0 : i32
    %c0_i32_0 = arith.constant 0 : i32
    return %arg0, %c0_i32 : i32, i32
  }
  func.func @transform_1(%arg0: i32) -> (i32, i32) {
    %c0_i32 = arith.constant 0 : i32
    %c0_i32_0 = arith.constant 0 : i32
    %c0_i32_1 = arith.constant 0 : i32
    return %c0_i32, %c0_i32_0 : i32, i32
  }
  func.func @transform_2(%arg0: i32) -> (i32, i32) {
    %c0_i32 = arith.constant 0 : i32
    %c0_i32_0 = arith.constant 0 : i32
    %c0_i32_1 = arith.constant 0 : i32
    return %c0_i32, %c0_i32_0 : i32, i32
  }
  func.func @transform_3(%arg0: i32) -> (i32, i32) {
    %c0_i32 = arith.constant 0 : i32
    %c0_i32_0 = arith.constant 0 : i32
    %c0_i32_1 = arith.constant 0 : i32
    return %c0_i32, %c0_i32_0 : i32, i32
  }
  func.func @transform_4(%arg0: i32) -> (i32, i32) {
    %c0_i32 = arith.constant 0 : i32
    %c0_i32_0 = arith.constant 0 : i32
    %c0_i32_1 = arith.constant 0 : i32
    return %c0_i32, %c0_i32_0 : i32, i32
  }
  func.func @transform_5(%arg0: i32) -> (i32, i32) {
    %c0_i32 = arith.constant 0 : i32
    %c0_i32_0 = arith.constant 0 : i32
    %c0_i32_1 = arith.constant 0 : i32
    return %c0_i32, %c0_i32_0 : i32, i32
  }
  func.func @transform_6(%arg0: i32) -> (i32, i32) {
    %c0_i32 = arith.constant 0 : i32
    %c0_i32_0 = arith.constant 0 : i32
    %c0_i32_1 = arith.constant 0 : i32
    return %c0_i32, %c0_i32_0 : i32, i32
  }
  func.func @transform_7(%arg0: i32) -> (i32, i32) {
    %c0_i32 = arith.constant 0 : i32
    %c0_i32_0 = arith.constant 0 : i32
    return %arg0, %c0_i32 : i32, i32
  }
}

</mosaic_0001>

<llo_original>
// kernel: cnnpred_forward.1
$region0: #{cnnpred_forward.1}
  #allocation0 [shape = 'u32[]', space=smem, size = 0x4, offset = 0x4, fixed_abs, tag = 'smem constant byte address 0x4 - core index']
  #allocation1 [shape = 'u32[144,128]{1,0:T(1,128)}', space=vmem, size = 0x12000, scoped, tag = 'internal scratch']
  %s0 = inlined_call_operand.vmem [shape: bf16[512,48], index: 0, kind: input, shape index: {}]
  %s1 = inlined_call_operand.vmem [shape: bf16[48,256], index: 1, kind: input, shape index: {}]
  %s2 = inlined_call_operand.vmem [shape: bf16[256,256], index: 2, kind: input, shape index: {}]
  %s3 = inlined_call_operand.vmem [shape: bf16[256,512], index: 3, kind: input, shape index: {}]
  %s4 = inlined_call_operand.vmem [shape: bf16[512,512], index: 4, kind: input, shape index: {}]
  %s5 = inlined_call_operand.vmem [shape: bf16[512,8], index: 5, kind: input, shape index: {}]
  %s6 = inlined_call_operand.vmem [shape: f32[5,512], index: 6, kind: input, shape index: {}]
  %s7 = inlined_call_operand.vmem [shape: f32[512,8], index: 7, kind: output, shape index: {}]
  %s8 = sld [smem:[#allocation0]]
  $region61: #{cnnpred_forward.1} parent=0
    _
  %s10 = ssub.s32 1, %s8
  %s11 = scalar_select 0, %s10, %s8
  loop: start=0, step=1, limit=4
  $region2: #{cnnpred_forward.1} parent=0 // loop_pre_header
    _
  $region3: #{cnnpred_forward.1} parent=0 // loop_header
    %s13 = sphi 0, %s17
    %p14 = scmp.ge.s32.totalorder %s13, 4
    %s23 = sphi 0, %s25
    %s26 = sphi 0, %s23
    %s27 = sphi 0, %s26
    %s43 = sphi 0, %s27
    %s47 = sphi 0, %s47
    %s49 = sphi 0, %s47
    %s50 = sphi 0, %s49
    %s64 = sphi 0, %s50
    %s68 = sphi 0, %s68
    %s70 = sphi 0, %s68
    %s71 = sphi 0, %s70
    %s85 = sphi 0, %s71
    %s89 = sphi 0, %s89
    %s91 = sphi 0, %s89
    %s92 = sphi 0, %s91
    %s106 = sphi 0, %s92
    %s110 = sphi 0, %s110
    %s112 = sphi 0, %s110
    %s113 = sphi 0, %s112
    %s127 = sphi 0, %s113
    %s131 = sphi 0, %s131
    %s133 = sphi 0, %s131
    %s134 = sphi 0, %s133
    %s148 = sphi 0, %s134
    %s152 = sphi 0, %s152
    %s154 = sphi 0, %s152
    %s155 = sphi 0, %s154
    %s169 = sphi 0, %s155
    %s175 = sphi 0, %s177
    %s178 = sphi 0, %s175
    %s179 = sphi 0, %s178
    %s195 = sphi 0, %s179
  $region4: #{cnnpred_forward.1} parent=0 // loop_header_branch
    %16 = sbr.rel (%p14) target = $region8
  $region5: #{cnnpred_forward.1} parent=0 // loop_body
    %s18 = ssub.s32 %s13, 1
    %s19 = ssub.s32 %s13, 2
    %s20 = sadd.s32 %s13, 1
    %s21 = ssub.s32 %s13, %s20
    %p22 = scmp.eq.s32.totalorder %s21, 0
    %s24 = sadd.s32 %s23, 1
    %s25 = scalar_select %p22, %s23, %s24
    %p28 = pneg %p22
    %p29 = scmp.eq.s32.totalorder %s13, 1
    %p30 = por %p28, %p29
    %p31 = scmp.ne.s32.totalorder %s23, %s26
    %p32 = scmp.eq.s32.totalorder %s13, 0
    %p33 = por %p31, %p32
    %p34 = scmp.ne.s32.totalorder %s23, %s26
    %p35 = scmp.eq.s32.totalorder %s18, 1
    %p36 = por %p34, %p35
    %p37 = scmp.ne.s32.totalorder %s26, %s27
    %p38 = scmp.eq.s32.totalorder %s18, 0
    %p39 = por %p37, %p38
    %p40 = scmp.ne.s32.totalorder %s26, %s27
    %p41 = scmp.eq.s32.totalorder %s19, 1
    %p42 = por %p40, %p41
    %p44 = scmp.ne.s32.totalorder %s27, %s43
    %p45 = scmp.eq.s32.totalorder %s19, 0
    %p46 = por %p44, %p45
    %s48 = sadd.s32 %s47, 1
    %p51 = scmp.eq.s32.totalorder %s13, 1
    %p52 = scmp.ne.s32.totalorder %s47, %s49
    %p53 = scmp.eq.s32.totalorder %s13, 0
    %p54 = por %p52, %p53
    %p55 = scmp.ne.s32.totalorder %s47, %s49
    %p56 = scmp.eq.s32.totalorder %s18, 1
    %p57 = por %p55, %p56
    %p58 = scmp.ne.s32.totalorder %s49, %s50
    %p59 = scmp.eq.s32.totalorder %s18, 0
    %p60 = por %p58, %p59
    %p61 = scmp.ne.s32.totalorder %s49, %s50
    %p62 = scmp.eq.s32.totalorder %s19, 1
    %p63 = por %p61, %p62
    %p65 = scmp.ne.s32.totalorder %s50, %s64
    %p66 = scmp.eq.s32.totalorder %s19, 0
    %p67 = por %p65, %p66
    %s69 = sadd.s32 %s68, 1
    %p72 = scmp.eq.s32.totalorder %s13, 1
    %p73 = scmp.ne.s32.totalorder %s68, %s70
    %p74 = scmp.eq.s32.totalorder %s13, 0
    %p75 = por %p73, %p74
    %p76 = scmp.ne.s32.totalorder %s68, %s70
    %p77 = scmp.eq.s32.totalorder %s18, 1
    %p78 = por %p76, %p77
    %p79 = scmp.ne.s32.totalorder %s70, %s71
    %p80 = scmp.eq.s32.totalorder %s18, 0
    %p81 = por %p79, %p80
    %p82 = scmp.ne.s32.totalorder %s70, %s71
    %p83 = scmp.eq.s32.totalorder %s19, 1
    %p84 = por %p82, %p83
    %p86 = scmp.ne.s32.totalorder %s71, %s85
    %p87 = scmp.eq.s32.totalorder %s19, 0
    %p88 = por %p86, %p87
    %s90 = sadd.s32 %s89, 1
    %p93 = scmp.eq.s32.totalorder %s13, 1
    %p94 = scmp.ne.s32.totalorder %s89, %s91
    %p95 = scmp.eq.s32.totalorder %s13, 0
    %p96 = por %p94, %p95
    %p97 = scmp.ne.s32.totalorder %s89, %s91
    %p98 = scmp.eq.s32.totalorder %s18, 1
    %p99 = por %p97, %p98
    %p100 = scmp.ne.s32.totalorder %s91, %s92
    %p101 = scmp.eq.s32.totalorder %s18, 0
    %p102 = por %p100, %p101
    %p103 = scmp.ne.s32.totalorder %s91, %s92
    %p104 = scmp.eq.s32.totalorder %s19, 1
    %p105 = por %p103, %p104
    %p107 = scmp.ne.s32.totalorder %s92, %s106
    %p108 = scmp.eq.s32.totalorder %s19, 0
    %p109 = por %p107, %p108
    %s111 = sadd.s32 %s110, 1
    %p114 = scmp.eq.s32.totalorder %s13, 1
    %p115 = scmp.ne.s32.totalorder %s110, %s112
    %p116 = scmp.eq.s32.totalorder %s13, 0
    %p117 = por %p115, %p116
    %p118 = scmp.ne.s32.totalorder %s110, %s112
    %p119 = scmp.eq.s32.totalorder %s18, 1
    %p120 = por %p118, %p119
    %p121 = scmp.ne.s32.totalorder %s112, %s113
    %p122 = scmp.eq.s32.totalorder %s18, 0
    %p123 = por %p121, %p122
    %p124 = scmp.ne.s32.totalorder %s112, %s113
    %p125 = scmp.eq.s32.totalorder %s19, 1
    %p126 = por %p124, %p125
    %p128 = scmp.ne.s32.totalorder %s113, %s127
    %p129 = scmp.eq.s32.totalorder %s19, 0
    %p130 = por %p128, %p129
    %s132 = sadd.s32 %s131, 1
    %p135 = scmp.eq.s32.totalorder %s13, 1
    %p136 = scmp.ne.s32.totalorder %s131, %s133
    %p137 = scmp.eq.s32.totalorder %s13, 0
    %p138 = por %p136, %p137
    %p139 = scmp.ne.s32.totalorder %s131, %s133
    %p140 = scmp.eq.s32.totalorder %s18, 1
    %p141 = por %p139, %p140
    %p142 = scmp.ne.s32.totalorder %s133, %s134
    %p143 = scmp.eq.s32.totalorder %s18, 0
    %p144 = por %p142, %p143
    %p145 = scmp.ne.s32.totalorder %s133, %s134
    %p146 = scmp.eq.s32.totalorder %s19, 1
    %p147 = por %p145, %p146
    %p149 = scmp.ne.s32.totalorder %s134, %s148
    %p150 = scmp.eq.s32.totalorder %s19, 0
    %p151 = por %p149, %p150
    %s153 = sadd.s32 %s152, 1
    %p156 = scmp.eq.s32.totalorder %s13, 1
    %p157 = scmp.ne.s32.totalorder %s152, %s154
    %p158 = scmp.eq.s32.totalorder %s13, 0
    %p159 = por %p157, %p158
    %p160 = scmp.ne.s32.totalorder %s152, %s154
    %p161 = scmp.eq.s32.totalorder %s18, 1
    %p162 = por %p160, %p161
    %p163 = scmp.ne.s32.totalorder %s154, %s155
    %p164 = scmp.eq.s32.totalorder %s18, 0
    %p165 = por %p163, %p164
    %p166 = scmp.ne.s32.totalorder %s154, %s155
    %p167 = scmp.eq.s32.totalorder %s19, 1
    %p168 = por %p166, %p167
    %p170 = scmp.ne.s32.totalorder %s155, %s169
    %p171 = scmp.eq.s32.totalorder %s19, 0
    %p172 = por %p170, %p171
    %s173 = ssub.s32 %s13, %s20
    %p174 = scmp.eq.s32.totalorder %s173, 0
    %s176 = sadd.s32 %s175, 1
    %s177 = scalar_select %p174, %s175, %s176
    %p180 = pneg %p174
    %p181 = scmp.eq.s32.totalorder %s13, 1
    %p182 = por %p180, %p181
    %p183 = scmp.ne.s32.totalorder %s175, %s178
    %p184 = scmp.eq.s32.totalorder %s13, 0
    %p185 = por %p183, %p184
    %p186 = scmp.ne.s32.totalorder %s175, %s178
    %p187 = scmp.eq.s32.totalorder %s18, 1
    %p188 = por %p186, %p187
    %p189 = scmp.ne.s32.totalorder %s178, %s179
    %p190 = scmp.eq.s32.totalorder %s18, 0
    %p191 = por %p189, %p190
    %p192 = scmp.ne.s32.totalorder %s178, %s179
    %p193 = scmp.eq.s32.totalorder %s19, 1
    %p194 = por %p192, %p193
    %p196 = scmp.ne.s32.totalorder %s179, %s195
    %p197 = scmp.eq.s32.totalorder %s19, 0
    %p198 = por %p196, %p197
    %p199 = scmp.le.s32.totalorder 1, %s13
    %p200 = scmp.lt.s32.totalorder %s13, 3
    %p201 = pnand %p199, %p200
    %p202 = pneg %p201
    // Predicated region
    $region9: #{cnnpred_forward.1} parent=5 // pred_check
      _
    $region10: #{cnnpred_forward.1} parent=5 // pred_check_branch
      %204 = sbr.rel (%p201) target = $region12
    $region11: #{cnnpred_forward.1} parent=5 // pred_region
      %s205 = ssub.s32 %s13, 1
      // Predicated region
      $region13: #{cnnpred_forward.1} parent=11 // pred_check
        %p206 = pneg %p60
      $region14: #{cnnpred_forward.1} parent=11 // pred_check_branch
        %208 = sbr.rel (%p206) target = $region16
      $region15: #{cnnpred_forward.1} parent=11 // pred_region
        _
      $region16: #{cnnpred_forward.1} parent=11 // pred_fallthru
        _
      // Predicated region
      $region17: #{cnnpred_forward.1} parent=11 // pred_check
        %p209 = pneg %p81
      $region18: #{cnnpred_forward.1} parent=11 // pred_check_branch
        %211 = sbr.rel (%p209) target = $region20
      $region19: #{cnnpred_forward.1} parent=11 // pred_region
        _
      $region20: #{cnnpred_forward.1} parent=11 // pred_fallthru
        _
      // Predicated region
      $region21: #{cnnpred_forward.1} parent=11 // pred_check
        %p212 = pneg %p102
      $region22: #{cnnpred_forward.1} parent=11 // pred_check_branch
        %214 = sbr.rel (%p212) target = $region24
      $region23: #{cnnpred_forward.1} parent=11 // pred_region
        _
      $region24: #{cnnpred_forward.1} parent=11 // pred_fallthru
        _
      // Predicated region
      $region25: #{cnnpred_forward.1} parent=11 // pred_check
        %p215 = pneg %p123
      $region26: #{cnnpred_forward.1} parent=11 // pred_check_branch
        %217 = sbr.rel (%p215) target = $region28
      $region27: #{cnnpred_forward.1} parent=11 // pred_region
        _
      $region28: #{cnnpred_forward.1} parent=11 // pred_fallthru
        _
      // Predicated region
      $region29: #{cnnpred_forward.1} parent=11 // pred_check
        %p218 = pneg %p144
      $region30: #{cnnpred_forward.1} parent=11 // pred_check_branch
        %220 = sbr.rel (%p218) target = $region32
      $region31: #{cnnpred_forward.1} parent=11 // pred_region
        _
      $region32: #{cnnpred_forward.1} parent=11 // pred_fallthru
        _
      // Predicated region
      $region33: #{cnnpred_forward.1} parent=11 // pred_check
        %p221 = pneg %p165
      $region34: #{cnnpred_forward.1} parent=11 // pred_check_branch
        %223 = sbr.rel (%p221) target = $region36
      $region35: #{cnnpred_forward.1} parent=11 // pred_region
        _
      $region36: #{cnnpred_forward.1} parent=11 // pred_fallthru
        _
    $region12: #{cnnpred_forward.1} parent=5 // pred_fallthru
      _
    %p224 = scmp.lt.s32.totalorder %s13, 2
    // Predicated region
    $region37: #{cnnpred_forward.1} parent=5 // pred_check
      %p225 = pneg %p224
    $region38: #{cnnpred_forward.1} parent=5 // pred_check_branch
      %227 = sbr.rel (%p225) target = $region40
    $region39: #{cnnpred_forward.1} parent=5 // pred_region
      // Predicated region
      $region41: #{cnnpred_forward.1} parent=39 // pred_check
        %p228 = pneg %p33
      $region42: #{cnnpred_forward.1} parent=39 // pred_check_branch
        %230 = sbr.rel (%p228) target = $region44
      $region43: #{cnnpred_forward.1} parent=39 // pred_region
        %s231 = smul.u32 32, %s13
        %p232 = scmp.lt.s32.totalorder %s231, 63
        %s233 = scalar_select %p232, %s231, 63
        %s234 = smul.addr %s233, 4
        %s235 = scalar_lea.vmem %s0, %s234
        %s236 = smul.u32 32, %s13
      $region44: #{cnnpred_forward.1} parent=39 // pred_fallthru
        _
    $region40: #{cnnpred_forward.1} parent=5 // pred_fallthru
      _
    %p237 = scmp.le.s32.totalorder 1, %s13
    %p238 = scmp.lt.s32.totalorder %s13, 3
    %p239 = pnand %p237, %p238
    %p240 = pneg %p239
    // Predicated region
    $region45: #{cnnpred_forward.1} parent=5 // pred_check
      _
    $region46: #{cnnpred_forward.1} parent=5 // pred_check_branch
      %242 = sbr.rel (%p239) target = $region48
    $region47: #{cnnpred_forward.1} parent=5 // pred_region
      %s243 = ssub.s32 %s13, 1
      %s244 = smul.u32 32, %s18
      %p245 = scmp.lt.s32.totalorder %s244, 63
      %s246 = scalar_select %p245, %s244, 63
      %s247 = smul.addr %s246, 4
      %s248 = scalar_lea.vmem %s0, %s247
      %p249 = pneg %p39
      %p250 = pneg %p36
      %p251 = pneg %p60
      %p252 = pneg %p57
      %p253 = pneg %p81
      %p254 = pneg %p78
      %p255 = pneg %p102
      %p256 = pneg %p99
      %p257 = pneg %p123
      %p258 = pneg %p120
      %p259 = pneg %p144
      %p260 = pneg %p141
      %p261 = pneg %p165
      %p262 = pneg %p162
      %p263 = pneg %p191
      %p264 = pneg %p188
      %s265 = smul.u32 32, %s18
      %p266 = scmp.lt.s32.totalorder %s265, 63
      %s267 = scalar_select %p266, %s265, 63
      %s268 = smul.addr %s267, 8
      %s269 = scalar_lea.vmem %s7, %s268
      %s270 = smul.u32 32, %s18
      %p271 = scmp.lt.s32.totalorder %s270, 63
      %s272 = scalar_select %p271, %s270, 63
      %s273 = smul.addr %s272, 4
      %s274 = scalar_lea.vmem %s0, %s273
      %s275 = smul.u32 32, %s18
      %s276 = smul.u32 32, %s18
      %p277 = scmp.lt.s32.totalorder %s276, 63
      %s278 = scalar_select %p277, %s276, 63
      %s279 = smul.addr %s278, 8
      %s280 = scalar_lea.vmem %s7, %s279
      %s281 = smul.u32 32, %s18
      %v283 = vld [vmem:[%s274] sm:$0xf]
      %v284 = vld [vmem:[%s274 + $0x4] sm:$0xf]
      %v285 = vld [vmem:[%s274 + $0x8] sm:$0xf]
      %v286 = vld [vmem:[%s274 + $0xc] sm:$0xf]
      %v287 = vld [vmem:[%s274 + $0x10] sm:$0xf]
      %v288 = vld [vmem:[%s274 + $0x14] sm:$0xf]
      %v289 = vld [vmem:[%s274 + $0x18] sm:$0xf]
      %v290 = vld [vmem:[%s274 + $0x1c] sm:$0xf]
      %v291 = vld [vmem:[%s274 + $0x20] sm:$0xf]
      %v292 = vld [vmem:[%s274 + $0x24] sm:$0xf]
      %v293 = vld [vmem:[%s274 + $0x28] sm:$0xf]
      %v294 = vld [vmem:[%s274 + $0x2c] sm:$0xf]
      %v295 = vld [vmem:[%s274 + $0x30] sm:$0xf]
      %v296 = vld [vmem:[%s274 + $0x34] sm:$0xf]
      %v297 = vld [vmem:[%s274 + $0x38] sm:$0xf]
      %v298 = vld [vmem:[%s274 + $0x3c] sm:$0xf]
      %v299 = vld [vmem:[%s274 + $0x40] sm:$0xf]
      %v300 = vld [vmem:[%s274 + $0x44] sm:$0xf]
      %v301 = vld [vmem:[%s274 + $0x48] sm:$0xf]
      %v302 = vld [vmem:[%s274 + $0x4c] sm:$0xf]
      %v303 = vld [vmem:[%s274 + $0x50] sm:$0xf]
      %v304 = vld [vmem:[%s274 + $0x54] sm:$0xf]
      %v305 = vld [vmem:[%s274 + $0x58] sm:$0xf]
      %v306 = vld [vmem:[%s274 + $0x5c] sm:$0xf]
      %v307 = vld [vmem:[%s274 + $0x60] sm:$0xf]
      %v308 = vld [vmem:[%s274 + $0x64] sm:$0xf]
      %v309 = vld [vmem:[%s274 + $0x68] sm:$0xf]
      %v310 = vld [vmem:[%s274 + $0x6c] sm:$0xf]
      %v311 = vld [vmem:[%s274 + $0x70] sm:$0xf]
      %v312 = vld [vmem:[%s274 + $0x74] sm:$0xf]
      %v313 = vld [vmem:[%s274 + $0x78] sm:$0xf]
      %v314 = vld [vmem:[%s274 + $0x7c] sm:$0xf]
      %v315 = vld [vmem:[%s1] sm:$0xff]
      %v316 = vld [vmem:[%s1 + $0x8] sm:$0xff]
      %v317 = vld [vmem:[%s1 + $0x10] sm:$0xff]
      %v318 = vld [vmem:[%s1 + $0x18] sm:$0xff]
      %v319 = vld [vmem:[%s1 + $0x20] sm:$0xff]
      %v320 = vld [vmem:[%s1 + $0x28] sm:$0xff]
      %v321 = vld [vmem:[%s6] ss:$8 sm:$0x3]
      %v323 = vlaneseq
      %v324 = vshrl.u32 %v323, 7
      %v325 = vsub.s32 0, %v324
      %v326 = vrot.slane %v321, %v325
      %v327 = vlaneseq
      %v328 = vshrl.u32 %v327, 7
      %v329 = vsub.s32 1, %v328
      %v330 = vrot.slane %v321, %v329
      %v365 = vunpack.c.l.b16 %v283
      %v366 = vunpack.c.l.b16 %v284
      %v367 = vunpack.c.l.b16 %v285
      %v368 = vunpack.c.l.b16 %v286
      %v369 = vunpack.c.l.b16 %v287
      %v370 = vunpack.c.l.b16 %v288
      %v371 = vunpack.c.l.b16 %v289
      %v372 = vunpack.c.l.b16 %v290
      %v373 = vunpack.c.l.b16 %v291
      %v374 = vunpack.c.l.b16 %v292
      %v375 = vunpack.c.l.b16 %v293
      %v376 = vunpack.c.l.b16 %v294
      %v377 = vunpack.c.l.b16 %v295
      %v378 = vunpack.c.l.b16 %v296
      %v379 = vunpack.c.l.b16 %v297
      %v380 = vunpack.c.l.b16 %v298
      %v381 = vunpack.c.l.b16 %v299
      %v382 = vunpack.c.l.b16 %v300
      %v383 = vunpack.c.l.b16 %v301
      %v384 = vunpack.c.l.b16 %v302
      %v385 = vunpack.c.l.b16 %v303
      %v386 = vunpack.c.l.b16 %v304
      %v387 = vunpack.c.l.b16 %v305
      %v388 = vunpack.c.l.b16 %v306
      %v389 = vunpack.c.l.b16 %v307
      %v390 = vunpack.c.l.b16 %v308
      %v391 = vunpack.c.l.b16 %v309
      %v392 = vunpack.c.l.b16 %v310
      %v393 = vunpack.c.l.b16 %v311
      %v394 = vunpack.c.l.b16 %v312
      %v395 = vunpack.c.l.b16 %v313
      %v396 = vunpack.c.l.b16 %v314
      %v397 = vpack.c.b16 %v366, %v365
      %v398 = vpack.c.b16 %v368, %v367
      %v399 = vpack.c.b16 %v370, %v369
      %v400 = vpack.c.b16 %v372, %v371
      %v401 = vpack.c.b16 %v374, %v373
      %v402 = vpack.c.b16 %v376, %v375
      %v403 = vpack.c.b16 %v378, %v377
      %v404 = vpack.c.b16 %v380, %v379
      %v405 = vpack.c.b16 %v382, %v381
      %v406 = vpack.c.b16 %v384, %v383
      %v407 = vpack.c.b16 %v386, %v385
      %v408 = vpack.c.b16 %v388, %v387
      %v409 = vpack.c.b16 %v390, %v389
      %v410 = vpack.c.b16 %v392, %v391
      %v411 = vpack.c.b16 %v394, %v393
      %v412 = vpack.c.b16 %v396, %v395
      %v419 = vunpack.c.l.b16 %v315
      %v420 = vunpack.c.h.b16 %v315
      %v421 = vunpack.c.l.b16 %v316
      %v422 = vunpack.c.h.b16 %v316
      %v423 = vunpack.c.l.b16 %v317
      %v424 = vunpack.c.h.b16 %v317
      %v425 = vunpack.c.l.b16 %v318
      %v426 = vunpack.c.h.b16 %v318
      %v427 = vunpack.c.l.b16 %v319
      %v428 = vunpack.c.h.b16 %v319
      %v429 = vunpack.c.l.b16 %v320
      %v430 = vunpack.c.h.b16 %v320
      %v431 = vpack.c.b16 %v421, %v419
      %v432 = vpack.c.b16 %v422, %v420
      %v433 = vpack.c.b16 %v425, %v423
      %v434 = vpack.c.b16 %v426, %v424
      %v435 = vpack.c.b16 %v429, %v427
      %v436 = vpack.c.b16 %v430, %v428
      %vm443 = vcmask 392192
      %v445 = vsel %vm443, %v397, 0
      %v448 = vsel %vm443, %v398, 0
      %v451 = vsel %vm443, %v399, 0
      %v454 = vsel %vm443, %v400, 0
      %v457 = vsel %vm443, %v401, 0
      %v460 = vsel %vm443, %v402, 0
      %v463 = vsel %vm443, %v403, 0
      %v466 = vsel %vm443, %v404, 0
      %v469 = vsel %vm443, %v405, 0
      %v472 = vsel %vm443, %v406, 0
      %v475 = vsel %vm443, %v407, 0
      %v478 = vsel %vm443, %v408, 0
      %v481 = vsel %vm443, %v409, 0
      %v484 = vsel %vm443, %v410, 0
      %v487 = vsel %vm443, %v411, 0
      %v490 = vsel %vm443, %v412, 0
      %492 = vmatprep.subr.bf16.mxu0 %v432
      %493 = vmatpush1.bf16.msra.mxu0 %v431
      %494 = vmatprep.subr.bf16.mxu0 %v434
      %495 = vmatpush1.bf16.msra.mxu0 %v433
      %496 = vmatprep.subr.bf16.mxu0 %v436
      %497 = vmatpush1.bf16.msra.mxu0 %v435
      %498 = vmatprep.subr.bf16.mxu0 0
      %499 = vmatpush1.bf16.msra.mxu0 0
      %500 = vmatprep.subr.bf16.mxu0 0
      %501 = vmatpush1.bf16.msra.mxu0 0
      %502 = vmatprep.subr.bf16.mxu0 0
      %503 = vmatpush1.bf16.msra.mxu0 0
      %504 = vmatprep.subr.bf16.mxu0 0
      %505 = vmatpush1.bf16.msra.mxu0 0
      %506 = vmatprep.subr.bf16.mxu0 0
      %507 = vmatpush1.bf16.msra.mxu0 0
      %508 = vmatprep.subr.bf16.mxu0 0
      %509 = vmatpush1.bf16.msra.mxu0 0
      %510 = vmatprep.subr.bf16.mxu0 0
      %511 = vmatpush1.bf16.msra.mxu0 0
      %512 = vmatprep.subr.bf16.mxu0 0
      %513 = vmatpush1.bf16.msra.mxu0 0
      %514 = vmatprep.subr.bf16.mxu0 0
      %515 = vmatpush1.bf16.msra.mxu0 0
      %516 = vmatprep.subr.bf16.mxu0 0
      %517 = vmatpush1.bf16.msra.mxu0 0
      %518 = vmatprep.subr.bf16.mxu0 0
      %519 = vmatpush1.bf16.msra.mxu0 0
      %520 = vmatprep.subr.bf16.mxu0 0
      %521 = vmatpush1.bf16.msra.mxu0 0
      %522 = vmatprep.subr.bf16.mxu0 0
      %523 = vmatpush1.bf16.msra.mxu0 0
      %524 = vmatprep.mubr.bf16.mxu0 0
      %525 = vmatmul.mubr.bf16.gmra.mrb[0].mxu0 %v445
      %v526 = vpop.f32.mrb[0].mxu0
      %v527 = vadd.f32 %v326, %v526
      %v528 = vpop.f32.mrb[0].mxu0
      %v529 = vadd.f32 %v330, %v528
      %v530 = vpop.f32.mrb[0].mxu0
      %v531 = vadd.f32 %v326, %v530
      %v532 = vpop.f32.mrb[0].mxu0
      %v533 = vadd.f32 %v330, %v532
      %534 = vmatprep.mubr.bf16.mxu0 0
      %535 = vmatmul.mubr.bf16.gmra.mrb[0].mxu0 %v448
      %v536 = vpop.f32.mrb[0].mxu0
      %v537 = vadd.f32 %v326, %v536
      %v538 = vpop.f32.mrb[0].mxu0
      %v539 = vadd.f32 %v330, %v538
      %v540 = vpop.f32.mrb[0].mxu0
      %v541 = vadd.f32 %v326, %v540
      %v542 = vpop.f32.mrb[0].mxu0
      %v543 = vadd.f32 %v330, %v542
      %544 = vmatprep.mubr.bf16.mxu0 0
      %545 = vmatmul.mubr.bf16.gmra.mrb[0].mxu0 %v451
      %v546 = vpop.f32.mrb[0].mxu0
      %v547 = vadd.f32 %v326, %v546
      %v548 = vpop.f32.mrb[0].mxu0
      %v549 = vadd.f32 %v330, %v548
      %v550 = vpop.f32.mrb[0].mxu0
      %v551 = vadd.f32 %v326, %v550
      %v552 = vpop.f32.mrb[0].mxu0
      %v553 = vadd.f32 %v330, %v552
      %554 = vmatprep.mubr.bf16.mxu0 0
      %555 = vmatmul.mubr.bf16.gmra.mrb[0].mxu0 %v454
      %v556 = vpop.f32.mrb[0].mxu0
      %v557 = vadd.f32 %v326, %v556
      %v558 = vpop.f32.mrb[0].mxu0
      %v559 = vadd.f32 %v330, %v558
      %v560 = vpop.f32.mrb[0].mxu0
      %v561 = vadd.f32 %v326, %v560
      %v562 = vpop.f32.mrb[0].mxu0
      %v563 = vadd.f32 %v330, %v562
      %564 = vmatprep.mubr.bf16.mxu0 0
      %565 = vmatmul.mubr.bf16.gmra.mrb[0].mxu0 %v457
      %v566 = vpop.f32.mrb[0].mxu0
      %v567 = vadd.f32 %v326, %v566
      %v568 = vpop.f32.mrb[0].mxu0
      %v569 = vadd.f32 %v330, %v568
      %v570 = vpop.f32.mrb[0].mxu0
      %v571 = vadd.f32 %v326, %v570
      %v572 = vpop.f32.mrb[0].mxu0
      %v573 = vadd.f32 %v330, %v572
      %574 = vmatprep.mubr.bf16.mxu0 0
      %575 = vmatmul.mubr.bf16.gmra.mrb[0].mxu0 %v460
      %v576 = vpop.f32.mrb[0].mxu0
      %v577 = vadd.f32 %v326, %v576
      %v578 = vpop.f32.mrb[0].mxu0
      %v579 = vadd.f32 %v330, %v578
      %v580 = vpop.f32.mrb[0].mxu0
      %v581 = vadd.f32 %v326, %v580
      %v582 = vpop.f32.mrb[0].mxu0
      %v583 = vadd.f32 %v330, %v582
      %584 = vmatprep.mubr.bf16.mxu0 0
      %585 = vmatmul.mubr.bf16.gmra.mrb[0].mxu0 %v463
      %v586 = vpop.f32.mrb[0].mxu0
      %v587 = vadd.f32 %v326, %v586
      %v588 = vpop.f32.mrb[0].mxu0
      %v589 = vadd.f32 %v330, %v588
      %v590 = vpop.f32.mrb[0].mxu0
      %v591 = vadd.f32 %v326, %v590
      %v592 = vpop.f32.mrb[0].mxu0
      %v593 = vadd.f32 %v330, %v592
      %594 = vmatprep.mubr.bf16.mxu0 0
      %595 = vmatmul.mubr.bf16.gmra.mrb[0].mxu0 %v466
      %v596 = vpop.f32.mrb[0].mxu0
      %v597 = vadd.f32 %v326, %v596
      %v598 = vpop.f32.mrb[0].mxu0
      %v599 = vadd.f32 %v330, %v598
      %v600 = vpop.f32.mrb[0].mxu0
      %v601 = vadd.f32 %v326, %v600
      %v602 = vpop.f32.mrb[0].mxu0
      %v603 = vadd.f32 %v330, %v602
      %604 = vmatprep.mubr.bf16.mxu0 0
      %605 = vmatmul.mubr.bf16.gmra.mrb[0].mxu0 %v469
      %v606 = vpop.f32.mrb[0].mxu0
      %v607 = vadd.f32 %v326, %v606
      %v608 = vpop.f32.mrb[0].mxu0
      %v609 = vadd.f32 %v330, %v608
      %v610 = vpop.f32.mrb[0].mxu0
      %v611 = vadd.f32 %v326, %v610
      %v612 = vpop.f32.mrb[0].mxu0
      %v613 = vadd.f32 %v330, %v612
      %614 = vmatprep.mubr.bf16.mxu0 0
      %615 = vmatmul.mubr.bf16.gmra.mrb[0].mxu0 %v472
      %v616 = vpop.f32.mrb[0].mxu0
      %v617 = vadd.f32 %v326, %v616
      %v618 = vpop.f32.mrb[0].mxu0
      %v619 = vadd.f32 %v330, %v618
      %v620 = vpop.f32.mrb[0].mxu0
      %v621 = vadd.f32 %v326, %v620
      %v622 = vpop.f32.mrb[0].mxu0
      %v623 = vadd.f32 %v330, %v622
      %624 = vmatprep.mubr.bf16.mxu0 0
      %625 = vmatmul.mubr.bf16.gmra.mrb[0].mxu0 %v475
      %v626 = vpop.f32.mrb[0].mxu0
      %v627 = vadd.f32 %v326, %v626
      %v628 = vpop.f32.mrb[0].mxu0
      %v629 = vadd.f32 %v330, %v628
      %v630 = vpop.f32.mrb[0].mxu0
      %v631 = vadd.f32 %v326, %v630
      %v632 = vpop.f32.mrb[0].mxu0
      %v633 = vadd.f32 %v330, %v632
      %634 = vmatprep.mubr.bf16.mxu0 0
      %635 = vmatmul.mubr.bf16.gmra.mrb[0].mxu0 %v478
      %v636 = vpop.f32.mrb[0].mxu0
      %v637 = vadd.f32 %v326, %v636
      %v638 = vpop.f32.mrb[0].mxu0
      %v639 = vadd.f32 %v330, %v638
      %v640 = vpop.f32.mrb[0].mxu0
      %v641 = vadd.f32 %v326, %v640
      %v642 = vpop.f32.mrb[0].mxu0
      %v643 = vadd.f32 %v330, %v642
      %644 = vmatprep.mubr.bf16.mxu0 0
      %645 = vmatmul.mubr.bf16.gmra.mrb[0].mxu0 %v481
      %v646 = vpop.f32.mrb[0].mxu0
      %v647 = vadd.f32 %v326, %v646
      %v648 = vpop.f32.mrb[0].mxu0
      %v649 = vadd.f32 %v330, %v648
      %v650 = vpop.f32.mrb[0].mxu0
      %v651 = vadd.f32 %v326, %v650
      %v652 = vpop.f32.mrb[0].mxu0
      %v653 = vadd.f32 %v330, %v652
      %654 = vmatprep.mubr.bf16.mxu0 0
      %655 = vmatmul.mubr.bf16.gmra.mrb[0].mxu0 %v484
      %v656 = vpop.f32.mrb[0].mxu0
      %v657 = vadd.f32 %v326, %v656
      %v658 = vpop.f32.mrb[0].mxu0
      %v659 = vadd.f32 %v330, %v658
      %v660 = vpop.f32.mrb[0].mxu0
      %v661 = vadd.f32 %v326, %v660
      %v662 = vpop.f32.mrb[0].mxu0
      %v663 = vadd.f32 %v330, %v662
      %664 = vmatprep.mubr.bf16.mxu0 0
      %665 = vmatmul.mubr.bf16.gmra.mrb[0].mxu0 %v487
      %v666 = vpop.f32.mrb[0].mxu0
      %v667 = vadd.f32 %v326, %v666
      %v668 = vpop.f32.mrb[0].mxu0
      %v669 = vadd.f32 %v330, %v668
      %v670 = vpop.f32.mrb[0].mxu0
      %v671 = vadd.f32 %v326, %v670
      %v672 = vpop.f32.mrb[0].mxu0
      %v673 = vadd.f32 %v330, %v672
      %674 = vmatprep.mubr.bf16.mxu0 0
      %675 = vmatmul.mubr.bf16.gmra.mrb[0].mxu0 %v490
      %v676 = vpop.f32.mrb[0].mxu0
      %v677 = vadd.f32 %v326, %v676
      %v678 = vpop.f32.mrb[0].mxu0
      %v679 = vadd.f32 %v330, %v678
      %v680 = vpop.f32.mrb[0].mxu0
      %v681 = vadd.f32 %v326, %v680
      %v682 = vpop.f32.mrb[0].mxu0
      %v683 = vadd.f32 %v330, %v682
      %684 = vdwg.mxu0
      %v685 = vmul.f32 %v527, 0.2
      %v686 = vmul.f32 %v529, 0.2
      %v687 = vmul.f32 %v531, 0.2
      %v688 = vmul.f32 %v533, 0.2
      %v689 = vmul.f32 %v537, 0.2
      %v690 = vmul.f32 %v539, 0.2
      %v691 = vmul.f32 %v541, 0.2
      %v692 = vmul.f32 %v543, 0.2
      %v693 = vmul.f32 %v547, 0.2
      %v694 = vmul.f32 %v549, 0.2
      %v695 = vmul.f32 %v551, 0.2
      %v696 = vmul.f32 %v553, 0.2
      %v697 = vmul.f32 %v557, 0.2
      %v698 = vmul.f32 %v559, 0.2
      %v699 = vmul.f32 %v561, 0.2
      %v700 = vmul.f32 %v563, 0.2
      %v701 = vmul.f32 %v567, 0.2
      %v702 = vmul.f32 %v569, 0.2
      %v703 = vmul.f32 %v571, 0.2
      %v704 = vmul.f32 %v573, 0.2
      %v705 = vmul.f32 %v577, 0.2
      %v706 = vmul.f32 %v579, 0.2
      %v707 = vmul.f32 %v581, 0.2
      %v708 = vmul.f32 %v583, 0.2
      %v709 = vmul.f32 %v587, 0.2
      %v710 = vmul.f32 %v589, 0.2
      %v711 = vmul.f32 %v591, 0.2
      %v712 = vmul.f32 %v593, 0.2
      %v713 = vmul.f32 %v597, 0.2
      %v714 = vmul.f32 %v599, 0.2
      %v715 = vmul.f32 %v601, 0.2
      %v716 = vmul.f32 %v603, 0.2
      %v717 = vmul.f32 %v607, 0.2
      %v718 = vmul.f32 %v609, 0.2
      %v719 = vmul.f32 %v611, 0.2
      %v720 = vmul.f32 %v613, 0.2
      %v721 = vmul.f32 %v617, 0.2
      %v722 = vmul.f32 %v619, 0.2
      %v723 = vmul.f32 %v621, 0.2
      %v724 = vmul.f32 %v623, 0.2
      %v725 = vmul.f32 %v627, 0.2
      %v726 = vmul.f32 %v629, 0.2
      %v727 = vmul.f32 %v631, 0.2
      %v728 = vmul.f32 %v633, 0.2
      %v729 = vmul.f32 %v637, 0.2
      %v730 = vmul.f32 %v639, 0.2
      %v731 = vmul.f32 %v641, 0.2
      %v732 = vmul.f32 %v643, 0.2
      %v733 = vmul.f32 %v647, 0.2
      %v734 = vmul.f32 %v649, 0.2
      %v735 = vmul.f32 %v651, 0.2
      %v736 = vmul.f32 %v653, 0.2
      %v737 = vmul.f32 %v657, 0.2
      %v738 = vmul.f32 %v659, 0.2
      %v739 = vmul.f32 %v661, 0.2
      %v740 = vmul.f32 %v663, 0.2
      %v741 = vmul.f32 %v667, 0.2
      %v742 = vmul.f32 %v669, 0.2
      %v743 = vmul.f32 %v671, 0.2
      %v744 = vmul.f32 %v673, 0.2
      %v745 = vmul.f32 %v677, 0.2
      %v746 = vmul.f32 %v679, 0.2
      %v747 = vmul.f32 %v681, 0.2
      %v748 = vmul.f32 %v683, 0.2
      %v749 = vmax.f32 %v527, %v685
      %v750 = vmax.f32 %v529, %v686
      %v751 = vmax.f32 %v531, %v687
      %v752 = vmax.f32 %v533, %v688
      %v753 = vmax.f32 %v537, %v689
      %v754 = vmax.f32 %v539, %v690
      %v755 = vmax.f32 %v541, %v691
      %v756 = vmax.f32 %v543, %v692
      %v757 = vmax.f32 %v547, %v693
      %v758 = vmax.f32 %v549, %v694
      %v759 = vmax.f32 %v551, %v695
      %v760 = vmax.f32 %v553, %v696
      %v761 = vmax.f32 %v557, %v697
      %v762 = vmax.f32 %v559, %v698
      %v763 = vmax.f32 %v561, %v699
      %v764 = vmax.f32 %v563, %v700
      %v765 = vmax.f32 %v567, %v701
      %v766 = vmax.f32 %v569, %v702
      %v767 = vmax.f32 %v571, %v703
      %v768 = vmax.f32 %v573, %v704
      %v769 = vmax.f32 %v577, %v705
      %v770 = vmax.f32 %v579, %v706
      %v771 = vmax.f32 %v581, %v707
      %v772 = vmax.f32 %v583, %v708
      %v773 = vmax.f32 %v587, %v709
      %v774 = vmax.f32 %v589, %v710
      %v775 = vmax.f32 %v591, %v711
      %v776 = vmax.f32 %v593, %v712
      %v777 = vmax.f32 %v597, %v713
      %v778 = vmax.f32 %v599, %v714
      %v779 = vmax.f32 %v601, %v715
      %v780 = vmax.f32 %v603, %v716
      %v781 = vmax.f32 %v607, %v717
      %v782 = vmax.f32 %v609, %v718
      %v783 = vmax.f32 %v611, %v719
      %v784 = vmax.f32 %v613, %v720
      %v785 = vmax.f32 %v617, %v721
      %v786 = vmax.f32 %v619, %v722
      %v787 = vmax.f32 %v621, %v723
      %v788 = vmax.f32 %v623, %v724
      %v789 = vmax.f32 %v627, %v725
      %v790 = vmax.f32 %v629, %v726
      %v791 = vmax.f32 %v631, %v727
      %v792 = vmax.f32 %v633, %v728
      %v793 = vmax.f32 %v637, %v729
      %v794 = vmax.f32 %v639, %v730
      %v795 = vmax.f32 %v641, %v731
      %v796 = vmax.f32 %v643, %v732
      %v797 = vmax.f32 %v647, %v733
      %v798 = vmax.f32 %v649, %v734
      %v799 = vmax.f32 %v651, %v735
      %v800 = vmax.f32 %v653, %v736
      %v801 = vmax.f32 %v657, %v737
      %v802 = vmax.f32 %v659, %v738
      %v803 = vmax.f32 %v661, %v739
      %v804 = vmax.f32 %v663, %v740
      %v805 = vmax.f32 %v667, %v741
      %v806 = vmax.f32 %v669, %v742
      %v807 = vmax.f32 %v671, %v743
      %v808 = vmax.f32 %v673, %v744
      %v809 = vmax.f32 %v677, %v745
      %v810 = vmax.f32 %v679, %v746
      %v811 = vmax.f32 %v681, %v747
      %v812 = vmax.f32 %v683, %v748
      %v813 = vpack.c.bf16 %v751, %v749
      %v814 = vpack.c.bf16 %v752, %v750
      %v815 = vpack.c.bf16 %v755, %v753
      %v816 = vpack.c.bf16 %v756, %v754
      %v817 = vpack.c.bf16 %v759, %v757
      %v818 = vpack.c.bf16 %v760, %v758
      %v819 = vpack.c.bf16 %v763, %v761
      %v820 = vpack.c.bf16 %v764, %v762
      %v821 = vpack.c.bf16 %v767, %v765
      %v822 = vpack.c.bf16 %v768, %v766
      %v823 = vpack.c.bf16 %v771, %v769
      %v824 = vpack.c.bf16 %v772, %v770
      %v825 = vpack.c.bf16 %v775, %v773
      %v826 = vpack.c.bf16 %v776, %v774
      %v827 = vpack.c.bf16 %v779, %v777
      %v828 = vpack.c.bf16 %v780, %v778
      %v829 = vpack.c.bf16 %v783, %v781
      %v830 = vpack.c.bf16 %v784, %v782
      %v831 = vpack.c.bf16 %v787, %v785
      %v832 = vpack.c.bf16 %v788, %v786
      %v833 = vpack.c.bf16 %v791, %v789
      %v834 = vpack.c.bf16 %v792, %v790
      %v835 = vpack.c.bf16 %v795, %v793
      %v836 = vpack.c.bf16 %v796, %v794
      %v837 = vpack.c.bf16 %v799, %v797
      %v838 = vpack.c.bf16 %v800, %v798
      %v839 = vpack.c.bf16 %v803, %v801
      %v840 = vpack.c.bf16 %v804, %v802
      %v841 = vpack.c.bf16 %v807, %v805
      %v842 = vpack.c.bf16 %v808, %v806
      %v843 = vpack.c.bf16 %v811, %v809
      %v844 = vpack.c.bf16 %v812, %v810
      %v845 = vld [vmem:[%s2] sm:$0xff]
      %v846 = vld [vmem:[%s2 + $0x8] sm:$0xff]
      %v847 = vld [vmem:[%s2 + $0x10] sm:$0xff]
      %v848 = vld [vmem:[%s2 + $0x18] sm:$0xff]
      %v849 = vld [vmem:[%s2 + $0x20] sm:$0xff]
      %v850 = vld [vmem:[%s2 + $0x28] sm:$0xff]
      %v851 = vld [vmem:[%s2 + $0x30] sm:$0xff]
      %v852 = vld [vmem:[%s2 + $0x38] sm:$0xff]
      %v853 = vld [vmem:[%s2 + $0x40] sm:$0xff]
      %v854 = vld [vmem:[%s2 + $0x48] sm:$0xff]
      %v855 = vld [vmem:[%s2 + $0x50] sm:$0xff]
      %v856 = vld [vmem:[%s2 + $0x58] sm:$0xff]
      %v857 = vld [vmem:[%s2 + $0x60] sm:$0xff]
      %v858 = vld [vmem:[%s2 + $0x68] sm:$0xff]
      %v859 = vld [vmem:[%s2 + $0x70] sm:$0xff]
      %v860 = vld [vmem:[%s2 + $0x78] sm:$0xff]
      %v861 = vld [vmem:[%s2 + $0x80] sm:$0xff]
      %v862 = vld [vmem:[%s2 + $0x88] sm:$0xff]
      %v863 = vld [vmem:[%s2 + $0x90] sm:$0xff]
      %v864 = vld [vmem:[%s2 + $0x98] sm:$0xff]
      %v865 = vld [vmem:[%s2 + $0xa0] sm:$0xff]
      %v866 = vld [vmem:[%s2 + $0xa8] sm:$0xff]
      %v867 = vld [vmem:[%s2 + $0xb0] sm:$0xff]
      %v868 = vld [vmem:[%s2 + $0xb8] sm:$0xff]
      %v869 = vld [vmem:[%s2 + $0xc0] sm:$0xff]
      %v870 = vld [vmem:[%s2 + $0xc8] sm:$0xff]
      %v871 = vld [vmem:[%s2 + $0xd0] sm:$0xff]
      %v872 = vld [vmem:[%s2 + $0xd8] sm:$0xff]
      %v873 = vld [vmem:[%s2 + $0xe0] sm:$0xff]
      %v874 = vld [vmem:[%s2 + $0xe8] sm:$0xff]
      %v875 = vld [vmem:[%s2 + $0xf0] sm:$0xff]
      %v876 = vld [vmem:[%s2 + $0xf8] sm:$0xff]
      %s877 = scalar_lea.vmem %s6, 1
      %v878 = vld [vmem:[%s877] ss:$8 sm:$0x3]
      %v880 = vlaneseq
      %v881 = vshrl.u32 %v880, 7
      %v882 = vsub.s32 0, %v881
      %v883 = vrot.slane %v878, %v882
      %v884 = vlaneseq
      %v885 = vshrl.u32 %v884, 7
      %v886 = vsub.s32 1, %v885
      %v887 = vrot.slane %v878, %v886
      %v922 = vunpack.c.l.b16 %v845
      %v923 = vunpack.c.h.b16 %v845
      %v924 = vunpack.c.l.b16 %v846
      %v925 = vunpack.c.h.b16 %v846
      %v926 = vunpack.c.l.b16 %v847
      %v927 = vunpack.c.h.b16 %v847
      %v928 = vunpack.c.l.b16 %v848
      %v929 = vunpack.c.h.b16 %v848
      %v930 = vunpack.c.l.b16 %v849
      %v931 = vunpack.c.h.b16 %v849
      %v932 = vunpack.c.l.b16 %v850
      %v933 = vunpack.c.h.b16 %v850
      %v934 = vunpack.c.l.b16 %v851
      %v935 = vunpack.c.h.b16 %v851
      %v936 = vunpack.c.l.b16 %v852
      %v937 = vunpack.c.h.b16 %v852
      %v938 = vunpack.c.l.b16 %v853
      %v939 = vunpack.c.h.b16 %v853
      %v940 = vunpack.c.l.b16 %v854
      %v941 = vunpack.c.h.b16 %v854
      %v942 = vunpack.c.l.b16 %v855
      %v943 = vunpack.c.h.b16 %v855
      %v944 = vunpack.c.l.b16 %v856
      %v945 = vunpack.c.h.b16 %v856
      %v946 = vunpack.c.l.b16 %v857
      %v947 = vunpack.c.h.b16 %v857
      %v948 = vunpack.c.l.b16 %v858
      %v949 = vunpack.c.h.b16 %v858
      %v950 = vunpack.c.l.b16 %v859
      %v951 = vunpack.c.h.b16 %v859
      %v952 = vunpack.c.l.b16 %v860
      %v953 = vunpack.c.h.b16 %v860
      %v954 = vunpack.c.l.b16 %v861
      %v955 = vunpack.c.h.b16 %v861
      %v956 = vunpack.c.l.b16 %v862
      %v957 = vunpack.c.h.b16 %v862
      %v958 = vunpack.c.l.b16 %v863
      %v959 = vunpack.c.h.b16 %v863
      %v960 = vunpack.c.l.b16 %v864
      %v961 = vunpack.c.h.b16 %v864
      %v962 = vunpack.c.l.b16 %v865
      %v963 = vunpack.c.h.b16 %v865
      %v964 = vunpack.c.l.b16 %v866
      %v965 = vunpack.c.h.b16 %v866
      %v966 = vunpack.c.l.b16 %v867
      %v967 = vunpack.c.h.b16 %v867
      %v968 = vunpack.c.l.b16 %v868
      %v969 = vunpack.c.h.b16 %v868
      %v970 = vunpack.c.l.b16 %v869
      %v971 = vunpack.c.h.b16 %v869
      %v972 = vunpack.c.l.b16 %v870
      %v973 = vunpack.c.h.b16 %v870
      %v974 = vunpack.c.l.b16 %v871
      %v975 = vunpack.c.h.b16 %v871
      %v976 = vunpack.c.l.b16 %v872
      %v977 = vunpack.c.h.b16 %v872
      %v978 = vunpack.c.l.b16 %v873
      %v979 = vunpack.c.h.b16 %v873
      %v980 = vunpack.c.l.b16 %v874
      %v981 = vunpack.c.h.b16 %v874
      %v982 = vunpack.c.l.b16 %v875
      %v983 = vunpack.c.h.b16 %v875
      %v984 = vunpack.c.l.b16 %v876
      %v985 = vunpack.c.h.b16 %v876
      %v986 = vpack.c.b16 %v924, %v922
      %v987 = vpack.c.b16 %v925, %v923
      %v988 = vpack.c.b16 %v928, %v926
      %v989 = vpack.c.b16 %v929, %v927
      %v990 = vpack.c.b16 %v932, %v930
      %v991 = vpack.c.b16 %v933, %v931
      %v992 = vpack.c.b16 %v936, %v934
      %v993 = vpack.c.b16 %v937, %v935
      %v994 = vpack.c.b16 %v940, %v938
      %v995 = vpack.c.b16 %v941, %v939
      %v996 = vpack.c.b16 %v944, %v942
      %v997 = vpack.c.b16 %v945, %v943
      %v998 = vpack.c.b16 %v948, %v946
      %v999 = vpack.c.b16 %v949, %v947
      %v1000 = vpack.c.b16 %v952, %v950
      %v1001 = vpack.c.b16 %v953, %v951
      %v1002 = vpack.c.b16 %v956, %v954
      %v1003 = vpack.c.b16 %v957, %v955
      %v1004 = vpack.c.b16 %v960, %v958
      %v1005 = vpack.c.b16 %v961, %v959
      %v1006 = vpack.c.b16 %v964, %v962
      %v1007 = vpack.c.b16 %v965, %v963
      %v1008 = vpack.c.b16 %v968, %v966
      %v1009 = vpack.c.b16 %v969, %v967
      %v1010 = vpack.c.b16 %v972, %v970
      %v1011 = vpack.c.b16 %v973, %v971
      %v1012 = vpack.c.b16 %v976, %v974
      %v1013 = vpack.c.b16 %v977, %v975
      %v1014 = vpack.c.b16 %v980, %v978
      %v1015 = vpack.c.b16 %v981, %v979
      %v1016 = vpack.c.b16 %v984, %v982
      %v1017 = vpack.c.b16 %v985, %v983
      %1050 = vmatprep.subr.bf16.mxu0 %v987
      %1051 = vmatpush1.bf16.msra.mxu0 %v986
      %1052 = vmatprep.subr.bf16.mxu0 %v989
      %1053 = vmatpush1.bf16.msra.mxu0 %v988
      %1054 = vmatprep.subr.bf16.mxu0 %v991
      %1055 = vmatpush1.bf16.msra.mxu0 %v990
      %1056 = vmatprep.subr.bf16.mxu0 %v993
      %1057 = vmatpush1.bf16.msra.mxu0 %v992
      %1058 = vmatprep.subr.bf16.mxu0 %v995
      %1059 = vmatpush1.bf16.msra.mxu0 %v994
      %1060 = vmatprep.subr.bf16.mxu0 %v997
      %1061 = vmatpush1.bf16.msra.mxu0 %v996
      %1062 = vmatprep.subr.bf16.mxu0 %v999
      %1063 = vmatpush1.bf16.msra.mxu0 %v998
      %1064 = vmatprep.subr.bf16.mxu0 %v1001
      %1065 = vmatpush1.bf16.msra.mxu0 %v1000
      %1066 = vmatprep.subr.bf16.mxu0 %v1003
      %1067 = vmatpush1.bf16.msra.mxu0 %v1002
      %1068 = vmatprep.subr.bf16.mxu0 %v1005
      %1069 = vmatpush1.bf16.msra.mxu0 %v1004
      %1070 = vmatprep.subr.bf16.mxu0 %v1007
      %1071 = vmatpush1.bf16.msra.mxu0 %v1006
      %1072 = vmatprep.subr.bf16.mxu0 %v1009
      %1073 = vmatpush1.bf16.msra.mxu0 %v1008
      %1074 = vmatprep.subr.bf16.mxu0 %v1011
      %1075 = vmatpush1.bf16.msra.mxu0 %v1010
      %1076 = vmatprep.subr.bf16.mxu0 %v1013
      %1077 = vmatpush1.bf16.msra.mxu0 %v1012
      %1078 = vmatprep.subr.bf16.mxu0 %v1015
      %1079 = vmatpush1.bf16.msra.mxu0 %v1014
      %1080 = vmatprep.subr.bf16.mxu0 %v1017
      %1081 = vmatpush1.bf16.msra.mxu0 %v1016
      %1082 = vmatprep.mubr.bf16.mxu0 %v814
      %1083 = vmatmul.mubr.bf16.gmra.mrb[0].mxu0 %v813
      %v1084 = vpop.f32.mrb[0].mxu0
      %v1085 = vadd.f32 %v883, %v1084
      %v1086 = vpop.f32.mrb[0].mxu0
      %v1087 = vadd.f32 %v887, %v1086
      %v1088 = vpop.f32.mrb[0].mxu0
      %v1089 = vadd.f32 %v883, %v1088
      %v1090 = vpop.f32.mrb[0].mxu0
      %v1091 = vadd.f32 %v887, %v1090
      %1092 = vmatprep.mubr.bf16.mxu0 %v816
      %1093 = vmatmul.mubr.bf16.gmra.mrb[0].mxu0 %v815
      %v1094 = vpop.f32.mrb[0].mxu0
      %v1095 = vadd.f32 %v883, %v1094
      %v1096 = vpop.f32.mrb[0].mxu0
      %v1097 = vadd.f32 %v887, %v1096
      %v1098 = vpop.f32.mrb[0].mxu0
      %v1099 = vadd.f32 %v883, %v1098
      %v1100 = vpop.f32.mrb[0].mxu0
      %v1101 = vadd.f32 %v887, %v1100
      %1102 = vmatprep.mubr.bf16.mxu0 %v818
      %1103 = vmatmul.mubr.bf16.gmra.mrb[0].mxu0 %v817
      %v1104 = vpop.f32.mrb[0].mxu0
      %v1105 = vadd.f32 %v883, %v1104
      %v1106 = vpop.f32.mrb[0].mxu0
      %v1107 = vadd.f32 %v887, %v1106
      %v1108 = vpop.f32.mrb[0].mxu0
      %v1109 = vadd.f32 %v883, %v1108
      %v1110 = vpop.f32.mrb[0].mxu0
      %v1111 = vadd.f32 %v887, %v1110
      %1112 = vmatprep.mubr.bf16.mxu0 %v820
      %1113 = vmatmul.mubr.bf16.gmra.mrb[0].mxu0 %v819
      %v1114 = vpop.f32.mrb[0].mxu0
      %v1115 = vadd.f32 %v883, %v1114
      %v1116 = vpop.f32.mrb[0].mxu0
      %v1117 = vadd.f32 %v887, %v1116
      %v1118 = vpop.f32.mrb[0].mxu0
      %v1119 = vadd.f32 %v883, %v1118
      %v1120 = vpop.f32.mrb[0].mxu0
      %v1121 = vadd.f32 %v887, %v1120
      %1122 = vmatprep.mubr.bf16.mxu0 %v822
      %1123 = vmatmul.mubr.bf16.gmra.mrb[0].mxu0 %v821
      %v1124 = vpop.f32.mrb[0].mxu0
      %v1125 = vadd.f32 %v883, %v1124
      %v1126 = vpop.f32.mrb[0].mxu0
      %v1127 = vadd.f32 %v887, %v1126
      %v1128 = vpop.f32.mrb[0].mxu0
      %v1129 = vadd.f32 %v883, %v1128
      %v1130 = vpop.f32.mrb[0].mxu0
      %v1131 = vadd.f32 %v887, %v1130
      %1132 = vmatprep.mubr.bf16.mxu0 %v824
      %1133 = vmatmul.mubr.bf16.gmra.mrb[0].mxu0 %v823
      %v1134 = vpop.f32.mrb[0].mxu0
      %v1135 = vadd.f32 %v883, %v1134
      %v1136 = vpop.f32.mrb[0].mxu0
      %v1137 = vadd.f32 %v887, %v1136
      %v1138 = vpop.f32.mrb[0].mxu0
      %v1139 = vadd.f32 %v883, %v1138
      %v1140 = vpop.f32.mrb[0].mxu0
      %v1141 = vadd.f32 %v887, %v1140
      %1142 = vmatprep.mubr.bf16.mxu0 %v826
      %1143 = vmatmul.mubr.bf16.gmra.mrb[0].mxu0 %v825
      %v1144 = vpop.f32.mrb[0].mxu0
      %v1145 = vadd.f32 %v883, %v1144
      %v1146 = vpop.f32.mrb[0].mxu0
      %v1147 = vadd.f32 %v887, %v1146
      %v1148 = vpop.f32.mrb[0].mxu0
      %v1149 = vadd.f32 %v883, %v1148
      %v1150 = vpop.f32.mrb[0].mxu0
      %v1151 = vadd.f32 %v887, %v1150
      %1152 = vmatprep.mubr.bf16.mxu0 %v828
      %1153 = vmatmul.mubr.bf16.gmra.mrb[0].mxu0 %v827
      %v1154 = vpop.f32.mrb[0].mxu0
      %v1155 = vadd.f32 %v883, %v1154
      %v1156 = vpop.f32.mrb[0].mxu0
      %v1157 = vadd.f32 %v887, %v1156
      %v1158 = vpop.f32.mrb[0].mxu0
      %v1159 = vadd.f32 %v883, %v1158
      %v1160 = vpop.f32.mrb[0].mxu0
      %v1161 = vadd.f32 %v887, %v1160
      %1162 = vmatprep.mubr.bf16.mxu0 %v830
      %1163 = vmatmul.mubr.bf16.gmra.mrb[0].mxu0 %v829
      %v1164 = vpop.f32.mrb[0].mxu0
      %v1165 = vadd.f32 %v883, %v1164
      %v1166 = vpop.f32.mrb[0].mxu0
      %v1167 = vadd.f32 %v887, %v1166
      %v1168 = vpop.f32.mrb[0].mxu0
      %v1169 = vadd.f32 %v883, %v1168
      %v1170 = vpop.f32.mrb[0].mxu0
      %v1171 = vadd.f32 %v887, %v1170
      %1172 = vmatprep.mubr.bf16.mxu0 %v832
      %1173 = vmatmul.mubr.bf16.gmra.mrb[0].mxu0 %v831
      %v1174 = vpop.f32.mrb[0].mxu0
      %v1175 = vadd.f32 %v883, %v1174
      %v1176 = vpop.f32.mrb[0].mxu0
      %v1177 = vadd.f32 %v887, %v1176
      %v1178 = vpop.f32.mrb[0].mxu0
      %v1179 = vadd.f32 %v883, %v1178
      %v1180 = vpop.f32.mrb[0].mxu0
      %v1181 = vadd.f32 %v887, %v1180
      %1182 = vmatprep.mubr.bf16.mxu0 %v834
      %1183 = vmatmul.mubr.bf16.gmra.mrb[0].mxu0 %v833
      %v1184 = vpop.f32.mrb[0].mxu0
      %v1185 = vadd.f32 %v883, %v1184
      %v1186 = vpop.f32.mrb[0].mxu0
      %v1187 = vadd.f32 %v887, %v1186
      %v1188 = vpop.f32.mrb[0].mxu0
      %v1189 = vadd.f32 %v883, %v1188
      %v1190 = vpop.f32.mrb[0].mxu0
      %v1191 = vadd.f32 %v887, %v1190
      %1192 = vmatprep.mubr.bf16.mxu0 %v836
      %1193 = vmatmul.mubr.bf16.gmra.mrb[0].mxu0 %v835
      %v1194 = vpop.f32.mrb[0].mxu0
      %v1195 = vadd.f32 %v883, %v1194
      %v1196 = vpop.f32.mrb[0].mxu0
      %v1197 = vadd.f32 %v887, %v1196
      %v1198 = vpop.f32.mrb[0].mxu0
      %v1199 = vadd.f32 %v883, %v1198
      %v1200 = vpop.f32.mrb[0].mxu0
      %v1201 = vadd.f32 %v887, %v1200
      %1202 = vmatprep.mubr.bf16.mxu0 %v838
      %1203 = vmatmul.mubr.bf16.gmra.mrb[0].mxu0 %v837
      %v1204 = vpop.f32.mrb[0].mxu0
      %v1205 = vadd.f32 %v883, %v1204
      %v1206 = vpop.f32.mrb[0].mxu0
      %v1207 = vadd.f32 %v887, %v1206
      %v1208 = vpop.f32.mrb[0].mxu0
      %v1209 = vadd.f32 %v883, %v1208
      %v1210 = vpop.f32.mrb[0].mxu0
      %v1211 = vadd.f32 %v887, %v1210
      %1212 = vmatprep.mubr.bf16.mxu0 %v840
      %1213 = vmatmul.mubr.bf16.gmra.mrb[0].mxu0 %v839
      %v1214 = vpop.f32.mrb[0].mxu0
      %v1215 = vadd.f32 %v883, %v1214
      %v1216 = vpop.f32.mrb[0].mxu0
      %v1217 = vadd.f32 %v887, %v1216
      %v1218 = vpop.f32.mrb[0].mxu0
      %v1219 = vadd.f32 %v883, %v1218
      %v1220 = vpop.f32.mrb[0].mxu0
      %v1221 = vadd.f32 %v887, %v1220
      %1222 = vmatprep.mubr.bf16.mxu0 %v842
      %1223 = vmatmul.mubr.bf16.gmra.mrb[0].mxu0 %v841
      %v1224 = vpop.f32.mrb[0].mxu0
      %v1225 = vadd.f32 %v883, %v1224
      %v1226 = vpop.f32.mrb[0].mxu0
      %v1227 = vadd.f32 %v887, %v1226
      %v1228 = vpop.f32.mrb[0].mxu0
      %v1229 = vadd.f32 %v883, %v1228
      %v1230 = vpop.f32.mrb[0].mxu0
      %v1231 = vadd.f32 %v887, %v1230
      %1232 = vmatprep.mubr.bf16.mxu0 %v844
      %1233 = vmatmul.mubr.bf16.gmra.mrb[0].mxu0 %v843
      %v1234 = vpop.f32.mrb[0].mxu0
      %v1235 = vadd.f32 %v883, %v1234
      %v1236 = vpop.f32.mrb[0].mxu0
      %v1237 = vadd.f32 %v887, %v1236
      %v1238 = vpop.f32.mrb[0].mxu0
      %v1239 = vadd.f32 %v883, %v1238
      %v1240 = vpop.f32.mrb[0].mxu0
      %v1241 = vadd.f32 %v887, %v1240
      %1242 = vdwg.mxu0
      %v1243 = vmul.f32 %v1085, 0.2
      %v1244 = vmul.f32 %v1087, 0.2
      %v1245 = vmul.f32 %v1089, 0.2
      %v1246 = vmul.f32 %v1091, 0.2
      %v1247 = vmul.f32 %v1095, 0.2
      %v1248 = vmul.f32 %v1097, 0.2
      %v1249 = vmul.f32 %v1099, 0.2
      %v1250 = vmul.f32 %v1101, 0.2
      %v1251 = vmul.f32 %v1105, 0.2
      %v1252 = vmul.f32 %v1107, 0.2
      %v1253 = vmul.f32 %v1109, 0.2
      %v1254 = vmul.f32 %v1111, 0.2
      %v1255 = vmul.f32 %v1115, 0.2
      %v1256 = vmul.f32 %v1117, 0.2
      %v1257 = vmul.f32 %v1119, 0.2
      %v1258 = vmul.f32 %v1121, 0.2
      %v1259 = vmul.f32 %v1125, 0.2
      %v1260 = vmul.f32 %v1127, 0.2
      %v1261 = vmul.f32 %v1129, 0.2
      %v1262 = vmul.f32 %v1131, 0.2
      %v1263 = vmul.f32 %v1135, 0.2
      %v1264 = vmul.f32 %v1137, 0.2
      %v1265 = vmul.f32 %v1139, 0.2
      %v1266 = vmul.f32 %v1141, 0.2
      %v1267 = vmul.f32 %v1145, 0.2
      %v1268 = vmul.f32 %v1147, 0.2
      %v1269 = vmul.f32 %v1149, 0.2
      %v1270 = vmul.f32 %v1151, 0.2
      %v1271 = vmul.f32 %v1155, 0.2
      %v1272 = vmul.f32 %v1157, 0.2
      %v1273 = vmul.f32 %v1159, 0.2
      %v1274 = vmul.f32 %v1161, 0.2
      %v1275 = vmul.f32 %v1165, 0.2
      %v1276 = vmul.f32 %v1167, 0.2
      %v1277 = vmul.f32 %v1169, 0.2
      %v1278 = vmul.f32 %v1171, 0.2
      %v1279 = vmul.f32 %v1175, 0.2
      %v1280 = vmul.f32 %v1177, 0.2
      %v1281 = vmul.f32 %v1179, 0.2
      %v1282 = vmul.f32 %v1181, 0.2
      %v1283 = vmul.f32 %v1185, 0.2
      %v1284 = vmul.f32 %v1187, 0.2
      %v1285 = vmul.f32 %v1189, 0.2
      %v1286 = vmul.f32 %v1191, 0.2
      %v1287 = vmul.f32 %v1195, 0.2
      %v1288 = vmul.f32 %v1197, 0.2
      %v1289 = vmul.f32 %v1199, 0.2
      %v1290 = vmul.f32 %v1201, 0.2
      %v1291 = vmul.f32 %v1205, 0.2
      %v1292 = vmul.f32 %v1207, 0.2
      %v1293 = vmul.f32 %v1209, 0.2
      %v1294 = vmul.f32 %v1211, 0.2
      %v1295 = vmul.f32 %v1215, 0.2
      %v1296 = vmul.f32 %v1217, 0.2
      %v1297 = vmul.f32 %v1219, 0.2
      %v1298 = vmul.f32 %v1221, 0.2
      %v1299 = vmul.f32 %v1225, 0.2
      %v1300 = vmul.f32 %v1227, 0.2
      %v1301 = vmul.f32 %v1229, 0.2
      %v1302 = vmul.f32 %v1231, 0.2
      %v1303 = vmul.f32 %v1235, 0.2
      %v1304 = vmul.f32 %v1237, 0.2
      %v1305 = vmul.f32 %v1239, 0.2
      %v1306 = vmul.f32 %v1241, 0.2
      %v1307 = vmax.f32 %v1085, %v1243
      %v1308 = vmax.f32 %v1087, %v1244
      %v1309 = vmax.f32 %v1089, %v1245
      %v1310 = vmax.f32 %v1091, %v1246
      %v1311 = vmax.f32 %v1095, %v1247
      %v1312 = vmax.f32 %v1097, %v1248
      %v1313 = vmax.f32 %v1099, %v1249
      %v1314 = vmax.f32 %v1101, %v1250
      %v1315 = vmax.f32 %v1105, %v1251
      %v1316 = vmax.f32 %v1107, %v1252
      %v1317 = vmax.f32 %v1109, %v1253
      %v1318 = vmax.f32 %v1111, %v1254
      %v1319 = vmax.f32 %v1115, %v1255
      %v1320 = vmax.f32 %v1117, %v1256
      %v1321 = vmax.f32 %v1119, %v1257
      %v1322 = vmax.f32 %v1121, %v1258
      %v1323 = vmax.f32 %v1125, %v1259
      %v1324 = vmax.f32 %v1127, %v1260
      %v1325 = vmax.f32 %v1129, %v1261
      %v1326 = vmax.f32 %v1131, %v1262
      %v1327 = vmax.f32 %v1135, %v1263
      %v1328 = vmax.f32 %v1137, %v1264
      %v1329 = vmax.f32 %v1139, %v1265
      %v1330 = vmax.f32 %v1141, %v1266
      %v1331 = vmax.f32 %v1145, %v1267
      %v1332 = vmax.f32 %v1147, %v1268
      %v1333 = vmax.f32 %v1149, %v1269
      %v1334 = vmax.f32 %v1151, %v1270
      %v1335 = vmax.f32 %v1155, %v1271
      %v1336 = vmax.f32 %v1157, %v1272
      %v1337 = vmax.f32 %v1159, %v1273
      %v1338 = vmax.f32 %v1161, %v1274
      %v1339 = vmax.f32 %v1165, %v1275
      %v1340 = vmax.f32 %v1167, %v1276
      %v1341 = vmax.f32 %v1169, %v1277
      %v1342 = vmax.f32 %v1171, %v1278
      %v1343 = vmax.f32 %v1175, %v1279
      %v1344 = vmax.f32 %v1177, %v1280
      %v1345 = vmax.f32 %v1179, %v1281
      %v1346 = vmax.f32 %v1181, %v1282
      %v1347 = vmax.f32 %v1185, %v1283
      %v1348 = vmax.f32 %v1187, %v1284
      %v1349 = vmax.f32 %v1189, %v1285
      %v1350 = vmax.f32 %v1191, %v1286
      %v1351 = vmax.f32 %v1195, %v1287
      %v1352 = vmax.f32 %v1197, %v1288
      %v1353 = vmax.f32 %v1199, %v1289
      %v1354 = vmax.f32 %v1201, %v1290
      %v1355 = vmax.f32 %v1205, %v1291
      %v1356 = vmax.f32 %v1207, %v1292
      %v1357 = vmax.f32 %v1209, %v1293
      %v1358 = vmax.f32 %v1211, %v1294
      %v1359 = vmax.f32 %v1215, %v1295
      %v1360 = vmax.f32 %v1217, %v1296
      %v1361 = vmax.f32 %v1219, %v1297
      %v1362 = vmax.f32 %v1221, %v1298
      %v1363 = vmax.f32 %v1225, %v1299
      %v1364 = vmax.f32 %v1227, %v1300
      %v1365 = vmax.f32 %v1229, %v1301
      %v1366 = vmax.f32 %v1231, %v1302
      %v1367 = vmax.f32 %v1235, %v1303
      %v1368 = vmax.f32 %v1237, %v1304
      %v1369 = vmax.f32 %v1239, %v1305
      %v1370 = vmax.f32 %v1241, %v1306
      %v1371 = vpack.c.bf16 %v1309, %v1307
      %v1372 = vpack.c.bf16 %v1310, %v1308
      %v1373 = vpack.c.bf16 %v1313, %v1311
      %v1374 = vpack.c.bf16 %v1314, %v1312
      %v1375 = vpack.c.bf16 %v1317, %v1315
      %v1376 = vpack.c.bf16 %v1318, %v1316
      %v1377 = vpack.c.bf16 %v1321, %v1319
      %v1378 = vpack.c.bf16 %v1322, %v1320
      %v1379 = vpack.c.bf16 %v1325, %v1323
      %v1380 = vpack.c.bf16 %v1326, %v1324
      %v1381 = vpack.c.bf16 %v1329, %v1327
      %v1382 = vpack.c.bf16 %v1330, %v1328
      %v1383 = vpack.c.bf16 %v1333, %v1331
      %v1384 = vpack.c.bf16 %v1334, %v1332
      %v1385 = vpack.c.bf16 %v1337, %v1335
      %v1386 = vpack.c.bf16 %v1338, %v1336
      %v1387 = vpack.c.bf16 %v1341, %v1339
      %v1388 = vpack.c.bf16 %v1342, %v1340
      %v1389 = vpack.c.bf16 %v1345, %v1343
      %v1390 = vpack.c.bf16 %v1346, %v1344
      %v1391 = vpack.c.bf16 %v1349, %v1347
      %v1392 = vpack.c.bf16 %v1350, %v1348
      %v1393 = vpack.c.bf16 %v1353, %v1351
      %v1394 = vpack.c.bf16 %v1354, %v1352
      %v1395 = vpack.c.bf16 %v1357, %v1355
      %v1396 = vpack.c.bf16 %v1358, %v1356
      %v1397 = vpack.c.bf16 %v1361, %v1359
      %v1398 = vpack.c.bf16 %v1362, %v1360
      %v1399 = vpack.c.bf16 %v1365, %v1363
      %v1400 = vpack.c.bf16 %v1366, %v1364
      %v1401 = vpack.c.bf16 %v1369, %v1367
      %v1402 = vpack.c.bf16 %v1370, %v1368
      %v1403 = vld [vmem:[%s3] sm:$0xff]
      %v1404 = vld [vmem:[%s3 + $0x8] sm:$0xff]
      %v1405 = vld [vmem:[%s3 + $0x10] sm:$0xff]
      %v1406 = vld [vmem:[%s3 + $0x18] sm:$0xff]
      %v1407 = vld [vmem:[%s3 + $0x20] sm:$0xff]
      %v1408 = vld [vmem:[%s3 + $0x28] sm:$0xff]
      %v1409 = vld [vmem:[%s3 + $0x30] sm:$0xff]
      %v1410 = vld [vmem:[%s3 + $0x38] sm:$0xff]
      %v1411 = vld [vmem:[%s3 + $0x40] sm:$0xff]
      %v1412 = vld [vmem:[%s3 + $0x48] sm:$0xff]
      %v1413 = vld [vmem:[%s3 + $0x50] sm:$0xff]
      %v1414 = vld [vmem:[%s3 + $0x58] sm:$0xff]
      %v1415 = vld [vmem:[%s3 + $0x60] sm:$0xff]
      %v1416 = vld [vmem:[%s3 + $0x68] sm:$0xff]
      %v1417 = vld [vmem:[%s3 + $0x70] sm:$0xff]
      %v1418 = vld [vmem:[%s3 + $0x78] sm:$0xff]
      %v1419 = vld [vmem:[%s3 + $0x80] sm:$0xff]
      %v1420 = vld [vmem:[%s3 + $0x88] sm:$0xff]
      %v1421 = vld [vmem:[%s3 + $0x90] sm:$0xff]
      %v1422 = vld [vmem:[%s3 + $0x98] sm:$0xff]
      %v1423 = vld [vmem:[%s3 + $0xa0] sm:$0xff]
      %v1424 = vld [vmem:[%s3 + $0xa8] sm:$0xff]
      %v1425 = vld [vmem:[%s3 + $0xb0] sm:$0xff]
      %v1426 = vld [vmem:[%s3 + $0xb8] sm:$0xff]
      %v1427 = vld [vmem:[%s3 + $0xc0] sm:$0xff]
      %v1428 = vld [vmem:[%s3 + $0xc8] sm:$0xff]
      %v1429 = vld [vmem:[%s3 + $0xd0] sm:$0xff]
      %v1430 = vld [vmem:[%s3 + $0xd8] sm:$0xff]
      %v1431 = vld [vmem:[%s3 + $0xe0] sm:$0xff]
      %v1432 = vld [vmem:[%s3 + $0xe8] sm:$0xff]
      %v1433 = vld [vmem:[%s3 + $0xf0] sm:$0xff]
      %v1434 = vld [vmem:[%s3 + $0xf8] sm:$0xff]
      %v1435 = vld [vmem:[%s3 + $0x100] sm:$0xff]
      %v1436 = vld [vmem:[%s3 + $0x108] sm:$0xff]
      %v1437 = vld [vmem:[%s3 + $0x110] sm:$0xff]
      %v1438 = vld [vmem:[%s3 + $0x118] sm:$0xff]
      %v1439 = vld [vmem:[%s3 + $0x120] sm:$0xff]
      %v1440 = vld [vmem:[%s3 + $0x128] sm:$0xff]
      %v1441 = vld [vmem:[%s3 + $0x130] sm:$0xff]
      %v1442 = vld [vmem:[%s3 + $0x138] sm:$0xff]
      %v1443 = vld [vmem:[%s3 + $0x140] sm:$0xff]
      %v1444 = vld [vmem:[%s3 + $0x148] sm:$0xff]
      %v1445 = vld [vmem:[%s3 + $0x150] sm:$0xff]
      %v1446 = vld [vmem:[%s3 + $0x158] sm:$0xff]
      %v1447 = vld [vmem:[%s3 + $0x160] sm:$0xff]
      %v1448 = vld [vmem:[%s3 + $0x168] sm:$0xff]
      %v1449 = vld [vmem:[%s3 + $0x170] sm:$0xff]
      %v1450 = vld [vmem:[%s3 + $0x178] sm:$0xff]
      %v1451 = vld [vmem:[%s3 + $0x180] sm:$0xff]
      %v1452 = vld [vmem:[%s3 + $0x188] sm:$0xff]
      %v1453 = vld [vmem:[%s3 + $0x190] sm:$0xff]
      %v1454 = vld [vmem:[%s3 + $0x198] sm:$0xff]
      %v1455 = vld [vmem:[%s3 + $0x1a0] sm:$0xff]
      %v1456 = vld [vmem:[%s3 + $0x1a8] sm:$0xff]
      %v1457 = vld [vmem:[%s3 + $0x1b0] sm:$0xff]
      %v1458 = vld [vmem:[%s3 + $0x1b8] sm:$0xff]
      %v1459 = vld [vmem:[%s3 + $0x1c0] sm:$0xff]
      %v1460 = vld [vmem:[%s3 + $0x1c8] sm:$0xff]
      %v1461 = vld [vmem:[%s3 + $0x1d0] sm:$0xff]
      %v1462 = vld [vmem:[%s3 + $0x1d8] sm:$0xff]
      %v1463 = vld [vmem:[%s3 + $0x1e0] sm:$0xff]
      %v1464 = vld [vmem:[%s3 + $0x1e8] sm:$0xff]
      %v1465 = vld [vmem:[%s3 + $0x1f0] sm:$0xff]
      %v1466 = vld [vmem:[%s3 + $0x1f8] sm:$0xff]
      %s1467 = scalar_lea.vmem %s6, 2
      %v1468 = vld [vmem:[%s1467] ss:$8 sm:$0xf]
      %v1470 = vlaneseq
      %v1471 = vshrl.u32 %v1470, 7
      %v1472 = vsub.s32 0, %v1471
      %v1473 = vrot.slane %v1468, %v1472
      %v1474 = vlaneseq
      %v1475 = vshrl.u32 %v1474, 7
      %v1476 = vsub.s32 1, %v1475
      %v1477 = vrot.slane %v1468, %v1476
      %v1478 = vlaneseq
      %v1479 = vshrl.u32 %v1478, 7
      %v1480 = vsub.s32 2, %v1479
      %v1481 = vrot.slane %v1468, %v1480
      %v1482 = vlaneseq
      %v1483 = vshrl.u32 %v1482, 7
      %v1484 = vsub.s32 3, %v1483
      %v1485 = vrot.slane %v1468, %v1484
      %v1554 = vunpack.c.l.b16 %v1403
      %v1555 = vunpack.c.h.b16 %v1403
      %v1556 = vunpack.c.l.b16 %v1404
      %v1557 = vunpack.c.h.b16 %v1404
      %v1558 = vunpack.c.l.b16 %v1405
      %v1559 = vunpack.c.h.b16 %v1405
      %v1560 = vunpack.c.l.b16 %v1406
      %v1561 = vunpack.c.h.b16 %v1406
      %v1562 = vunpack.c.l.b16 %v1407
      %v1563 = vunpack.c.h.b16 %v1407
      %v1564 = vunpack.c.l.b16 %v1408
      %v1565 = vunpack.c.h.b16 %v1408
      %v1566 = vunpack.c.l.b16 %v1409
      %v1567 = vunpack.c.h.b16 %v1409
      %v1568 = vunpack.c.l.b16 %v1410
      %v1569 = vunpack.c.h.b16 %v1410
      %v1570 = vunpack.c.l.b16 %v1411
      %v1571 = vunpack.c.h.b16 %v1411
      %v1572 = vunpack.c.l.b16 %v1412
      %v1573 = vunpack.c.h.b16 %v1412
      %v1574 = vunpack.c.l.b16 %v1413
      %v1575 = vunpack.c.h.b16 %v1413
      %v1576 = vunpack.c.l.b16 %v1414
      %v1577 = vunpack.c.h.b16 %v1414
      %v1578 = vunpack.c.l.b16 %v1415
      %v1579 = vunpack.c.h.b16 %v1415
      %v1580 = vunpack.c.l.b16 %v1416
      %v1581 = vunpack.c.h.b16 %v1416
      %v1582 = vunpack.c.l.b16 %v1417
      %v1583 = vunpack.c.h.b16 %v1417
      %v1584 = vunpack.c.l.b16 %v1418
      %v1585 = vunpack.c.h.b16 %v1418
      %v1586 = vunpack.c.l.b16 %v1419
      %v1587 = vunpack.c.h.b16 %v1419
      %v1588 = vunpack.c.l.b16 %v1420
      %v1589 = vunpack.c.h.b16 %v1420
      %v1590 = vunpack.c.l.b16 %v1421
      %v1591 = vunpack.c.h.b16 %v1421
      %v1592 = vunpack.c.l.b16 %v1422
      %v1593 = vunpack.c.h.b16 %v1422
      %v1594 = vunpack.c.l.b16 %v1423
      %v1595 = vunpack.c.h.b16 %v1423
      %v1596 = vunpack.c.l.b16 %v1424
      %v1597 = vunpack.c.h.b16 %v1424
      %v1598 = vunpack.c.l.b16 %v1425
      %v1599 = vunpack.c.h.b16 %v1425
      %v1600 = vunpack.c.l.b16 %v1426
      %v1601 = vunpack.c.h.b16 %v1426
      %v1602 = vunpack.c.l.b16 %v1427
      %v1603 = vunpack.c.h.b16 %v1427
      %v1604 = vunpack.c.l.b16 %v1428
      %v1605 = vunpack.c.h.b16 %v1428
      %v1606 = vunpack.c.l.b16 %v1429
      %v1607 = vunpack.c.h.b16 %v1429
      %v1608 = vunpack.c.l.b16 %v1430
      %v1609 = vunpack.c.h.b16 %v1430
      %v1610 = vunpack.c.l.b16 %v1431
      %v1611 = vunpack.c.h.b16 %v1431
      %v1612 = vunpack.c.l.b16 %v1432
      %v1613 = vunpack.c.h.b16 %v1432
      %v1614 = vunpack.c.l.b16 %v1433
      %v1615 = vunpack.c.h.b16 %v1433
      %v1616 = vunpack.c.l.b16 %v1434
      %v1617 = vunpack.c.h.b16 %v1434
      %v1618 = vunpack.c.l.b16 %v1435
      %v1619 = vunpack.c.h.b16 %v1435
      %v1620 = vunpack.c.l.b16 %v1436
      %v1621 = vunpack.c.h.b16 %v1436
      %v1622 = vunpack.c.l.b16 %v1437
      %v1623 = vunpack.c.h.b16 %v1437
      %v1624 = vunpack.c.l.b16 %v1438
      %v1625 = vunpack.c.h.b16 %v1438
      %v1626 = vunpack.c.l.b16 %v1439
      %v1627 = vunpack.c.h.b16 %v1439
      %v1628 = vunpack.c.l.b16 %v1440
      %v1629 = vunpack.c.h.b16 %v1440
      %v1630 = vunpack.c.l.b16 %v1441
      %v1631 = vunpack.c.h.b16 %v1441
      %v1632 = vunpack.c.l.b16 %v1442
      %v1633 = vunpack.c.h.b16 %v1442
      %v1634 = vunpack.c.l.b16 %v1443
      %v1635 = vunpack.c.h.b16 %v1443
      %v1636 = vunpack.c.l.b16 %v1444
      %v1637 = vunpack.c.h.b16 %v1444
      %v1638 = vunpack.c.l.b16 %v1445
      %v1639 = vunpack.c.h.b16 %v1445
      %v1640 = vunpack.c.l.b16 %v1446
      %v1641 = vunpack.c.h.b16 %v1446
      %v1642 = vunpack.c.l.b16 %v1447
      %v1643 = vunpack.c.h.b16 %v1447
      %v1644 = vunpack.c.l.b16 %v1448
      %v1645 = vunpack.c.h.b16 %v1448
      %v1646 = vunpack.c.l.b16 %v1449
      %v1647 = vunpack.c.h.b16 %v1449
      %v1648 = vunpack.c.l.b16 %v1450
      %v1649 = vunpack.c.h.b16 %v1450
      %v1650 = vunpack.c.l.b16 %v1451
      %v1651 = vunpack.c.h.b16 %v1451
      %v1652 = vunpack.c.l.b16 %v1452
      %v1653 = vunpack.c.h.b16 %v1452
      %v1654 = vunpack.c.l.b16 %v1453
      %v1655 = vunpack.c.h.b16 %v1453
      %v1656 = vunpack.c.l.b16 %v1454
      %v1657 = vunpack.c.h.b16 %v1454
      %v1658 = vunpack.c.l.b16 %v1455
      %v1659 = vunpack.c.h.b16 %v1455
      %v1660 = vunpack.c.l.b16 %v1456
      %v1661 = vunpack.c.h.b16 %v1456
      %v1662 = vunpack.c.l.b16 %v1457
      %v1663 = vunpack.c.h.b16 %v1457
      %v1664 = vunpack.c.l.b16 %v1458
      %v1665 = vunpack.c.h.b16 %v1458
      %v1666 = vunpack.c.l.b16 %v1459
      %v1667 = vunpack.c.h.b16 %v1459
      %v1668 = vunpack.c.l.b16 %v1460
      %v1669 = vunpack.c.h.b16 %v1460
      %v1670 = vunpack.c.l.b16 %v1461
      %v1671 = vunpack.c.h.b16 %v1461
      %v1672 = vunpack.c.l.b16 %v1462
      %v1673 = vunpack.c.h.b16 %v1462
      %v1674 = vunpack.c.l.b16 %v1463
      %v1675 = vunpack.c.h.b16 %v1463
      %v1676 = vunpack.c.l.b16 %v1464
      %v1677 = vunpack.c.h.b16 %v1464
      %v1678 = vunpack.c.l.b16 %v1465
      %v1679 = vunpack.c.h.b16 %v1465
      %v1680 = vunpack.c.l.b16 %v1466
      %v1681 = vunpack.c.h.b16 %v1466
      %v1682 = vpack.c.b16 %v1558, %v1554
      %v1683 = vpack.c.b16 %v1559, %v1555
      %v1684 = vpack.c.b16 %v1560, %v1556
      %v1685 = vpack.c.b16 %v1561, %v1557
      %v1686 = vpack.c.b16 %v1566, %v1562
      %v1687 = vpack.c.b16 %v1567, %v1563
      %v1688 = vpack.c.b16 %v1568, %v1564
      %v1689 = vpack.c.b16 %v1569, %v1565
      %v1690 = vpack.c.b16 %v1574, %v1570
      %v1691 = vpack.c.b16 %v1575, %v1571
      %v1692 = vpack.c.b16 %v1576, %v1572
      %v1693 = vpack.c.b16 %v1577, %v1573
      %v1694 = vpack.c.b16 %v1582, %v1578
      %v1695 = vpack.c.b16 %v1583, %v1579
      %v1696 = vpack.c.b16 %v1584, %v1580
      %v1697 = vpack.c.b16 %v1585, %v1581
      %v1698 = vpack.c.b16 %v1590, %v1586
      %v1699 = vpack.c.b16 %v1591, %v1587
      %v1700 = vpack.c.b16 %v1592, %v1588
      %v1701 = vpack.c.b16 %v1593, %v1589
      %v1702 = vpack.c.b16 %v1598, %v1594
      %v1703 = vpack.c.b16 %v1599, %v1595
      %v1704 = vpack.c.b16 %v1600, %v1596
      %v1705 = vpack.c.b16 %v1601, %v1597
      %v1706 = vpack.c.b16 %v1606, %v1602
      %v1707 = vpack.c.b16 %v1607, %v1603
      %v1708 = vpack.c.b16 %v1608, %v1604
      %v1709 = vpack.c.b16 %v1609, %v1605
      %v1710 = vpack.c.b16 %v1614, %v1610
      %v1711 = vpack.c.b16 %v1615, %v1611
      %v1712 = vpack.c.b16 %v1616, %v1612
      %v1713 = vpack.c.b16 %v1617, %v1613
      %v1714 = vpack.c.b16 %v1622, %v1618
      %v1715 = vpack.c.b16 %v1623, %v1619
      %v1716 = vpack.c.b16 %v1624, %v1620
      %v1717 = vpack.c.b16 %v1625, %v1621
      %v1718 = vpack.c.b16 %v1630, %v1626
      %v1719 = vpack.c.b16 %v1631, %v1627
      %v1720 = vpack.c.b16 %v1632, %v1628
      %v1721 = vpack.c.b16 %v1633, %v1629
      %v1722 = vpack.c.b16 %v1638, %v1634
      %v1723 = vpack.c.b16 %v1639, %v1635
      %v1724 = vpack.c.b16 %v1640, %v1636
      %v1725 = vpack.c.b16 %v1641, %v1637
      %v1726 = vpack.c.b16 %v1646, %v1642
      %v1727 = vpack.c.b16 %v1647, %v1643
      %v1728 = vpack.c.b16 %v1648, %v1644
      %v1729 = vpack.c.b16 %v1649, %v1645
      %v1730 = vpack.c.b16 %v1654, %v1650
      %v1731 = vpack.c.b16 %v1655, %v1651
      %v1732 = vpack.c.b16 %v1656, %v1652
      %v1733 = vpack.c.b16 %v1657, %v1653
      %v1734 = vpack.c.b16 %v1662, %v1658
      %v1735 = vpack.c.b16 %v1663, %v1659
      %v1736 = vpack.c.b16 %v1664, %v1660
      %v1737 = vpack.c.b16 %v1665, %v1661
      %v1738 = vpack.c.b16 %v1670, %v1666
      %v1739 = vpack.c.b16 %v1671, %v1667
      %v1740 = vpack.c.b16 %v1672, %v1668
      %v1741 = vpack.c.b16 %v1673, %v1669
      %v1742 = vpack.c.b16 %v1678, %v1674
      %v1743 = vpack.c.b16 %v1679, %v1675
      %v1744 = vpack.c.b16 %v1680, %v1676
      %v1745 = vpack.c.b16 %v1681, %v1677
      %1810 = vmatprep.subr.bf16.mxu0 %v1683
      %1811 = vmatpush1.bf16.msra.mxu0 %v1682
      %1812 = vmatprep.subr.bf16.mxu0 %v1687
      %1813 = vmatpush1.bf16.msra.mxu0 %v1686
      %1814 = vmatprep.subr.bf16.mxu0 %v1691
      %1815 = vmatpush1.bf16.msra.mxu0 %v1690
      %1816 = vmatprep.subr.bf16.mxu0 %v1695
      %1817 = vmatpush1.bf16.msra.mxu0 %v1694
      %1818 = vmatprep.subr.bf16.mxu0 %v1699
      %1819 = vmatpush1.bf16.msra.mxu0 %v1698
      %1820 = vmatprep.subr.bf16.mxu0 %v1703
      %1821 = vmatpush1.bf16.msra.mxu0 %v1702
      %1822 = vmatprep.subr.bf16.mxu0 %v1707
      %1823 = vmatpush1.bf16.msra.mxu0 %v1706
      %1824 = vmatprep.subr.bf16.mxu0 %v1711
      %1825 = vmatpush1.bf16.msra.mxu0 %v1710
      %1826 = vmatprep.subr.bf16.mxu0 %v1715
      %1827 = vmatpush1.bf16.msra.mxu0 %v1714
      %1828 = vmatprep.subr.bf16.mxu0 %v1719
      %1829 = vmatpush1.bf16.msra.mxu0 %v1718
      %1830 = vmatprep.subr.bf16.mxu0 %v1723
      %1831 = vmatpush1.bf16.msra.mxu0 %v1722
      %1832 = vmatprep.subr.bf16.mxu0 %v1727
      %1833 = vmatpush1.bf16.msra.mxu0 %v1726
      %1834 = vmatprep.subr.bf16.mxu0 %v1731
      %1835 = vmatpush1.bf16.msra.mxu0 %v1730
      %1836 = vmatprep.subr.bf16.mxu0 %v1735
      %1837 = vmatpush1.bf16.msra.mxu0 %v1734
      %1838 = vmatprep.subr.bf16.mxu0 %v1739
      %1839 = vmatpush1.bf16.msra.mxu0 %v1738
      %1840 = vmatprep.subr.bf16.mxu0 %v1743
      %1841 = vmatpush1.bf16.msra.mxu0 %v1742
      %1842 = vmatprep.mubr.bf16.mxu0 %v1372
      %1843 = vmatmul.mubr.bf16.gmra.mrb[0].mxu0 %v1371
      %v1844 = vpop.f32.mrb[0].mxu0
      %v1845 = vadd.f32 %v1473, %v1844
      %v1846 = vpop.f32.mrb[0].mxu0
      %v1847 = vadd.f32 %v1477, %v1846
      %v1848 = vpop.f32.mrb[0].mxu0
      %v1849 = vadd.f32 %v1473, %v1848
      %v1850 = vpop.f32.mrb[0].mxu0
      %v1851 = vadd.f32 %v1477, %v1850
      %1852 = vmatprep.mubr.bf16.mxu0 %v1374
      %1853 = vmatmul.mubr.bf16.gmra.mrb[0].mxu0 %v1373
      %v1854 = vpop.f32.mrb[0].mxu0
      %v1855 = vadd.f32 %v1473, %v1854
      %v1856 = vpop.f32.mrb[0].mxu0
      %v1857 = vadd.f32 %v1477, %v1856
      %v1858 = vpop.f32.mrb[0].mxu0
      %v1859 = vadd.f32 %v1473, %v1858
      %v1860 = vpop.f32.mrb[0].mxu0
      %v1861 = vadd.f32 %v1477, %v1860
      %1862 = vmatprep.mubr.bf16.mxu0 %v1376
      %1863 = vmatmul.mubr.bf16.gmra.mrb[0].mxu0 %v1375
      %v1864 = vpop.f32.mrb[0].mxu0
      %v1865 = vadd.f32 %v1473, %v1864
      %v1866 = vpop.f32.mrb[0].mxu0
      %v1867 = vadd.f32 %v1477, %v1866
      %v1868 = vpop.f32.mrb[0].mxu0
      %v1869 = vadd.f32 %v1473, %v1868
      %v1870 = vpop.f32.mrb[0].mxu0
      %v1871 = vadd.f32 %v1477, %v1870
      %1872 = vmatprep.mubr.bf16.mxu0 %v1378
      %1873 = vmatmul.mubr.bf16.gmra.mrb[0].mxu0 %v1377
      %v1874 = vpop.f32.mrb[0].mxu0
      %v1875 = vadd.f32 %v1473, %v1874
      %v1876 = vpop.f32.mrb[0].mxu0
      %v1877 = vadd.f32 %v1477, %v1876
      %v1878 = vpop.f32.mrb[0].mxu0
      %v1879 = vadd.f32 %v1473, %v1878
      %v1880 = vpop.f32.mrb[0].mxu0
      %v1881 = vadd.f32 %v1477, %v1880
      %1882 = vmatprep.mubr.bf16.mxu0 %v1380
      %1883 = vmatmul.mubr.bf16.gmra.mrb[0].mxu0 %v1379
      %v1884 = vpop.f32.mrb[0].mxu0
      %v1885 = vadd.f32 %v1473, %v1884
      %v1886 = vpop.f32.mrb[0].mxu0
      %v1887 = vadd.f32 %v1477, %v1886
      %v1888 = vpop.f32.mrb[0].mxu0
      %v1889 = vadd.f32 %v1473, %v1888
      %v1890 = vpop.f32.mrb[0].mxu0
      %v1891 = vadd.f32 %v1477, %v1890
      %1892 = vmatprep.mubr.bf16.mxu0 %v1382
      %1893 = vmatmul.mubr.bf16.gmra.mrb[0].mxu0 %v1381
      %v1894 = vpop.f32.mrb[0].mxu0
      %v1895 = vadd.f32 %v1473, %v1894
      %v1896 = vpop.f32.mrb[0].mxu0
      %v1897 = vadd.f32 %v1477, %v1896
      %v1898 = vpop.f32.mrb[0].mxu0
      %v1899 = vadd.f32 %v1473, %v1898
      %v1900 = vpop.f32.mrb[0].mxu0
      %v1901 = vadd.f32 %v1477, %v1900
      %1902 = vmatprep.mubr.bf16.mxu0 %v1384
      %1903 = vmatmul.mubr.bf16.gmra.mrb[0].mxu0 %v1383
      %v1904 = vpop.f32.mrb[0].mxu0
      %v1905 = vadd.f32 %v1473, %v1904
      %v1906 = vpop.f32.mrb[0].mxu0
      %v1907 = vadd.f32 %v1477, %v1906
      %v1908 = vpop.f32.mrb[0].mxu0
      %v1909 = vadd.f32 %v1473, %v1908
      %v1910 = vpop.f32.mrb[0].mxu0
      %v1911 = vadd.f32 %v1477, %v1910
      %1912 = vmatprep.mubr.bf16.mxu0 %v1386
      %1913 = vmatmul.mubr.bf16.gmra.mrb[0].mxu0 %v1385
      %v1914 = vpop.f32.mrb[0].mxu0
      %v1915 = vadd.f32 %v1473, %v1914
      %v1916 = vpop.f32.mrb[0].mxu0
      %v1917 = vadd.f32 %v1477, %v1916
      %v1918 = vpop.f32.mrb[0].mxu0
      %v1919 = vadd.f32 %v1473, %v1918
      %v1920 = vpop.f32.mrb[0].mxu0
      %v1921 = vadd.f32 %v1477, %v1920
      %1922 = vmatprep.mubr.bf16.mxu0 %v1388
      %1923 = vmatmul.mubr.bf16.gmra.mrb[0].mxu0 %v1387
      %v1924 = vpop.f32.mrb[0].mxu0
      %v1925 = vadd.f32 %v1473, %v1924
      %v1926 = vpop.f32.mrb[0].mxu0
      %v1927 = vadd.f32 %v1477, %v1926
      %v1928 = vpop.f32.mrb[0].mxu0
      %v1929 = vadd.f32 %v1473, %v1928
      %v1930 = vpop.f32.mrb[0].mxu0
      %v1931 = vadd.f32 %v1477, %v1930
      %1932 = vmatprep.mubr.bf16.mxu0 %v1390
      %1933 = vmatmul.mubr.bf16.gmra.mrb[0].mxu0 %v1389
      %v1934 = vpop.f32.mrb[0].mxu0
      %v1935 = vadd.f32 %v1473, %v1934
      %v1936 = vpop.f32.mrb[0].mxu0
      %v1937 = vadd.f32 %v1477, %v1936
      %v1938 = vpop.f32.mrb[0].mxu0
      %v1939 = vadd.f32 %v1473, %v1938
      %v1940 = vpop.f32.mrb[0].mxu0
      %v1941 = vadd.f32 %v1477, %v1940
      %1942 = vmatprep.mubr.bf16.mxu0 %v1392
      %1943 = vmatmul.mubr.bf16.gmra.mrb[0].mxu0 %v1391
      %v1944 = vpop.f32.mrb[0].mxu0
      %v1945 = vadd.f32 %v1473, %v1944
      %v1946 = vpop.f32.mrb[0].mxu0
      %v1947 = vadd.f32 %v1477, %v1946
      %v1948 = vpop.f32.mrb[0].mxu0
      %v1949 = vadd.f32 %v1473, %v1948
      %v1950 = vpop.f32.mrb[0].mxu0
      %v1951 = vadd.f32 %v1477, %v1950
      %1952 = vmatprep.mubr.bf16.mxu0 %v1394
      %1953 = vmatmul.mubr.bf16.gmra.mrb[0].mxu0 %v1393
      %v1954 = vpop.f32.mrb[0].mxu0
      %v1955 = vadd.f32 %v1473, %v1954
      %v1956 = vpop.f32.mrb[0].mxu0
      %v1957 = vadd.f32 %v1477, %v1956
      %v1958 = vpop.f32.mrb[0].mxu0
      %v1959 = vadd.f32 %v1473, %v1958
      %v1960 = vpop.f32.mrb[0].mxu0
      %v1961 = vadd.f32 %v1477, %v1960
      %1962 = vmatprep.mubr.bf16.mxu0 %v1396
      %1963 = vmatmul.mubr.bf16.gmra.mrb[0].mxu0 %v1395
      %v1964 = vpop.f32.mrb[0].mxu0
      %v1965 = vadd.f32 %v1473, %v1964
      %v1966 = vpop.f32.mrb[0].mxu0
      %v1967 = vadd.f32 %v1477, %v1966
      %v1968 = vpop.f32.mrb[0].mxu0
      %v1969 = vadd.f32 %v1473, %v1968
      %v1970 = vpop.f32.mrb[0].mxu0
      %v1971 = vadd.f32 %v1477, %v1970
      %1972 = vmatprep.mubr.bf16.mxu0 %v1398
      %1973 = vmatmul.mubr.bf16.gmra.mrb[0].mxu0 %v1397
      %v1974 = vpop.f32.mrb[0].mxu0
      %v1975 = vadd.f32 %v1473, %v1974
      %v1976 = vpop.f32.mrb[0].mxu0
      %v1977 = vadd.f32 %v1477, %v1976
      %v1978 = vpop.f32.mrb[0].mxu0
      %v1979 = vadd.f32 %v1473, %v1978
      %v1980 = vpop.f32.mrb[0].mxu0
      %v1981 = vadd.f32 %v1477, %v1980
      %1982 = vmatprep.mubr.bf16.mxu0 %v1400
      %1983 = vmatmul.mubr.bf16.gmra.mrb[0].mxu0 %v1399
      %v1984 = vpop.f32.mrb[0].mxu0
      %v1985 = vadd.f32 %v1473, %v1984
      %v1986 = vpop.f32.mrb[0].mxu0
      %v1987 = vadd.f32 %v1477, %v1986
      %v1988 = vpop.f32.mrb[0].mxu0
      %v1989 = vadd.f32 %v1473, %v1988
      %v1990 = vpop.f32.mrb[0].mxu0
      %v1991 = vadd.f32 %v1477, %v1990
      %1992 = vmatprep.mubr.bf16.mxu0 %v1402
      %1993 = vmatmul.mubr.bf16.gmra.mrb[0].mxu0 %v1401
      %v1994 = vpop.f32.mrb[0].mxu0
      %v1995 = vadd.f32 %v1473, %v1994
      %v1996 = vpop.f32.mrb[0].mxu0
      %v1997 = vadd.f32 %v1477, %v1996
      %v1998 = vpop.f32.mrb[0].mxu0
      %v1999 = vadd.f32 %v1473, %v1998
      %v2000 = vpop.f32.mrb[0].mxu0
      %v2001 = vadd.f32 %v1477, %v2000
      %2002 = vdwg.mxu0
      %2003 = vmatprep.subr.bf16.mxu0 %v1685
      %2004 = vmatpush1.bf16.msra.mxu0 %v1684
      %2005 = vmatprep.subr.bf16.mxu0 %v1689
      %2006 = vmatpush1.bf16.msra.mxu0 %v1688
      %2007 = vmatprep.subr.bf16.mxu0 %v1693
      %2008 = vmatpush1.bf16.msra.mxu0 %v1692
      %2009 = vmatprep.subr.bf16.mxu0 %v1697
      %2010 = vmatpush1.bf16.msra.mxu0 %v1696
      %2011 = vmatprep.subr.bf16.mxu0 %v1701
      %2012 = vmatpush1.bf16.msra.mxu0 %v1700
      %2013 = vmatprep.subr.bf16.mxu0 %v1705
      %2014 = vmatpush1.bf16.msra.mxu0 %v1704
      %2015 = vmatprep.subr.bf16.mxu0 %v1709
      %2016 = vmatpush1.bf16.msra.mxu0 %v1708
      %2017 = vmatprep.subr.bf16.mxu0 %v1713
      %2018 = vmatpush1.bf16.msra.mxu0 %v1712
      %2019 = vmatprep.subr.bf16.mxu0 %v1717
      %2020 = vmatpush1.bf16.msra.mxu0 %v1716
      %2021 = vmatprep.subr.bf16.mxu0 %v1721
      %2022 = vmatpush1.bf16.msra.mxu0 %v1720
      %2023 = vmatprep.subr.bf16.mxu0 %v1725
      %2024 = vmatpush1.bf16.msra.mxu0 %v1724
      %2025 = vmatprep.subr.bf16.mxu0 %v1729
      %2026 = vmatpush1.bf16.msra.mxu0 %v1728
      %2027 = vmatprep.subr.bf16.mxu0 %v1733
      %2028 = vmatpush1.bf16.msra.mxu0 %v1732
      %2029 = vmatprep.subr.bf16.mxu0 %v1737
      %2030 = vmatpush1.bf16.msra.mxu0 %v1736
      %2031 = vmatprep.subr.bf16.mxu0 %v1741
      %2032 = vmatpush1.bf16.msra.mxu0 %v1740
      %2033 = vmatprep.subr.bf16.mxu0 %v1745
      %2034 = vmatpush1.bf16.msra.mxu0 %v1744
      %2035 = vmatprep.mubr.bf16.mxu0 %v1372
      %2036 = vmatmul.mubr.bf16.gmra.mrb[0].mxu0 %v1371
      %v2037 = vpop.f32.mrb[0].mxu0
      %v2038 = vadd.f32 %v1481, %v2037
      %v2039 = vpop.f32.mrb[0].mxu0
      %v2040 = vadd.f32 %v1485, %v2039
      %v2041 = vpop.f32.mrb[0].mxu0
      %v2042 = vadd.f32 %v1481, %v2041
      %v2043 = vpop.f32.mrb[0].mxu0
      %v2044 = vadd.f32 %v1485, %v2043
      %2045 = vmatprep.mubr.bf16.mxu0 %v1374
      %2046 = vmatmul.mubr.bf16.gmra.mrb[0].mxu0 %v1373
      %v2047 = vpop.f32.mrb[0].mxu0
      %v2048 = vadd.f32 %v1481, %v2047
      %v2049 = vpop.f32.mrb[0].mxu0
      %v2050 = vadd.f32 %v1485, %v2049
      %v2051 = vpop.f32.mrb[0].mxu0
      %v2052 = vadd.f32 %v1481, %v2051
      %v2053 = vpop.f32.mrb[0].mxu0
      %v2054 = vadd.f32 %v1485, %v2053
      %2055 = vmatprep.mubr.bf16.mxu0 %v1376
      %2056 = vmatmul.mubr.bf16.gmra.mrb[0].mxu0 %v1375
      %v2057 = vpop.f32.mrb[0].mxu0
      %v2058 = vadd.f32 %v1481, %v2057
      %v2059 = vpop.f32.mrb[0].mxu0
      %v2060 = vadd.f32 %v1485, %v2059
      %v2061 = vpop.f32.mrb[0].mxu0
      %v2062 = vadd.f32 %v1481, %v2061
      %v2063 = vpop.f32.mrb[0].mxu0
      %v2064 = vadd.f32 %v1485, %v2063
      %2065 = vmatprep.mubr.bf16.mxu0 %v1378
      %2066 = vmatmul.mubr.bf16.gmra.mrb[0].mxu0 %v1377
      %v2067 = vpop.f32.mrb[0].mxu0
      %v2068 = vadd.f32 %v1481, %v2067
      %v2069 = vpop.f32.mrb[0].mxu0
      %v2070 = vadd.f32 %v1485, %v2069
      %v2071 = vpop.f32.mrb[0].mxu0
      %v2072 = vadd.f32 %v1481, %v2071
      %v2073 = vpop.f32.mrb[0].mxu0
      %v2074 = vadd.f32 %v1485, %v2073
      %2075 = vmatprep.mubr.bf16.mxu0 %v1380
      %2076 = vmatmul.mubr.bf16.gmra.mrb[0].mxu0 %v1379
      %v2077 = vpop.f32.mrb[0].mxu0
      %v2078 = vadd.f32 %v1481, %v2077
      %v2079 = vpop.f32.mrb[0].mxu0
      %v2080 = vadd.f32 %v1485, %v2079
      %v2081 = vpop.f32.mrb[0].mxu0
      %v2082 = vadd.f32 %v1481, %v2081
      %v2083 = vpop.f32.mrb[0].mxu0
      %v2084 = vadd.f32 %v1485, %v2083
      %2085 = vmatprep.mubr.bf16.mxu0 %v1382
      %2086 = vmatmul.mubr.bf16.gmra.mrb[0].mxu0 %v1381
      %v2087 = vpop.f32.mrb[0].mxu0
      %v2088 = vadd.f32 %v1481, %v2087
      %v2089 = vpop.f32.mrb[0].mxu0
      %v2090 = vadd.f32 %v1485, %v2089
      %v2091 = vpop.f32.mrb[0].mxu0
      %v2092 = vadd.f32 %v1481, %v2091
      %v2093 = vpop.f32.mrb[0].mxu0
      %v2094 = vadd.f32 %v1485, %v2093
      %2095 = vmatprep.mubr.bf16.mxu0 %v1384
      %2096 = vmatmul.mubr.bf16.gmra.mrb[0].mxu0 %v1383
      %v2097 = vpop.f32.mrb[0].mxu0
      %v2098 = vadd.f32 %v1481, %v2097
      %v2099 = vpop.f32.mrb[0].mxu0
      %v2100 = vadd.f32 %v1485, %v2099
      %v2101 = vpop.f32.mrb[0].mxu0
      %v2102 = vadd.f32 %v1481, %v2101
      %v2103 = vpop.f32.mrb[0].mxu0
      %v2104 = vadd.f32 %v1485, %v2103
      %2105 = vmatprep.mubr.bf16.mxu0 %v1386
      %2106 = vmatmul.mubr.bf16.gmra.mrb[0].mxu0 %v1385
      %v2107 = vpop.f32.mrb[0].mxu0
      %v2108 = vadd.f32 %v1481, %v2107
      %v2109 = vpop.f32.mrb[0].mxu0
      %v2110 = vadd.f32 %v1485, %v2109
      %v2111 = vpop.f32.mrb[0].mxu0
      %v2112 = vadd.f32 %v1481, %v2111
      %v2113 = vpop.f32.mrb[0].mxu0
      %v2114 = vadd.f32 %v1485, %v2113
      %2115 = vmatprep.mubr.bf16.mxu0 %v1388
      %2116 = vmatmul.mubr.bf16.gmra.mrb[0].mxu0 %v1387
      %v2117 = vpop.f32.mrb[0].mxu0
      %v2118 = vadd.f32 %v1481, %v2117
      %v2119 = vpop.f32.mrb[0].mxu0
      %v2120 = vadd.f32 %v1485, %v2119
      %v2121 = vpop.f32.mrb[0].mxu0
      %v2122 = vadd.f32 %v1481, %v2121
      %v2123 = vpop.f32.mrb[0].mxu0
      %v2124 = vadd.f32 %v1485, %v2123
      %2125 = vmatprep.mubr.bf16.mxu0 %v1390
      %2126 = vmatmul.mubr.bf16.gmra.mrb[0].mxu0 %v1389
      %v2127 = vpop.f32.mrb[0].mxu0
      %v2128 = vadd.f32 %v1481, %v2127
      %v2129 = vpop.f32.mrb[0].mxu0
      %v2130 = vadd.f32 %v1485, %v2129
      %v2131 = vpop.f32.mrb[0].mxu0
      %v2132 = vadd.f32 %v1481, %v2131
      %v2133 = vpop.f32.mrb[0].mxu0
      %v2134 = vadd.f32 %v1485, %v2133
      %2135 = vmatprep.mubr.bf16.mxu0 %v1392
      %2136 = vmatmul.mubr.bf16.gmra.mrb[0].mxu0 %v1391
      %v2137 = vpop.f32.mrb[0].mxu0
      %v2138 = vadd.f32 %v1481, %v2137
      %v2139 = vpop.f32.mrb[0].mxu0
      %v2140 = vadd.f32 %v1485, %v2139
      %v2141 = vpop.f32.mrb[0].mxu0
      %v2142 = vadd.f32 %v1481, %v2141
      %v2143 = vpop.f32.mrb[0].mxu0
      %v2144 = vadd.f32 %v1485, %v2143
      %2145 = vmatprep.mubr.bf16.mxu0 %v1394
      %2146 = vmatmul.mubr.bf16.gmra.mrb[0].mxu0 %v1393
      %v2147 = vpop.f32.mrb[0].mxu0
      %v2148 = vadd.f32 %v1481, %v2147
      %v2149 = vpop.f32.mrb[0].mxu0
      %v2150 = vadd.f32 %v1485, %v2149
      %v2151 = vpop.f32.mrb[0].mxu0
      %v2152 = vadd.f32 %v1481, %v2151
      %v2153 = vpop.f32.mrb[0].mxu0
      %v2154 = vadd.f32 %v1485, %v2153
      %2155 = vmatprep.mubr.bf16.mxu0 %v1396
      %2156 = vmatmul.mubr.bf16.gmra.mrb[0].mxu0 %v1395
      %v2157 = vpop.f32.mrb[0].mxu0
      %v2158 = vadd.f32 %v1481, %v2157
      %v2159 = vpop.f32.mrb[0].mxu0
      %v2160 = vadd.f32 %v1485, %v2159
      %v2161 = vpop.f32.mrb[0].mxu0
      %v2162 = vadd.f32 %v1481, %v2161
      %v2163 = vpop.f32.mrb[0].mxu0
      %v2164 = vadd.f32 %v1485, %v2163
      %2165 = vmatprep.mubr.bf16.mxu0 %v1398
      %2166 = vmatmul.mubr.bf16.gmra.mrb[0].mxu0 %v1397
      %v2167 = vpop.f32.mrb[0].mxu0
      %v2168 = vadd.f32 %v1481, %v2167
      %v2169 = vpop.f32.mrb[0].mxu0
      %v2170 = vadd.f32 %v1485, %v2169
      %v2171 = vpop.f32.mrb[0].mxu0
      %v2172 = vadd.f32 %v1481, %v2171
      %v2173 = vpop.f32.mrb[0].mxu0
      %v2174 = vadd.f32 %v1485, %v2173
      %2175 = vmatprep.mubr.bf16.mxu0 %v1400
      %2176 = vmatmul.mubr.bf16.gmra.mrb[0].mxu0 %v1399
      %v2177 = vpop.f32.mrb[0].mxu0
      %v2178 = vadd.f32 %v1481, %v2177
      %v2179 = vpop.f32.mrb[0].mxu0
      %v2180 = vadd.f32 %v1485, %v2179
      %v2181 = vpop.f32.mrb[0].mxu0
      %v2182 = vadd.f32 %v1481, %v2181
      %v2183 = vpop.f32.mrb[0].mxu0
      %v2184 = vadd.f32 %v1485, %v2183
      %2185 = vmatprep.mubr.bf16.mxu0 %v1402
      %2186 = vmatmul.mubr.bf16.gmra.mrb[0].mxu0 %v1401
      %v2187 = vpop.f32.mrb[0].mxu0
      %v2188 = vadd.f32 %v1481, %v2187
      %v2189 = vpop.f32.mrb[0].mxu0
      %v2190 = vadd.f32 %v1485, %v2189
      %v2191 = vpop.f32.mrb[0].mxu0
      %v2192 = vadd.f32 %v1481, %v2191
      %v2193 = vpop.f32.mrb[0].mxu0
      %v2194 = vadd.f32 %v1485, %v2193
      %2195 = vdwg.mxu0
      %v2196 = vmul.f32 %v1845, 0.2
      %v2197 = vmul.f32 %v1847, 0.2
      %v2198 = vmul.f32 %v2038, 0.2
      %v2199 = vmul.f32 %v2040, 0.2
      %v2200 = vmul.f32 %v1849, 0.2
      %v2201 = vmul.f32 %v1851, 0.2
      %v2202 = vmul.f32 %v2042, 0.2
      %v2203 = vmul.f32 %v2044, 0.2
      %v2204 = vmul.f32 %v1855, 0.2
      %v2205 = vmul.f32 %v1857, 0.2
      %v2206 = vmul.f32 %v2048, 0.2
      %v2207 = vmul.f32 %v2050, 0.2
      %v2208 = vmul.f32 %v1859, 0.2
      %v2209 = vmul.f32 %v1861, 0.2
      %v2210 = vmul.f32 %v2052, 0.2
      %v2211 = vmul.f32 %v2054, 0.2
      %v2212 = vmul.f32 %v1865, 0.2
      %v2213 = vmul.f32 %v1867, 0.2
      %v2214 = vmul.f32 %v2058, 0.2
      %v2215 = vmul.f32 %v2060, 0.2
      %v2216 = vmul.f32 %v1869, 0.2
      %v2217 = vmul.f32 %v1871, 0.2
      %v2218 = vmul.f32 %v2062, 0.2
      %v2219 = vmul.f32 %v2064, 0.2
      %v2220 = vmul.f32 %v1875, 0.2
      %v2221 = vmul.f32 %v1877, 0.2
      %v2222 = vmul.f32 %v2068, 0.2
      %v2223 = vmul.f32 %v2070, 0.2
      %v2224 = vmul.f32 %v1879, 0.2
      %v2225 = vmul.f32 %v1881, 0.2
      %v2226 = vmul.f32 %v2072, 0.2
      %v2227 = vmul.f32 %v2074, 0.2
      %v2228 = vmul.f32 %v1885, 0.2
      %v2229 = vmul.f32 %v1887, 0.2
      %v2230 = vmul.f32 %v2078, 0.2
      %v2231 = vmul.f32 %v2080, 0.2
      %v2232 = vmul.f32 %v1889, 0.2
      %v2233 = vmul.f32 %v1891, 0.2
      %v2234 = vmul.f32 %v2082, 0.2
      %v2235 = vmul.f32 %v2084, 0.2
      %v2236 = vmul.f32 %v1895, 0.2
      %v2237 = vmul.f32 %v1897, 0.2
      %v2238 = vmul.f32 %v2088, 0.2
      %v2239 = vmul.f32 %v2090, 0.2
      %v2240 = vmul.f32 %v1899, 0.2
      %v2241 = vmul.f32 %v1901, 0.2
      %v2242 = vmul.f32 %v2092, 0.2
      %v2243 = vmul.f32 %v2094, 0.2
      %v2244 = vmul.f32 %v1905, 0.2
      %v2245 = vmul.f32 %v1907, 0.2
      %v2246 = vmul.f32 %v2098, 0.2
      %v2247 = vmul.f32 %v2100, 0.2
      %v2248 = vmul.f32 %v1909, 0.2
      %v2249 = vmul.f32 %v1911, 0.2
      %v2250 = vmul.f32 %v2102, 0.2
      %v2251 = vmul.f32 %v2104, 0.2
      %v2252 = vmul.f32 %v1915, 0.2
      %v2253 = vmul.f32 %v1917, 0.2
      %v2254 = vmul.f32 %v2108, 0.2
      %v2255 = vmul.f32 %v2110, 0.2
      %v2256 = vmul.f32 %v1919, 0.2
      %v2257 = vmul.f32 %v1921, 0.2
      %v2258 = vmul.f32 %v2112, 0.2
      %v2259 = vmul.f32 %v2114, 0.2
      %v2260 = vmul.f32 %v1925, 0.2
      %v2261 = vmul.f32 %v1927, 0.2
      %v2262 = vmul.f32 %v2118, 0.2
      %v2263 = vmul.f32 %v2120, 0.2
      %v2264 = vmul.f32 %v1929, 0.2
      %v2265 = vmul.f32 %v1931, 0.2
      %v2266 = vmul.f32 %v2122, 0.2
      %v2267 = vmul.f32 %v2124, 0.2
      %v2268 = vmul.f32 %v1935, 0.2
      %v2269 = vmul.f32 %v1937, 0.2
      %v2270 = vmul.f32 %v2128, 0.2
      %v2271 = vmul.f32 %v2130, 0.2
      %v2272 = vmul.f32 %v1939, 0.2
      %v2273 = vmul.f32 %v1941, 0.2
      %v2274 = vmul.f32 %v2132, 0.2
      %v2275 = vmul.f32 %v2134, 0.2
      %v2276 = vmul.f32 %v1945, 0.2
      %v2277 = vmul.f32 %v1947, 0.2
      %v2278 = vmul.f32 %v2138, 0.2
      %v2279 = vmul.f32 %v2140, 0.2
      %v2280 = vmul.f32 %v1949, 0.2
      %v2281 = vmul.f32 %v1951, 0.2
      %v2282 = vmul.f32 %v2142, 0.2
      %v2283 = vmul.f32 %v2144, 0.2
      %v2284 = vmul.f32 %v1955, 0.2
      %v2285 = vmul.f32 %v1957, 0.2
      %v2286 = vmul.f32 %v2148, 0.2
      %v2287 = vmul.f32 %v2150, 0.2
      %v2288 = vmul.f32 %v1959, 0.2
      %v2289 = vmul.f32 %v1961, 0.2
      %v2290 = vmul.f32 %v2152, 0.2
      %v2291 = vmul.f32 %v2154, 0.2
      %v2292 = vmul.f32 %v1965, 0.2
      %v2293 = vmul.f32 %v1967, 0.2
      %v2294 = vmul.f32 %v2158, 0.2
      %v2295 = vmul.f32 %v2160, 0.2
      %v2296 = vmul.f32 %v1969, 0.2
      %v2297 = vmul.f32 %v1971, 0.2
      %v2298 = vmul.f32 %v2162, 0.2
      %v2299 = vmul.f32 %v2164, 0.2
      %v2300 = vmul.f32 %v1975, 0.2
      %v2301 = vmul.f32 %v1977, 0.2
      %v2302 = vmul.f32 %v2168, 0.2
      %v2303 = vmul.f32 %v2170, 0.2
      %v2304 = vmul.f32 %v1979, 0.2
      %v2305 = vmul.f32 %v1981, 0.2
      %v2306 = vmul.f32 %v2172, 0.2
      %v2307 = vmul.f32 %v2174, 0.2
      %v2308 = vmul.f32 %v1985, 0.2
      %v2309 = vmul.f32 %v1987, 0.2
      %v2310 = vmul.f32 %v2178, 0.2
      %v2311 = vmul.f32 %v2180, 0.2
      %v2312 = vmul.f32 %v1989, 0.2
      %v2313 = vmul.f32 %v1991, 0.2
      %v2314 = vmul.f32 %v2182, 0.2
      %v2315 = vmul.f32 %v2184, 0.2
      %v2316 = vmul.f32 %v1995, 0.2
      %v2317 = vmul.f32 %v1997, 0.2
      %v2318 = vmul.f32 %v2188, 0.2
      %v2319 = vmul.f32 %v2190, 0.2
      %v2320 = vmul.f32 %v1999, 0.2
      %v2321 = vmul.f32 %v2001, 0.2
      %v2322 = vmul.f32 %v2192, 0.2
      %v2323 = vmul.f32 %v2194, 0.2
      %v2324 = vmax.f32 %v1845, %v2196
      %v2325 = vmax.f32 %v1847, %v2197
      %v2326 = vmax.f32 %v2038, %v2198
      %v2327 = vmax.f32 %v2040, %v2199
      %v2328 = vmax.f32 %v1849, %v2200
      %v2329 = vmax.f32 %v1851, %v2201
      %v2330 = vmax.f32 %v2042, %v2202
      %v2331 = vmax.f32 %v2044, %v2203
      %v2332 = vmax.f32 %v1855, %v2204
      %v2333 = vmax.f32 %v1857, %v2205
      %v2334 = vmax.f32 %v2048, %v2206
      %v2335 = vmax.f32 %v2050, %v2207
      %v2336 = vmax.f32 %v1859, %v2208
      %v2337 = vmax.f32 %v1861, %v2209
      %v2338 = vmax.f32 %v2052, %v2210
      %v2339 = vmax.f32 %v2054, %v2211
      %v2340 = vmax.f32 %v1865, %v2212
      %v2341 = vmax.f32 %v1867, %v2213
      %v2342 = vmax.f32 %v2058, %v2214
      %v2343 = vmax.f32 %v2060, %v2215
      %v2344 = vmax.f32 %v1869, %v2216
      %v2345 = vmax.f32 %v1871, %v2217
      %v2346 = vmax.f32 %v2062, %v2218
      %v2347 = vmax.f32 %v2064, %v2219
      %v2348 = vmax.f32 %v1875, %v2220
      %v2349 = vmax.f32 %v1877, %v2221
      %v2350 = vmax.f32 %v2068, %v2222
      %v2351 = vmax.f32 %v2070, %v2223
      %v2352 = vmax.f32 %v1879, %v2224
      %v2353 = vmax.f32 %v1881, %v2225
      %v2354 = vmax.f32 %v2072, %v2226
      %v2355 = vmax.f32 %v2074, %v2227
      %v2356 = vmax.f32 %v1885, %v2228
      %v2357 = vmax.f32 %v1887, %v2229
      %v2358 = vmax.f32 %v2078, %v2230
      %v2359 = vmax.f32 %v2080, %v2231
      %v2360 = vmax.f32 %v1889, %v2232
      %v2361 = vmax.f32 %v1891, %v2233
      %v2362 = vmax.f32 %v2082, %v2234
      %v2363 = vmax.f32 %v2084, %v2235
      %v2364 = vmax.f32 %v1895, %v2236
      %v2365 = vmax.f32 %v1897, %v2237
      %v2366 = vmax.f32 %v2088, %v2238
      %v2367 = vmax.f32 %v2090, %v2239
      %v2368 = vmax.f32 %v1899, %v2240
      %v2369 = vmax.f32 %v1901, %v2241
      %v2370 = vmax.f32 %v2092, %v2242
      %v2371 = vmax.f32 %v2094, %v2243
      %v2372 = vmax.f32 %v1905, %v2244
      %v2373 = vmax.f32 %v1907, %v2245
      %v2374 = vmax.f32 %v2098, %v2246
      %v2375 = vmax.f32 %v2100, %v2247
      %v2376 = vmax.f32 %v1909, %v2248
      %v2377 = vmax.f32 %v1911, %v2249
      %v2378 = vmax.f32 %v2102, %v2250
      %v2379 = vmax.f32 %v2104, %v2251
      %v2380 = vmax.f32 %v1915, %v2252
      %v2381 = vmax.f32 %v1917, %v2253
      %v2382 = vmax.f32 %v2108, %v2254
      %v2383 = vmax.f32 %v2110, %v2255
      %v2384 = vmax.f32 %v1919, %v2256
      %v2385 = vmax.f32 %v1921, %v2257
      %v2386 = vmax.f32 %v2112, %v2258
      %v2387 = vmax.f32 %v2114, %v2259
      %v2388 = vmax.f32 %v1925, %v2260
      %v2389 = vmax.f32 %v1927, %v2261
      %v2390 = vmax.f32 %v2118, %v2262
      %v2391 = vmax.f32 %v2120, %v2263
      %v2392 = vmax.f32 %v1929, %v2264
      %v2393 = vmax.f32 %v1931, %v2265
      %v2394 = vmax.f32 %v2122, %v2266
      %v2395 = vmax.f32 %v2124, %v2267
      %v2396 = vmax.f32 %v1935, %v2268
      %v2397 = vmax.f32 %v1937, %v2269
      %v2398 = vmax.f32 %v2128, %v2270
      %v2399 = vmax.f32 %v2130, %v2271
      %v2400 = vmax.f32 %v1939, %v2272
      %v2401 = vmax.f32 %v1941, %v2273
      %v2402 = vmax.f32 %v2132, %v2274
      %v2403 = vmax.f32 %v2134, %v2275
      %v2404 = vmax.f32 %v1945, %v2276
      %v2405 = vmax.f32 %v1947, %v2277
      %v2406 = vmax.f32 %v2138, %v2278
      %v2407 = vmax.f32 %v2140, %v2279
      %v2408 = vmax.f32 %v1949, %v2280
      %v2409 = vmax.f32 %v1951, %v2281
      %v2410 = vmax.f32 %v2142, %v2282
      %v2411 = vmax.f32 %v2144, %v2283
      %v2412 = vmax.f32 %v1955, %v2284
      %v2413 = vmax.f32 %v1957, %v2285
      %v2414 = vmax.f32 %v2148, %v2286
      %v2415 = vmax.f32 %v2150, %v2287
      %v2416 = vmax.f32 %v1959, %v2288
      %v2417 = vmax.f32 %v1961, %v2289
      %v2418 = vmax.f32 %v2152, %v2290
      %v2419 = vmax.f32 %v2154, %v2291
      %v2420 = vmax.f32 %v1965, %v2292
      %v2421 = vmax.f32 %v1967, %v2293
      %v2422 = vmax.f32 %v2158, %v2294
      %v2423 = vmax.f32 %v2160, %v2295
      %v2424 = vmax.f32 %v1969, %v2296
      %v2425 = vmax.f32 %v1971, %v2297
      %v2426 = vmax.f32 %v2162, %v2298
      %v2427 = vmax.f32 %v2164, %v2299
      %v2428 = vmax.f32 %v1975, %v2300
      %v2429 = vmax.f32 %v1977, %v2301
      %v2430 = vmax.f32 %v2168, %v2302
      %v2431 = vmax.f32 %v2170, %v2303
      %v2432 = vmax.f32 %v1979, %v2304
      %v2433 = vmax.f32 %v1981, %v2305
      %v2434 = vmax.f32 %v2172, %v2306
      %v2435 = vmax.f32 %v2174, %v2307
      %v2436 = vmax.f32 %v1985, %v2308
      %v2437 = vmax.f32 %v1987, %v2309
      %v2438 = vmax.f32 %v2178, %v2310
      %v2439 = vmax.f32 %v2180, %v2311
      %v2440 = vmax.f32 %v1989, %v2312
      %v2441 = vmax.f32 %v1991, %v2313
      %v2442 = vmax.f32 %v2182, %v2314
      %v2443 = vmax.f32 %v2184, %v2315
      %v2444 = vmax.f32 %v1995, %v2316
      %v2445 = vmax.f32 %v1997, %v2317
      %v2446 = vmax.f32 %v2188, %v2318
      %v2447 = vmax.f32 %v2190, %v2319
      %v2448 = vmax.f32 %v1999, %v2320
      %v2449 = vmax.f32 %v2001, %v2321
      %v2450 = vmax.f32 %v2192, %v2322
      %v2451 = vmax.f32 %v2194, %v2323
      %v2452 = vpack.c.bf16 %v2328, %v2324
      %v2453 = vpack.c.bf16 %v2329, %v2325
      %v2454 = vpack.c.bf16 %v2330, %v2326
      %v2455 = vpack.c.bf16 %v2331, %v2327
      %v2456 = vpack.c.bf16 %v2336, %v2332
      %v2457 = vpack.c.bf16 %v2337, %v2333
      %v2458 = vpack.c.bf16 %v2338, %v2334
      %v2459 = vpack.c.bf16 %v2339, %v2335
      %v2460 = vpack.c.bf16 %v2344, %v2340
      %v2461 = vpack.c.bf16 %v2345, %v2341
      %v2462 = vpack.c.bf16 %v2346, %v2342
      %v2463 = vpack.c.bf16 %v2347, %v2343
      %v2464 = vpack.c.bf16 %v2352, %v2348
      %v2465 = vpack.c.bf16 %v2353, %v2349
      %v2466 = vpack.c.bf16 %v2354, %v2350
      %v2467 = vpack.c.bf16 %v2355, %v2351
      %v2468 = vpack.c.bf16 %v2360, %v2356
      %v2469 = vpack.c.bf16 %v2361, %v2357
      %v2470 = vpack.c.bf16 %v2362, %v2358
      %v2471 = vpack.c.bf16 %v2363, %v2359
      %v2472 = vpack.c.bf16 %v2368, %v2364
      %v2473 = vpack.c.bf16 %v2369, %v2365
      %v2474 = vpack.c.bf16 %v2370, %v2366
      %v2475 = vpack.c.bf16 %v2371, %v2367
      %v2476 = vpack.c.bf16 %v2376, %v2372
      %v2477 = vpack.c.bf16 %v2377, %v2373
      %v2478 = vpack.c.bf16 %v2378, %v2374
      %v2479 = vpack.c.bf16 %v2379, %v2375
      %v2480 = vpack.c.bf16 %v2384, %v2380
      %v2481 = vpack.c.bf16 %v2385, %v2381
      %v2482 = vpack.c.bf16 %v2386, %v2382
      %v2483 = vpack.c.bf16 %v2387, %v2383
      %v2484 = vpack.c.bf16 %v2392, %v2388
      %v2485 = vpack.c.bf16 %v2393, %v2389
      %v2486 = vpack.c.bf16 %v2394, %v2390
      %v2487 = vpack.c.bf16 %v2395, %v2391
      %v2488 = vpack.c.bf16 %v2400, %v2396
      %v2489 = vpack.c.bf16 %v2401, %v2397
      %v2490 = vpack.c.bf16 %v2402, %v2398
      %v2491 = vpack.c.bf16 %v2403, %v2399
      %v2492 = vpack.c.bf16 %v2408, %v2404
      %v2493 = vpack.c.bf16 %v2409, %v2405
      %v2494 = vpack.c.bf16 %v2410, %v2406
      %v2495 = vpack.c.bf16 %v2411, %v2407
      %v2496 = vpack.c.bf16 %v2416, %v2412
      %v2497 = vpack.c.bf16 %v2417, %v2413
      %v2498 = vpack.c.bf16 %v2418, %v2414
      %v2499 = vpack.c.bf16 %v2419, %v2415
      %v2500 = vpack.c.bf16 %v2424, %v2420
      %v2501 = vpack.c.bf16 %v2425, %v2421
      %v2502 = vpack.c.bf16 %v2426, %v2422
      %v2503 = vpack.c.bf16 %v2427, %v2423
      %v2504 = vpack.c.bf16 %v2432, %v2428
      %v2505 = vpack.c.bf16 %v2433, %v2429
      %v2506 = vpack.c.bf16 %v2434, %v2430
      %v2507 = vpack.c.bf16 %v2435, %v2431
      %v2508 = vpack.c.bf16 %v2440, %v2436
      %v2509 = vpack.c.bf16 %v2441, %v2437
      %v2510 = vpack.c.bf16 %v2442, %v2438
      %v2511 = vpack.c.bf16 %v2443, %v2439
      %v2512 = vpack.c.bf16 %v2448, %v2444
      %v2513 = vpack.c.bf16 %v2449, %v2445
      %v2514 = vpack.c.bf16 %v2450, %v2446
      %v2515 = vpack.c.bf16 %v2451, %v2447
      %v2516 = vld [vmem:[%s4] sm:$0xff]
      %v2517 = vld [vmem:[%s4 + $0x8] sm:$0xff]
      %v2518 = vld [vmem:[%s4 + $0x10] sm:$0xff]
      %v2519 = vld [vmem:[%s4 + $0x18] sm:$0xff]
      %v2520 = vld [vmem:[%s4 + $0x20] sm:$0xff]
      %v2521 = vld [vmem:[%s4 + $0x28] sm:$0xff]
      %v2522 = vld [vmem:[%s4 + $0x30] sm:$0xff]
      %v2523 = vld [vmem:[%s4 + $0x38] sm:$0xff]
      %v2524 = vld [vmem:[%s4 + $0x40] sm:$0xff]
      %v2525 = vld [vmem:[%s4 + $0x48] sm:$0xff]
      %v2526 = vld [vmem:[%s4 + $0x50] sm:$0xff]
      %v2527 = vld [vmem:[%s4 + $0x58] sm:$0xff]
      %v2528 = vld [vmem:[%s4 + $0x60] sm:$0xff]
      %v2529 = vld [vmem:[%s4 + $0x68] sm:$0xff]
      %v2530 = vld [vmem:[%s4 + $0x70] sm:$0xff]
      %v2531 = vld [vmem:[%s4 + $0x78] sm:$0xff]
      %v2532 = vld [vmem:[%s4 + $0x80] sm:$0xff]
      %v2533 = vld [vmem:[%s4 + $0x88] sm:$0xff]
      %v2534 = vld [vmem:[%s4 + $0x90] sm:$0xff]
      %v2535 = vld [vmem:[%s4 + $0x98] sm:$0xff]
      %v2536 = vld [vmem:[%s4 + $0xa0] sm:$0xff]
      %v2537 = vld [vmem:[%s4 + $0xa8] sm:$0xff]
      %v2538 = vld [vmem:[%s4 + $0xb0] sm:$0xff]
      %v2539 = vld [vmem:[%s4 + $0xb8] sm:$0xff]
      %v2540 = vld [vmem:[%s4 + $0xc0] sm:$0xff]
      %v2541 = vld [vmem:[%s4 + $0xc8] sm:$0xff]
      %v2542 = vld [vmem:[%s4 + $0xd0] sm:$0xff]
      %v2543 = vld [vmem:[%s4 + $0xd8] sm:$0xff]
      %v2544 = vld [vmem:[%s4 + $0xe0] sm:$0xff]
      %v2545 = vld [vmem:[%s4 + $0xe8] sm:$0xff]
      %v2546 = vld [vmem:[%s4 + $0xf0] sm:$0xff]
      %v2547 = vld [vmem:[%s4 + $0xf8] sm:$0xff]
      %v2548 = vld [vmem:[%s4 + $0x100] sm:$0xff]
      %v2549 = vld [vmem:[%s4 + $0x108] sm:$0xff]
      %v2550 = vld [vmem:[%s4 + $0x110] sm:$0xff]
      %v2551 = vld [vmem:[%s4 + $0x118] sm:$0xff]
      %v2552 = vld [vmem:[%s4 + $0x120] sm:$0xff]
      %v2553 = vld [vmem:[%s4 + $0x128] sm:$0xff]
      %v2554 = vld [vmem:[%s4 + $0x130] sm:$0xff]
      %v2555 = vld [vmem:[%s4 + $0x138] sm:$0xff]
      %v2556 = vld [vmem:[%s4 + $0x140] sm:$0xff]
      %v2557 = vld [vmem:[%s4 + $0x148] sm:$0xff]
      %v2558 = vld [vmem:[%s4 + $0x150] sm:$0xff]
      %v2559 = vld [vmem:[%s4 + $0x158] sm:$0xff]
      %v2560 = vld [vmem:[%s4 + $0x160] sm:$0xff]
      %v2561 = vld [vmem:[%s4 + $0x168] sm:$0xff]
      %v2562 = vld [vmem:[%s4 + $0x170] sm:$0xff]
      %v2563 = vld [vmem:[%s4 + $0x178] sm:$0xff]
      %v2564 = vld [vmem:[%s4 + $0x180] sm:$0xff]
      %v2565 = vld [vmem:[%s4 + $0x188] sm:$0xff]
      %v2566 = vld [vmem:[%s4 + $0x190] sm:$0xff]
      %v2567 = vld [vmem:[%s4 + $0x198] sm:$0xff]
      %v2568 = vld [vmem:[%s4 + $0x1a0] sm:$0xff]
      %v2569 = vld [vmem:[%s4 + $0x1a8] sm:$0xff]
      %v2570 = vld [vmem:[%s4 + $0x1b0] sm:$0xff]
      %v2571 = vld [vmem:[%s4 + $0x1b8] sm:$0xff]
      %v2572 = vld [vmem:[%s4 + $0x1c0] sm:$0xff]
      %v2573 = vld [vmem:[%s4 + $0x1c8] sm:$0xff]
      %v2574 = vld [vmem:[%s4 + $0x1d0] sm:$0xff]
      %v2575 = vld [vmem:[%s4 + $0x1d8] sm:$0xff]
      %v2576 = vld [vmem:[%s4 + $0x1e0] sm:$0xff]
      %v2577 = vld [vmem:[%s4 + $0x1e8] sm:$0xff]
      %v2578 = vld [vmem:[%s4 + $0x1f0] sm:$0xff]
      %v2579 = vld [vmem:[%s4 + $0x1f8] sm:$0xff]
      %v2580 = vld [vmem:[%s4 + $0x200] sm:$0xff]
      %v2581 = vld [vmem:[%s4 + $0x208] sm:$0xff]
      %v2582 = vld [vmem:[%s4 + $0x210] sm:$0xff]
      %v2583 = vld [vmem:[%s4 + $0x218] sm:$0xff]
      %v2584 = vld [vmem:[%s4 + $0x220] sm:$0xff]
      %v2585 = vld [vmem:[%s4 + $0x228] sm:$0xff]
      %v2586 = vld [vmem:[%s4 + $0x230] sm:$0xff]
      %v2587 = vld [vmem:[%s4 + $0x238] sm:$0xff]
      %v2588 = vld [vmem:[%s4 + $0x240] sm:$0xff]
      %v2589 = vld [vmem:[%s4 + $0x248] sm:$0xff]
      %v2590 = vld [vmem:[%s4 + $0x250] sm:$0xff]
      %v2591 = vld [vmem:[%s4 + $0x258] sm:$0xff]
      %v2592 = vld [vmem:[%s4 + $0x260] sm:$0xff]
      %v2593 = vld [vmem:[%s4 + $0x268] sm:$0xff]
      %v2594 = vld [vmem:[%s4 + $0x270] sm:$0xff]
      %v2595 = vld [vmem:[%s4 + $0x278] sm:$0xff]
      %v2596 = vld [vmem:[%s4 + $0x280] sm:$0xff]
      %v2597 = vld [vmem:[%s4 + $0x288] sm:$0xff]
      %v2598 = vld [vmem:[%s4 + $0x290] sm:$0xff]
      %v2599 = vld [vmem:[%s4 + $0x298] sm:$0xff]
      %v2600 = vld [vmem:[%s4 + $0x2a0] sm:$0xff]
      %v2601 = vld [vmem:[%s4 + $0x2a8] sm:$0xff]
      %v2602 = vld [vmem:[%s4 + $0x2b0] sm:$0xff]
      %v2603 = vld [vmem:[%s4 + $0x2b8] sm:$0xff]
      %v2604 = vld [vmem:[%s4 + $0x2c0] sm:$0xff]
      %v2605 = vld [vmem:[%s4 + $0x2c8] sm:$0xff]
      %v2606 = vld [vmem:[%s4 + $0x2d0] sm:$0xff]
      %v2607 = vld [vmem:[%s4 + $0x2d8] sm:$0xff]
      %v2608 = vld [vmem:[%s4 + $0x2e0] sm:$0xff]
      %v2609 = vld [vmem:[%s4 + $0x2e8] sm:$0xff]
      %v2610 = vld [vmem:[%s4 + $0x2f0] sm:$0xff]
      %v2611 = vld [vmem:[%s4 + $0x2f8] sm:$0xff]
      %v2612 = vld [vmem:[%s4 + $0x300] sm:$0xff]
      %v2613 = vld [vmem:[%s4 + $0x308] sm:$0xff]
      %v2614 = vld [vmem:[%s4 + $0x310] sm:$0xff]
      %v2615 = vld [vmem:[%s4 + $0x318] sm:$0xff]
      %v2616 = vld [vmem:[%s4 + $0x320] sm:$0xff]
      %v2617 = vld [vmem:[%s4 + $0x328] sm:$0xff]
      %v2618 = vld [vmem:[%s4 + $0x330] sm:$0xff]
      %v2619 = vld [vmem:[%s4 + $0x338] sm:$0xff]
      %v2620 = vld [vmem:[%s4 + $0x340] sm:$0xff]
      %v2621 = vld [vmem:[%s4 + $0x348] sm:$0xff]
      %v2622 = vld [vmem:[%s4 + $0x350] sm:$0xff]
      %v2623 = vld [vmem:[%s4 + $0x358] sm:$0xff]
      %v2624 = vld [vmem:[%s4 + $0x360] sm:$0xff]
      %v2625 = vld [vmem:[%s4 + $0x368] sm:$0xff]
      %v2626 = vld [vmem:[%s4 + $0x370] sm:$0xff]
      %v2627 = vld [vmem:[%s4 + $0x378] sm:$0xff]
      %v2628 = vld [vmem:[%s4 + $0x380] sm:$0xff]
      %v2629 = vld [vmem:[%s4 + $0x388] sm:$0xff]
      %v2630 = vld [vmem:[%s4 + $0x390] sm:$0xff]
      %v2631 = vld [vmem:[%s4 + $0x398] sm:$0xff]
      %v2632 = vld [vmem:[%s4 + $0x3a0] sm:$0xff]
      %v2633 = vld [vmem:[%s4 + $0x3a8] sm:$0xff]
      %v2634 = vld [vmem:[%s4 + $0x3b0] sm:$0xff]
      %v2635 = vld [vmem:[%s4 + $0x3b8] sm:$0xff]
      %v2636 = vld [vmem:[%s4 + $0x3c0] sm:$0xff]
      %v2637 = vld [vmem:[%s4 + $0x3c8] sm:$0xff]
      %v2638 = vld [vmem:[%s4 + $0x3d0] sm:$0xff]
      %v2639 = vld [vmem:[%s4 + $0x3d8] sm:$0xff]
      %v2640 = vld [vmem:[%s4 + $0x3e0] sm:$0xff]
      %v2641 = vld [vmem:[%s4 + $0x3e8] sm:$0xff]
      %v2642 = vld [vmem:[%s4 + $0x3f0] sm:$0xff]
      %v2643 = vld [vmem:[%s4 + $0x3f8] sm:$0xff]
      %s2644 = scalar_lea.vmem %s6, 3
      %v2645 = vld [vmem:[%s2644] ss:$8 sm:$0xf]
      %v2647 = vlaneseq
      %v2648 = vshrl.u32 %v2647, 7
      %v2649 = vsub.s32 0, %v2648
      %v2650 = vrot.slane %v2645, %v2649
      %v2651 = vlaneseq
      %v2652 = vshrl.u32 %v2651, 7
      %v2653 = vsub.s32 1, %v2652
      %v2654 = vrot.slane %v2645, %v2653
      %v2655 = vlaneseq
      %v2656 = vshrl.u32 %v2655, 7
      %v2657 = vsub.s32 2, %v2656
      %v2658 = vrot.slane %v2645, %v2657
      %v2659 = vlaneseq
      %v2660 = vshrl.u32 %v2659, 7
      %v2661 = vsub.s32 3, %v2660
      %v2662 = vrot.slane %v2645, %v2661
      %v2795 = vunpack.c.l.b16 %v2516
      %v2796 = vunpack.c.h.b16 %v2516
      %v2797 = vunpack.c.l.b16 %v2517
      %v2798 = vunpack.c.h.b16 %v2517
      %v2799 = vunpack.c.l.b16 %v2518
      %v2800 = vunpack.c.h.b16 %v2518
      %v2801 = vunpack.c.l.b16 %v2519
      %v2802 = vunpack.c.h.b16 %v2519
      %v2803 = vunpack.c.l.b16 %v2520
      %v2804 = vunpack.c.h.b16 %v2520
      %v2805 = vunpack.c.l.b16 %v2521
      %v2806 = vunpack.c.h.b16 %v2521
      %v2807 = vunpack.c.l.b16 %v2522
      %v2808 = vunpack.c.h.b16 %v2522
      %v2809 = vunpack.c.l.b16 %v2523
      %v2810 = vunpack.c.h.b16 %v2523
      %v2811 = vunpack.c.l.b16 %v2524
      %v2812 = vunpack.c.h.b16 %v2524
      %v2813 = vunpack.c.l.b16 %v2525
      %v2814 = vunpack.c.h.b16 %v2525
      %v2815 = vunpack.c.l.b16 %v2526
      %v2816 = vunpack.c.h.b16 %v2526
      %v2817 = vunpack.c.l.b16 %v2527
      %v2818 = vunpack.c.h.b16 %v2527
      %v2819 = vunpack.c.l.b16 %v2528
      %v2820 = vunpack.c.h.b16 %v2528
      %v2821 = vunpack.c.l.b16 %v2529
      %v2822 = vunpack.c.h.b16 %v2529
      %v2823 = vunpack.c.l.b16 %v2530
      %v2824 = vunpack.c.h.b16 %v2530
      %v2825 = vunpack.c.l.b16 %v2531
      %v2826 = vunpack.c.h.b16 %v2531
      %v2827 = vunpack.c.l.b16 %v2532
      %v2828 = vunpack.c.h.b16 %v2532
      %v2829 = vunpack.c.l.b16 %v2533
      %v2830 = vunpack.c.h.b16 %v2533
      %v2831 = vunpack.c.l.b16 %v2534
      %v2832 = vunpack.c.h.b16 %v2534
      %v2833 = vunpack.c.l.b16 %v2535
      %v2834 = vunpack.c.h.b16 %v2535
      %v2835 = vunpack.c.l.b16 %v2536
      %v2836 = vunpack.c.h.b16 %v2536
      %v2837 = vunpack.c.l.b16 %v2537
      %v2838 = vunpack.c.h.b16 %v2537
      %v2839 = vunpack.c.l.b16 %v2538
      %v2840 = vunpack.c.h.b16 %v2538
      %v2841 = vunpack.c.l.b16 %v2539
      %v2842 = vunpack.c.h.b16 %v2539
      %v2843 = vunpack.c.l.b16 %v2540
      %v2844 = vunpack.c.h.b16 %v2540
      %v2845 = vunpack.c.l.b16 %v2541
      %v2846 = vunpack.c.h.b16 %v2541
      %v2847 = vunpack.c.l.b16 %v2542
      %v2848 = vunpack.c.h.b16 %v2542
      %v2849 = vunpack.c.l.b16 %v2543
      %v2850 = vunpack.c.h.b16 %v2543
      %v2851 = vunpack.c.l.b16 %v2544
      %v2852 = vunpack.c.h.b16 %v2544
      %v2853 = vunpack.c.l.b16 %v2545
      %v2854 = vunpack.c.h.b16 %v2545
      %v2855 = vunpack.c.l.b16 %v2546
      %v2856 = vunpack.c.h.b16 %v2546
      %v2857 = vunpack.c.l.b16 %v2547
      %v2858 = vunpack.c.h.b16 %v2547
      %v2859 = vunpack.c.l.b16 %v2548
      %v2860 = vunpack.c.h.b16 %v2548
      %v2861 = vunpack.c.l.b16 %v2549
      %v2862 = vunpack.c.h.b16 %v2549
      %v2863 = vunpack.c.l.b16 %v2550
      %v2864 = vunpack.c.h.b16 %v2550
      %v2865 = vunpack.c.l.b16 %v2551
      %v2866 = vunpack.c.h.b16 %v2551
      %v2867 = vunpack.c.l.b16 %v2552
      %v2868 = vunpack.c.h.b16 %v2552
      %v2869 = vunpack.c.l.b16 %v2553
      %v2870 = vunpack.c.h.b16 %v2553
      %v2871 = vunpack.c.l.b16 %v2554
      %v2872 = vunpack.c.h.b16 %v2554
      %v2873 = vunpack.c.l.b16 %v2555
      %v2874 = vunpack.c.h.b16 %v2555
      %v2875 = vunpack.c.l.b16 %v2556
      %v2876 = vunpack.c.h.b16 %v2556
      %v2877 = vunpack.c.l.b16 %v2557
      %v2878 = vunpack.c.h.b16 %v2557
      %v2879 = vunpack.c.l.b16 %v2558
      %v2880 = vunpack.c.h.b16 %v2558
      %v2881 = vunpack.c.l.b16 %v2559
      %v2882 = vunpack.c.h.b16 %v2559
      %v2883 = vunpack.c.l.b16 %v2560
      %v2884 = vunpack.c.h.b16 %v2560
      %v2885 = vunpack.c.l.b16 %v2561
      %v2886 = vunpack.c.h.b16 %v2561
      %v2887 = vunpack.c.l.b16 %v2562
      %v2888 = vunpack.c.h.b16 %v2562
      %v2889 = vunpack.c.l.b16 %v2563
      %v2890 = vunpack.c.h.b16 %v2563
      %v2891 = vunpack.c.l.b16 %v2564
      %v2892 = vunpack.c.h.b16 %v2564
      %v2893 = vunpack.c.l.b16 %v2565
      %v2894 = vunpack.c.h.b16 %v2565
      %v2895 = vunpack.c.l.b16 %v2566
      %v2896 = vunpack.c.h.b16 %v2566
      %v2897 = vunpack.c.l.b16 %v2567
      %v2898 = vunpack.c.h.b16 %v2567
      %v2899 = vunpack.c.l.b16 %v2568
      %v2900 = vunpack.c.h.b16 %v2568
      %v2901 = vunpack.c.l.b16 %v2569
      %v2902 = vunpack.c.h.b16 %v2569
      %v2903 = vunpack.c.l.b16 %v2570
      %v2904 = vunpack.c.h.b16 %v2570
      %v2905 = vunpack.c.l.b16 %v2571
      %v2906 = vunpack.c.h.b16 %v2571
      %v2907 = vunpack.c.l.b16 %v2572
      %v2908 = vunpack.c.h.b16 %v2572
      %v2909 = vunpack.c.l.b16 %v2573
      %v2910 = vunpack.c.h.b16 %v2573
      %v2911 = vunpack.c.l.b16 %v2574
      %v2912 = vunpack.c.h.b16 %v2574
      %v2913 = vunpack.c.l.b16 %v2575
      %v2914 = vunpack.c.h.b16 %v2575
      %v2915 = vunpack.c.l.b16 %v2576
      %v2916 = vunpack.c.h.b16 %v2576
      %v2917 = vunpack.c.l.b16 %v2577
      %v2918 = vunpack.c.h.b16 %v2577
      %v2919 = vunpack.c.l.b16 %v2578
      %v2920 = vunpack.c.h.b16 %v2578
      %v2921 = vunpack.c.l.b16 %v2579
      %v2922 = vunpack.c.h.b16 %v2579
      %v2923 = vunpack.c.l.b16 %v2580
      %v2924 = vunpack.c.h.b16 %v2580
      %v2925 = vunpack.c.l.b16 %v2581
      %v2926 = vunpack.c.h.b16 %v2581
      %v2927 = vunpack.c.l.b16 %v2582
      %v2928 = vunpack.c.h.b16 %v2582
      %v2929 = vunpack.c.l.b16 %v2583
      %v2930 = vunpack.c.h.b16 %v2583
      %v2931 = vunpack.c.l.b16 %v2584
      %v2932 = vunpack.c.h.b16 %v2584
      %v2933 = vunpack.c.l.b16 %v2585
      %v2934 = vunpack.c.h.b16 %v2585
      %v2935 = vunpack.c.l.b16 %v2586
      %v2936 = vunpack.c.h.b16 %v2586
      %v2937 = vunpack.c.l.b16 %v2587
      %v2938 = vunpack.c.h.b16 %v2587
      %v2939 = vunpack.c.l.b16 %v2588
      %v2940 = vunpack.c.h.b16 %v2588
      %v2941 = vunpack.c.l.b16 %v2589
      %v2942 = vunpack.c.h.b16 %v2589
      %v2943 = vunpack.c.l.b16 %v2590
      %v2944 = vunpack.c.h.b16 %v2590
      %v2945 = vunpack.c.l.b16 %v2591
      %v2946 = vunpack.c.h.b16 %v2591
      %v2947 = vunpack.c.l.b16 %v2592
      %v2948 = vunpack.c.h.b16 %v2592
      %v2949 = vunpack.c.l.b16 %v2593
      %v2950 = vunpack.c.h.b16 %v2593
      %v2951 = vunpack.c.l.b16 %v2594
      %v2952 = vunpack.c.h.b16 %v2594
      %v2953 = vunpack.c.l.b16 %v2595
      %v2954 = vunpack.c.h.b16 %v2595
      %v2955 = vunpack.c.l.b16 %v2596
      %v2956 = vunpack.c.h.b16 %v2596
      %v2957 = vunpack.c.l.b16 %v2597
      %v2958 = vunpack.c.h.b16 %v2597
      %v2959 = vunpack.c.l.b16 %v2598
      %v2960 = vunpack.c.h.b16 %v2598
      %v2961 = vunpack.c.l.b16 %v2599
      %v2962 = vunpack.c.h.b16 %v2599
      %v2963 = vunpack.c.l.b16 %v2600
      %v2964 = vunpack.c.h.b16 %v2600
      %v2965 = vunpack.c.l.b16 %v2601
      %v2966 = vunpack.c.h.b16 %v2601
      %v2967 = vunpack.c.l.b16 %v2602
      %v2968 = vunpack.c.h.b16 %v2602
      %v2969 = vunpack.c.l.b16 %v2603
      %v2970 = vunpack.c.h.b16 %v2603
      %v2971 = vunpack.c.l.b16 %v2604
      %v2972 = vunpack.c.h.b16 %v2604
      %v2973 = vunpack.c.l.b16 %v2605
      %v2974 = vunpack.c.h.b16 %v2605
      %v2975 = vunpack.c.l.b16 %v2606
      %v2976 = vunpack.c.h.b16 %v2606
      %v2977 = vunpack.c.l.b16 %v2607
      %v2978 = vunpack.c.h.b16 %v2607
      %v2979 = vunpack.c.l.b16 %v2608
      %v2980 = vunpack.c.h.b16 %v2608
      %v2981 = vunpack.c.l.b16 %v2609
      %v2982 = vunpack.c.h.b16 %v2609
      %v2983 = vunpack.c.l.b16 %v2610
      %v2984 = vunpack.c.h.b16 %v2610
      %v2985 = vunpack.c.l.b16 %v2611
      %v2986 = vunpack.c.h.b16 %v2611
      %v2987 = vunpack.c.l.b16 %v2612
      %v2988 = vunpack.c.h.b16 %v2612
      %v2989 = vunpack.c.l.b16 %v2613
      %v2990 = vunpack.c.h.b16 %v2613
      %v2991 = vunpack.c.l.b16 %v2614
      %v2992 = vunpack.c.h.b16 %v2614
      %v2993 = vunpack.c.l.b16 %v2615
      %v2994 = vunpack.c.h.b16 %v2615
      %v2995 = vunpack.c.l.b16 %v2616
      %v2996 = vunpack.c.h.b16 %v2616
      %v2997 = vunpack.c.l.b16 %v2617
      %v2998 = vunpack.c.h.b16 %v2617
      %v2999 = vunpack.c.l.b16 %v2618
      %v3000 = vunpack.c.h.b16 %v2618
      %v3001 = vunpack.c.l.b16 %v2619
      %v3002 = vunpack.c.h.b16 %v2619
      %v3003 = vunpack.c.l.b16 %v2620
      %v3004 = vunpack.c.h.b16 %v2620
      %v3005 = vunpack.c.l.b16 %v2621
      %v3006 = vunpack.c.h.b16 %v2621
      %v3007 = vunpack.c.l.b16 %v2622
      %v3008 = vunpack.c.h.b16 %v2622
      %v3009 = vunpack.c.l.b16 %v2623
      %v3010 = vunpack.c.h.b16 %v2623
      %v3011 = vunpack.c.l.b16 %v2624
      %v3012 = vunpack.c.h.b16 %v2624
      %v3013 = vunpack.c.l.b16 %v2625
      %v3014 = vunpack.c.h.b16 %v2625
      %v3015 = vunpack.c.l.b16 %v2626
      %v3016 = vunpack.c.h.b16 %v2626
      %v3017 = vunpack.c.l.b16 %v2627
      %v3018 = vunpack.c.h.b16 %v2627
      %v3019 = vunpack.c.l.b16 %v2628
      %v3020 = vunpack.c.h.b16 %v2628
      %v3021 = vunpack.c.l.b16 %v2629
      %v3022 = vunpack.c.h.b16 %v2629
      %v3023 = vunpack.c.l.b16 %v2630
      %v3024 = vunpack.c.h.b16 %v2630
      %v3025 = vunpack.c.l.b16 %v2631
      %v3026 = vunpack.c.h.b16 %v2631
      %v3027 = vunpack.c.l.b16 %v2632
      %v3028 = vunpack.c.h.b16 %v2632
      %v3029 = vunpack.c.l.b16 %v2633
      %v3030 = vunpack.c.h.b16 %v2633
      %v3031 = vunpack.c.l.b16 %v2634
      %v3032 = vunpack.c.h.b16 %v2634
      %v3033 = vunpack.c.l.b16 %v2635
      %v3034 = vunpack.c.h.b16 %v2635
      %v3035 = vunpack.c.l.b16 %v2636
      %v3036 = vunpack.c.h.b16 %v2636
      %v3037 = vunpack.c.l.b16 %v2637
      %v3038 = vunpack.c.h.b16 %v2637
      %v3039 = vunpack.c.l.b16 %v2638
      %v3040 = vunpack.c.h.b16 %v2638
      %v3041 = vunpack.c.l.b16 %v2639
      %v3042 = vunpack.c.h.b16 %v2639
      %v3043 = vunpack.c.l.b16 %v2640
      %v3044 = vunpack.c.h.b16 %v2640
      %v3045 = vunpack.c.l.b16 %v2641
      %v3046 = vunpack.c.h.b16 %v2641
      %v3047 = vunpack.c.l.b16 %v2642
      %v3048 = vunpack.c.h.b16 %v2642
      %v3049 = vunpack.c.l.b16 %v2643
      %v3050 = vunpack.c.h.b16 %v2643
      %v3051 = vpack.c.b16 %v2799, %v2795
      %v3052 = vpack.c.b16 %v2800, %v2796
      %v3053 = vpack.c.b16 %v2801, %v2797
      %v3054 = vpack.c.b16 %v2802, %v2798
      %v3055 = vpack.c.b16 %v2807, %v2803
      %v3056 = vpack.c.b16 %v2808, %v2804
      %v3057 = vpack.c.b16 %v2809, %v2805
      %v3058 = vpack.c.b16 %v2810, %v2806
      %v3059 = vpack.c.b16 %v2815, %v2811
      %v3060 = vpack.c.b16 %v2816, %v2812
      %v3061 = vpack.c.b16 %v2817, %v2813
      %v3062 = vpack.c.b16 %v2818, %v2814
      %v3063 = vpack.c.b16 %v2823, %v2819
      %v3064 = vpack.c.b16 %v2824, %v2820
      %v3065 = vpack.c.b16 %v2825, %v2821
      %v3066 = vpack.c.b16 %v2826, %v2822
      %v3067 = vpack.c.b16 %v2831, %v2827
      %v3068 = vpack.c.b16 %v2832, %v2828
      %v3069 = vpack.c.b16 %v2833, %v2829
      %v3070 = vpack.c.b16 %v2834, %v2830
      %v3071 = vpack.c.b16 %v2839, %v2835
      %v3072 = vpack.c.b16 %v2840, %v2836
      %v3073 = vpack.c.b16 %v2841, %v2837
      %v3074 = vpack.c.b16 %v2842, %v2838
      %v3075 = vpack.c.b16 %v2847, %v2843
      %v3076 = vpack.c.b16 %v2848, %v2844
      %v3077 = vpack.c.b16 %v2849, %v2845
      %v3078 = vpack.c.b16 %v2850, %v2846
      %v3079 = vpack.c.b16 %v2855, %v2851
      %v3080 = vpack.c.b16 %v2856, %v2852
      %v3081 = vpack.c.b16 %v2857, %v2853
      %v3082 = vpack.c.b16 %v2858, %v2854
      %v3083 = vpack.c.b16 %v2863, %v2859
      %v3084 = vpack.c.b16 %v2864, %v2860
      %v3085 = vpack.c.b16 %v2865, %v2861
      %v3086 = vpack.c.b16 %v2866, %v2862
      %v3087 = vpack.c.b16 %v2871, %v2867
      %v3088 = vpack.c.b16 %v2872, %v2868
      %v3089 = vpack.c.b16 %v2873, %v2869
      %v3090 = vpack.c.b16 %v2874, %v2870
      %v3091 = vpack.c.b16 %v2879, %v2875
      %v3092 = vpack.c.b16 %v2880, %v2876
      %v3093 = vpack.c.b16 %v2881, %v2877
      %v3094 = vpack.c.b16 %v2882, %v2878
      %v3095 = vpack.c.b16 %v2887, %v2883
      %v3096 = vpack.c.b16 %v2888, %v2884
      %v3097 = vpack.c.b16 %v2889, %v2885
      %v3098 = vpack.c.b16 %v2890, %v2886
      %v3099 = vpack.c.b16 %v2895, %v2891
      %v3100 = vpack.c.b16 %v2896, %v2892
      %v3101 = vpack.c.b16 %v2897, %v2893
      %v3102 = vpack.c.b16 %v2898, %v2894
      %v3103 = vpack.c.b16 %v2903, %v2899
      %v3104 = vpack.c.b16 %v2904, %v2900
      %v3105 = vpack.c.b16 %v2905, %v2901
      %v3106 = vpack.c.b16 %v2906, %v2902
      %v3107 = vpack.c.b16 %v2911, %v2907
      %v3108 = vpack.c.b16 %v2912, %v2908
      %v3109 = vpack.c.b16 %v2913, %v2909
      %v3110 = vpack.c.b16 %v2914, %v2910
      %v3111 = vpack.c.b16 %v2919, %v2915
      %v3112 = vpack.c.b16 %v2920, %v2916
      %v3113 = vpack.c.b16 %v2921, %v2917
      %v3114 = vpack.c.b16 %v2922, %v2918
      %v3115 = vpack.c.b16 %v2927, %v2923
      %v3116 = vpack.c.b16 %v2928, %v2924
      %v3117 = vpack.c.b16 %v2929, %v2925
      %v3118 = vpack.c.b16 %v2930, %v2926
      %v3119 = vpack.c.b16 %v2935, %v2931
      %v3120 = vpack.c.b16 %v2936, %v2932
      %v3121 = vpack.c.b16 %v2937, %v2933
      %v3122 = vpack.c.b16 %v2938, %v2934
      %v3123 = vpack.c.b16 %v2943, %v2939
      %v3124 = vpack.c.b16 %v2944, %v2940
      %v3125 = vpack.c.b16 %v2945, %v2941
      %v3126 = vpack.c.b16 %v2946, %v2942
      %v3127 = vpack.c.b16 %v2951, %v2947
      %v3128 = vpack.c.b16 %v2952, %v2948
      %v3129 = vpack.c.b16 %v2953, %v2949
      %v3130 = vpack.c.b16 %v2954, %v2950
      %v3131 = vpack.c.b16 %v2959, %v2955
      %v3132 = vpack.c.b16 %v2960, %v2956
      %v3133 = vpack.c.b16 %v2961, %v2957
      %v3134 = vpack.c.b16 %v2962, %v2958
      %v3135 = vpack.c.b16 %v2967, %v2963
      %v3136 = vpack.c.b16 %v2968, %v2964
      %v3137 = vpack.c.b16 %v2969, %v2965
      %v3138 = vpack.c.b16 %v2970, %v2966
      %v3139 = vpack.c.b16 %v2975, %v2971
      %v3140 = vpack.c.b16 %v2976, %v2972
      %v3141 = vpack.c.b16 %v2977, %v2973
      %v3142 = vpack.c.b16 %v2978, %v2974
      %v3143 = vpack.c.b16 %v2983, %v2979
      %v3144 = vpack.c.b16 %v2984, %v2980
      %v3145 = vpack.c.b16 %v2985, %v2981
      %v3146 = vpack.c.b16 %v2986, %v2982
      %v3147 = vpack.c.b16 %v2991, %v2987
      %v3148 = vpack.c.b16 %v2992, %v2988
      %v3149 = vpack.c.b16 %v2993, %v2989
      %v3150 = vpack.c.b16 %v2994, %v2990
      %v3151 = vpack.c.b16 %v2999, %v2995
      %v3152 = vpack.c.b16 %v3000, %v2996
      %v3153 = vpack.c.b16 %v3001, %v2997
      %v3154 = vpack.c.b16 %v3002, %v2998
      %v3155 = vpack.c.b16 %v3007, %v3003
      %v3156 = vpack.c.b16 %v3008, %v3004
      %v3157 = vpack.c.b16 %v3009, %v3005
      %v3158 = vpack.c.b16 %v3010, %v3006
      %v3159 = vpack.c.b16 %v3015, %v3011
      %v3160 = vpack.c.b16 %v3016, %v3012
      %v3161 = vpack.c.b16 %v3017, %v3013
      %v3162 = vpack.c.b16 %v3018, %v3014
      %v3163 = vpack.c.b16 %v3023, %v3019
      %v3164 = vpack.c.b16 %v3024, %v3020
      %v3165 = vpack.c.b16 %v3025, %v3021
      %v3166 = vpack.c.b16 %v3026, %v3022
      %v3167 = vpack.c.b16 %v3031, %v3027
      %v3168 = vpack.c.b16 %v3032, %v3028
      %v3169 = vpack.c.b16 %v3033, %v3029
      %v3170 = vpack.c.b16 %v3034, %v3030
      %v3171 = vpack.c.b16 %v3039, %v3035
      %v3172 = vpack.c.b16 %v3040, %v3036
      %v3173 = vpack.c.b16 %v3041, %v3037
      %v3174 = vpack.c.b16 %v3042, %v3038
      %v3175 = vpack.c.b16 %v3047, %v3043
      %v3176 = vpack.c.b16 %v3048, %v3044
      %v3177 = vpack.c.b16 %v3049, %v3045
      %v3178 = vpack.c.b16 %v3050, %v3046
      %3307 = vmatprep.subr.bf16.mxu0 %v3052
      %3308 = vmatpush1.bf16.msra.mxu0 %v3051
      %3309 = vmatprep.subr.bf16.mxu0 %v3056
      %3310 = vmatpush1.bf16.msra.mxu0 %v3055
      %3311 = vmatprep.subr.bf16.mxu0 %v3060
      %3312 = vmatpush1.bf16.msra.mxu0 %v3059
      %3313 = vmatprep.subr.bf16.mxu0 %v3064
      %3314 = vmatpush1.bf16.msra.mxu0 %v3063
      %3315 = vmatprep.subr.bf16.mxu0 %v3068
      %3316 = vmatpush1.bf16.msra.mxu0 %v3067
      %3317 = vmatprep.subr.bf16.mxu0 %v3072
      %3318 = vmatpush1.bf16.msra.mxu0 %v3071
      %3319 = vmatprep.subr.bf16.mxu0 %v3076
      %3320 = vmatpush1.bf16.msra.mxu0 %v3075
      %3321 = vmatprep.subr.bf16.mxu0 %v3080
      %3322 = vmatpush1.bf16.msra.mxu0 %v3079
      %3323 = vmatprep.subr.bf16.mxu0 %v3084
      %3324 = vmatpush1.bf16.msra.mxu0 %v3083
      %3325 = vmatprep.subr.bf16.mxu0 %v3088
      %3326 = vmatpush1.bf16.msra.mxu0 %v3087
      %3327 = vmatprep.subr.bf16.mxu0 %v3092
      %3328 = vmatpush1.bf16.msra.mxu0 %v3091
      %3329 = vmatprep.subr.bf16.mxu0 %v3096
      %3330 = vmatpush1.bf16.msra.mxu0 %v3095
      %3331 = vmatprep.subr.bf16.mxu0 %v3100
      %3332 = vmatpush1.bf16.msra.mxu0 %v3099
      %3333 = vmatprep.subr.bf16.mxu0 %v3104
      %3334 = vmatpush1.bf16.msra.mxu0 %v3103
      %3335 = vmatprep.subr.bf16.mxu0 %v3108
      %3336 = vmatpush1.bf16.msra.mxu0 %v3107
      %3337 = vmatprep.subr.bf16.mxu0 %v3112
      %3338 = vmatpush1.bf16.msra.mxu0 %v3111
      %3339 = vmatprep.mubr.bf16.mxu0 %v2453
      %3340 = vmatmul.mubr.bf16.gmra.mrb[0].mxu0 %v2452
      %v3341 = vpop.f32.mrb[0].mxu0
      %v3342 = vadd.f32 %v2650, %v3341
      %v3343 = vpop.f32.mrb[0].mxu0
      %v3344 = vadd.f32 %v2654, %v3343
      %v3345 = vpop.f32.mrb[0].mxu0
      %v3346 = vadd.f32 %v2650, %v3345
      %v3347 = vpop.f32.mrb[0].mxu0
      %v3348 = vadd.f32 %v2654, %v3347
      %3349 = vmatprep.mubr.bf16.mxu0 %v2457
      %3350 = vmatmul.mubr.bf16.gmra.mrb[0].mxu0 %v2456
      %v3351 = vpop.f32.mrb[0].mxu0
      %v3352 = vadd.f32 %v2650, %v3351
      %v3353 = vpop.f32.mrb[0].mxu0
      %v3354 = vadd.f32 %v2654, %v3353
      %v3355 = vpop.f32.mrb[0].mxu0
      %v3356 = vadd.f32 %v2650, %v3355
      %v3357 = vpop.f32.mrb[0].mxu0
      %v3358 = vadd.f32 %v2654, %v3357
      %3359 = vmatprep.mubr.bf16.mxu0 %v2461
      %3360 = vmatmul.mubr.bf16.gmra.mrb[0].mxu0 %v2460
      %v3361 = vpop.f32.mrb[0].mxu0
      %v3362 = vadd.f32 %v2650, %v3361
      %v3363 = vpop.f32.mrb[0].mxu0
      %v3364 = vadd.f32 %v2654, %v3363
      %v3365 = vpop.f32.mrb[0].mxu0
      %v3366 = vadd.f32 %v2650, %v3365
      %v3367 = vpop.f32.mrb[0].mxu0
      %v3368 = vadd.f32 %v2654, %v3367
      %3369 = vmatprep.mubr.bf16.mxu0 %v2465
      %3370 = vmatmul.mubr.bf16.gmra.mrb[0].mxu0 %v2464
      %v3371 = vpop.f32.mrb[0].mxu0
      %v3372 = vadd.f32 %v2650, %v3371
      %v3373 = vpop.f32.mrb[0].mxu0
      %v3374 = vadd.f32 %v2654, %v3373
      %v3375 = vpop.f32.mrb[0].mxu0
      %v3376 = vadd.f32 %v2650, %v3375
      %v3377 = vpop.f32.mrb[0].mxu0
      %v3378 = vadd.f32 %v2654, %v3377
      %3379 = vmatprep.mubr.bf16.mxu0 %v2469
      %3380 = vmatmul.mubr.bf16.gmra.mrb[0].mxu0 %v2468
      %v3381 = vpop.f32.mrb[0].mxu0
      %v3382 = vadd.f32 %v2650, %v3381
      %v3383 = vpop.f32.mrb[0].mxu0
      %v3384 = vadd.f32 %v2654, %v3383
      %v3385 = vpop.f32.mrb[0].mxu0
      %v3386 = vadd.f32 %v2650, %v3385
      %v3387 = vpop.f32.mrb[0].mxu0
      %v3388 = vadd.f32 %v2654, %v3387
      %3389 = vmatprep.mubr.bf16.mxu0 %v2473
      %3390 = vmatmul.mubr.bf16.gmra.mrb[0].mxu0 %v2472
      %v3391 = vpop.f32.mrb[0].mxu0
      %v3392 = vadd.f32 %v2650, %v3391
      %v3393 = vpop.f32.mrb[0].mxu0
      %v3394 = vadd.f32 %v2654, %v3393
      %v3395 = vpop.f32.mrb[0].mxu0
      %v3396 = vadd.f32 %v2650, %v3395
      %v3397 = vpop.f32.mrb[0].mxu0
      %v3398 = vadd.f32 %v2654, %v3397
      %3399 = vmatprep.mubr.bf16.mxu0 %v2477
      %3400 = vmatmul.mubr.bf16.gmra.mrb[0].mxu0 %v2476
      %v3401 = vpop.f32.mrb[0].mxu0
      %v3402 = vadd.f32 %v2650, %v3401
      %v3403 = vpop.f32.mrb[0].mxu0
      %v3404 = vadd.f32 %v2654, %v3403
      %v3405 = vpop.f32.mrb[0].mxu0
      %v3406 = vadd.f32 %v2650, %v3405
      %v3407 = vpop.f32.mrb[0].mxu0
      %v3408 = vadd.f32 %v2654, %v3407
      %3409 = vmatprep.mubr.bf16.mxu0 %v2481
      %3410 = vmatmul.mubr.bf16.gmra.mrb[0].mxu0 %v2480
      %v3411 = vpop.f32.mrb[0].mxu0
      %v3412 = vadd.f32 %v2650, %v3411
      %v3413 = vpop.f32.mrb[0].mxu0
      %v3414 = vadd.f32 %v2654, %v3413
      %v3415 = vpop.f32.mrb[0].mxu0
      %v3416 = vadd.f32 %v2650, %v3415
      %v3417 = vpop.f32.mrb[0].mxu0
      %v3418 = vadd.f32 %v2654, %v3417
      %3419 = vmatprep.mubr.bf16.mxu0 %v2485
      %3420 = vmatmul.mubr.bf16.gmra.mrb[0].mxu0 %v2484
      %v3421 = vpop.f32.mrb[0].mxu0
      %v3422 = vadd.f32 %v2650, %v3421
      %v3423 = vpop.f32.mrb[0].mxu0
      %v3424 = vadd.f32 %v2654, %v3423
      %v3425 = vpop.f32.mrb[0].mxu0
      %v3426 = vadd.f32 %v2650, %v3425
      %v3427 = vpop.f32.mrb[0].mxu0
      %v3428 = vadd.f32 %v2654, %v3427
      %3429 = vmatprep.mubr.bf16.mxu0 %v2489
      %3430 = vmatmul.mubr.bf16.gmra.mrb[0].mxu0 %v2488
      %v3431 = vpop.f32.mrb[0].mxu0
      %v3432 = vadd.f32 %v2650, %v3431
      %v3433 = vpop.f32.mrb[0].mxu0
      %v3434 = vadd.f32 %v2654, %v3433
      %v3435 = vpop.f32.mrb[0].mxu0
      %v3436 = vadd.f32 %v2650, %v3435
      %v3437 = vpop.f32.mrb[0].mxu0
      %v3438 = vadd.f32 %v2654, %v3437
      %3439 = vmatprep.mubr.bf16.mxu0 %v2493
      %3440 = vmatmul.mubr.bf16.gmra.mrb[0].mxu0 %v2492
      %v3441 = vpop.f32.mrb[0].mxu0
      %v3442 = vadd.f32 %v2650, %v3441
      %v3443 = vpop.f32.mrb[0].mxu0
      %v3444 = vadd.f32 %v2654, %v3443
      %v3445 = vpop.f32.mrb[0].mxu0
      %v3446 = vadd.f32 %v2650, %v3445
      %v3447 = vpop.f32.mrb[0].mxu0
      %v3448 = vadd.f32 %v2654, %v3447
      %3449 = vmatprep.mubr.bf16.mxu0 %v2497
      %3450 = vmatmul.mubr.bf16.gmra.mrb[0].mxu0 %v2496
      %v3451 = vpop.f32.mrb[0].mxu0
      %v3452 = vadd.f32 %v2650, %v3451
      %v3453 = vpop.f32.mrb[0].mxu0
      %v3454 = vadd.f32 %v2654, %v3453
      %v3455 = vpop.f32.mrb[0].mxu0
      %v3456 = vadd.f32 %v2650, %v3455
      %v3457 = vpop.f32.mrb[0].mxu0
      %v3458 = vadd.f32 %v2654, %v3457
      %3459 = vmatprep.mubr.bf16.mxu0 %v2501
      %3460 = vmatmul.mubr.bf16.gmra.mrb[0].mxu0 %v2500
      %v3461 = vpop.f32.mrb[0].mxu0
      %v3462 = vadd.f32 %v2650, %v3461
      %v3463 = vpop.f32.mrb[0].mxu0
      %v3464 = vadd.f32 %v2654, %v3463
      %v3465 = vpop.f32.mrb[0].mxu0
      %v3466 = vadd.f32 %v2650, %v3465
      %v3467 = vpop.f32.mrb[0].mxu0
      %v3468 = vadd.f32 %v2654, %v3467
      %3469 = vmatprep.mubr.bf16.mxu0 %v2505
      %3470 = vmatmul.mubr.bf16.gmra.mrb[0].mxu0 %v2504
      %v3471 = vpop.f32.mrb[0].mxu0
      %v3472 = vadd.f32 %v2650, %v3471
      %v3473 = vpop.f32.mrb[0].mxu0
      %v3474 = vadd.f32 %v2654, %v3473
      %v3475 = vpop.f32.mrb[0].mxu0
      %v3476 = vadd.f32 %v2650, %v3475
      %v3477 = vpop.f32.mrb[0].mxu0
      %v3478 = vadd.f32 %v2654, %v3477
      %3479 = vmatprep.mubr.bf16.mxu0 %v2509
      %3480 = vmatmul.mubr.bf16.gmra.mrb[0].mxu0 %v2508
      %v3481 = vpop.f32.mrb[0].mxu0
      %v3482 = vadd.f32 %v2650, %v3481
      %v3483 = vpop.f32.mrb[0].mxu0
      %v3484 = vadd.f32 %v2654, %v3483
      %v3485 = vpop.f32.mrb[0].mxu0
      %v3486 = vadd.f32 %v2650, %v3485
      %v3487 = vpop.f32.mrb[0].mxu0
      %v3488 = vadd.f32 %v2654, %v3487
      %3489 = vmatprep.mubr.bf16.mxu0 %v2513
      %3490 = vmatmul.mubr.bf16.gmra.mrb[0].mxu0 %v2512
      %v3491 = vpop.f32.mrb[0].mxu0
      %v3492 = vadd.f32 %v2650, %v3491
      %v3493 = vpop.f32.mrb[0].mxu0
      %v3494 = vadd.f32 %v2654, %v3493
      %v3495 = vpop.f32.mrb[0].mxu0
      %v3496 = vadd.f32 %v2650, %v3495
      %v3497 = vpop.f32.mrb[0].mxu0
      %v3498 = vadd.f32 %v2654, %v3497
      %3499 = vdwg.mxu0
      %3500 = vmatprep.subr.bf16.mxu0 %v3116
      %3501 = vmatpush1.bf16.msra.mxu0 %v3115
      %3502 = vmatprep.subr.bf16.mxu0 %v3120
      %3503 = vmatpush1.bf16.msra.mxu0 %v3119
      %3504 = vmatprep.subr.bf16.mxu0 %v3124
      %3505 = vmatpush1.bf16.msra.mxu0 %v3123
      %3506 = vmatprep.subr.bf16.mxu0 %v3128
      %3507 = vmatpush1.bf16.msra.mxu0 %v3127
      %3508 = vmatprep.subr.bf16.mxu0 %v3132
      %3509 = vmatpush1.bf16.msra.mxu0 %v3131
      %3510 = vmatprep.subr.bf16.mxu0 %v3136
      %3511 = vmatpush1.bf16.msra.mxu0 %v3135
      %3512 = vmatprep.subr.bf16.mxu0 %v3140
      %3513 = vmatpush1.bf16.msra.mxu0 %v3139
      %3514 = vmatprep.subr.bf16.mxu0 %v3144
      %3515 = vmatpush1.bf16.msra.mxu0 %v3143
      %3516 = vmatprep.subr.bf16.mxu0 %v3148
      %3517 = vmatpush1.bf16.msra.mxu0 %v3147
      %3518 = vmatprep.subr.bf16.mxu0 %v3152
      %3519 = vmatpush1.bf16.msra.mxu0 %v3151
      %3520 = vmatprep.subr.bf16.mxu0 %v3156
      %3521 = vmatpush1.bf16.msra.mxu0 %v3155
      %3522 = vmatprep.subr.bf16.mxu0 %v3160
      %3523 = vmatpush1.bf16.msra.mxu0 %v3159
      %3524 = vmatprep.subr.bf16.mxu0 %v3164
      %3525 = vmatpush1.bf16.msra.mxu0 %v3163
      %3526 = vmatprep.subr.bf16.mxu0 %v3168
      %3527 = vmatpush1.bf16.msra.mxu0 %v3167
      %3528 = vmatprep.subr.bf16.mxu0 %v3172
      %3529 = vmatpush1.bf16.msra.mxu0 %v3171
      %3530 = vmatprep.subr.bf16.mxu0 %v3176
      %3531 = vmatpush1.bf16.msra.mxu0 %v3175
      %3532 = vmatprep.mubr.bf16.mxu0 %v2455
      %3533 = vmatmul.mubr.bf16.gmra.mrb[0].mxu0 %v2454
      %v3534 = vpop.f32.mrb[0].mxu0
      %v3535 = vadd.f32 %v3342, %v3534
      %v3536 = vpop.f32.mrb[0].mxu0
      %v3537 = vadd.f32 %v3344, %v3536
      %v3538 = vpop.f32.mrb[0].mxu0
      %v3539 = vadd.f32 %v3346, %v3538
      %v3540 = vpop.f32.mrb[0].mxu0
      %v3541 = vadd.f32 %v3348, %v3540
      %3542 = vmatprep.mubr.bf16.mxu0 %v2459
      %3543 = vmatmul.mubr.bf16.gmra.mrb[0].mxu0 %v2458
      %v3544 = vpop.f32.mrb[0].mxu0
      %v3545 = vadd.f32 %v3352, %v3544
      %v3546 = vpop.f32.mrb[0].mxu0
      %v3547 = vadd.f32 %v3354, %v3546
      %v3548 = vpop.f32.mrb[0].mxu0
      %v3549 = vadd.f32 %v3356, %v3548
      %v3550 = vpop.f32.mrb[0].mxu0
      %v3551 = vadd.f32 %v3358, %v3550
      %3552 = vmatprep.mubr.bf16.mxu0 %v2463
      %3553 = vmatmul.mubr.bf16.gmra.mrb[0].mxu0 %v2462
      %v3554 = vpop.f32.mrb[0].mxu0
      %v3555 = vadd.f32 %v3362, %v3554
      %v3556 = vpop.f32.mrb[0].mxu0
      %v3557 = vadd.f32 %v3364, %v3556
      %v3558 = vpop.f32.mrb[0].mxu0
      %v3559 = vadd.f32 %v3366, %v3558
      %v3560 = vpop.f32.mrb[0].mxu0
      %v3561 = vadd.f32 %v3368, %v3560
      %3562 = vmatprep.mubr.bf16.mxu0 %v2467
      %3563 = vmatmul.mubr.bf16.gmra.mrb[0].mxu0 %v2466
      %v3564 = vpop.f32.mrb[0].mxu0
      %v3565 = vadd.f32 %v3372, %v3564
      %v3566 = vpop.f32.mrb[0].mxu0
      %v3567 = vadd.f32 %v3374, %v3566
      %v3568 = vpop.f32.mrb[0].mxu0
      %v3569 = vadd.f32 %v3376, %v3568
      %v3570 = vpop.f32.mrb[0].mxu0
      %v3571 = vadd.f32 %v3378, %v3570
      %3572 = vmatprep.mubr.bf16.mxu0 %v2471
      %3573 = vmatmul.mubr.bf16.gmra.mrb[0].mxu0 %v2470
      %v3574 = vpop.f32.mrb[0].mxu0
      %v3575 = vadd.f32 %v3382, %v3574
      %v3576 = vpop.f32.mrb[0].mxu0
      %v3577 = vadd.f32 %v3384, %v3576
      %v3578 = vpop.f32.mrb[0].mxu0
      %v3579 = vadd.f32 %v3386, %v3578
      %v3580 = vpop.f32.mrb[0].mxu0
      %v3581 = vadd.f32 %v3388, %v3580
      %3582 = vmatprep.mubr.bf16.mxu0 %v2475
      %3583 = vmatmul.mubr.bf16.gmra.mrb[0].mxu0 %v2474
      %v3584 = vpop.f32.mrb[0].mxu0
      %v3585 = vadd.f32 %v3392, %v3584
      %v3586 = vpop.f32.mrb[0].mxu0
      %v3587 = vadd.f32 %v3394, %v3586
      %v3588 = vpop.f32.mrb[0].mxu0
      %v3589 = vadd.f32 %v3396, %v3588
      %v3590 = vpop.f32.mrb[0].mxu0
      %v3591 = vadd.f32 %v3398, %v3590
      %3592 = vmatprep.mubr.bf16.mxu0 %v2479
      %3593 = vmatmul.mubr.bf16.gmra.mrb[0].mxu0 %v2478
      %v3594 = vpop.f32.mrb[0].mxu0
      %v3595 = vadd.f32 %v3402, %v3594
      %v3596 = vpop.f32.mrb[0].mxu0
      %v3597 = vadd.f32 %v3404, %v3596
      %v3598 = vpop.f32.mrb[0].mxu0
      %v3599 = vadd.f32 %v3406, %v3598
      %v3600 = vpop.f32.mrb[0].mxu0
      %v3601 = vadd.f32 %v3408, %v3600
      %3602 = vmatprep.mubr.bf16.mxu0 %v2483
      %3603 = vmatmul.mubr.bf16.gmra.mrb[0].mxu0 %v2482
      %v3604 = vpop.f32.mrb[0].mxu0
      %v3605 = vadd.f32 %v3412, %v3604
      %v3606 = vpop.f32.mrb[0].mxu0
      %v3607 = vadd.f32 %v3414, %v3606
      %v3608 = vpop.f32.mrb[0].mxu0
      %v3609 = vadd.f32 %v3416, %v3608
      %v3610 = vpop.f32.mrb[0].mxu0
      %v3611 = vadd.f32 %v3418, %v3610
      %3612 = vmatprep.mubr.bf16.mxu0 %v2487
      %3613 = vmatmul.mubr.bf16.gmra.mrb[0].mxu0 %v2486
      %v3614 = vpop.f32.mrb[0].mxu0
      %v3615 = vadd.f32 %v3422, %v3614
      %v3616 = vpop.f32.mrb[0].mxu0
      %v3617 = vadd.f32 %v3424, %v3616
      %v3618 = vpop.f32.mrb[0].mxu0
      %v3619 = vadd.f32 %v3426, %v3618
      %v3620 = vpop.f32.mrb[0].mxu0
      %v3621 = vadd.f32 %v3428, %v3620
      %3622 = vmatprep.mubr.bf16.mxu0 %v2491
      %3623 = vmatmul.mubr.bf16.gmra.mrb[0].mxu0 %v2490
      %v3624 = vpop.f32.mrb[0].mxu0
      %v3625 = vadd.f32 %v3432, %v3624
      %v3626 = vpop.f32.mrb[0].mxu0
      %v3627 = vadd.f32 %v3434, %v3626
      %v3628 = vpop.f32.mrb[0].mxu0
      %v3629 = vadd.f32 %v3436, %v3628
      %v3630 = vpop.f32.mrb[0].mxu0
      %v3631 = vadd.f32 %v3438, %v3630
      %3632 = vmatprep.mubr.bf16.mxu0 %v2495
      %3633 = vmatmul.mubr.bf16.gmra.mrb[0].mxu0 %v2494
      %v3634 = vpop.f32.mrb[0].mxu0
      %v3635 = vadd.f32 %v3442, %v3634
      %v3636 = vpop.f32.mrb[0].mxu0
      %v3637 = vadd.f32 %v3444, %v3636
      %v3638 = vpop.f32.mrb[0].mxu0
      %v3639 = vadd.f32 %v3446, %v3638
      %v3640 = vpop.f32.mrb[0].mxu0
      %v3641 = vadd.f32 %v3448, %v3640
      %3642 = vmatprep.mubr.bf16.mxu0 %v2499
      %3643 = vmatmul.mubr.bf16.gmra.mrb[0].mxu0 %v2498
      %v3644 = vpop.f32.mrb[0].mxu0
      %v3645 = vadd.f32 %v3452, %v3644
      %v3646 = vpop.f32.mrb[0].mxu0
      %v3647 = vadd.f32 %v3454, %v3646
      %v3648 = vpop.f32.mrb[0].mxu0
      %v3649 = vadd.f32 %v3456, %v3648
      %v3650 = vpop.f32.mrb[0].mxu0
      %v3651 = vadd.f32 %v3458, %v3650
      %3652 = vmatprep.mubr.bf16.mxu0 %v2503
      %3653 = vmatmul.mubr.bf16.gmra.mrb[0].mxu0 %v2502
      %v3654 = vpop.f32.mrb[0].mxu0
      %v3655 = vadd.f32 %v3462, %v3654
      %v3656 = vpop.f32.mrb[0].mxu0
      %v3657 = vadd.f32 %v3464, %v3656
      %v3658 = vpop.f32.mrb[0].mxu0
      %v3659 = vadd.f32 %v3466, %v3658
      %v3660 = vpop.f32.mrb[0].mxu0
      %v3661 = vadd.f32 %v3468, %v3660
      %3662 = vmatprep.mubr.bf16.mxu0 %v2507
      %3663 = vmatmul.mubr.bf16.gmra.mrb[0].mxu0 %v2506
      %v3664 = vpop.f32.mrb[0].mxu0
      %v3665 = vadd.f32 %v3472, %v3664
      %v3666 = vpop.f32.mrb[0].mxu0
      %v3667 = vadd.f32 %v3474, %v3666
      %v3668 = vpop.f32.mrb[0].mxu0
      %v3669 = vadd.f32 %v3476, %v3668
      %v3670 = vpop.f32.mrb[0].mxu0
      %v3671 = vadd.f32 %v3478, %v3670
      %3672 = vmatprep.mubr.bf16.mxu0 %v2511
      %3673 = vmatmul.mubr.bf16.gmra.mrb[0].mxu0 %v2510
      %v3674 = vpop.f32.mrb[0].mxu0
      %v3675 = vadd.f32 %v3482, %v3674
      %v3676 = vpop.f32.mrb[0].mxu0
      %v3677 = vadd.f32 %v3484, %v3676
      %v3678 = vpop.f32.mrb[0].mxu0
      %v3679 = vadd.f32 %v3486, %v3678
      %v3680 = vpop.f32.mrb[0].mxu0
      %v3681 = vadd.f32 %v3488, %v3680
      %3682 = vmatprep.mubr.bf16.mxu0 %v2515
      %3683 = vmatmul.mubr.bf16.gmra.mrb[0].mxu0 %v2514
      %v3684 = vpop.f32.mrb[0].mxu0
      %v3685 = vadd.f32 %v3492, %v3684
      %v3686 = vpop.f32.mrb[0].mxu0
      %v3687 = vadd.f32 %v3494, %v3686
      %v3688 = vpop.f32.mrb[0].mxu0
      %v3689 = vadd.f32 %v3496, %v3688
      %v3690 = vpop.f32.mrb[0].mxu0
      %v3691 = vadd.f32 %v3498, %v3690
      %3692 = vdwg.mxu0
      %3693 = vmatprep.subr.bf16.mxu0 %v3054
      %3694 = vmatpush1.bf16.msra.mxu0 %v3053
      %3695 = vmatprep.subr.bf16.mxu0 %v3058
      %3696 = vmatpush1.bf16.msra.mxu0 %v3057
      %3697 = vmatprep.subr.bf16.mxu0 %v3062
      %3698 = vmatpush1.bf16.msra.mxu0 %v3061
      %3699 = vmatprep.subr.bf16.mxu0 %v3066
      %3700 = vmatpush1.bf16.msra.mxu0 %v3065
      %3701 = vmatprep.subr.bf16.mxu0 %v3070
      %3702 = vmatpush1.bf16.msra.mxu0 %v3069
      %3703 = vmatprep.subr.bf16.mxu0 %v3074
      %3704 = vmatpush1.bf16.msra.mxu0 %v3073
      %3705 = vmatprep.subr.bf16.mxu0 %v3078
      %3706 = vmatpush1.bf16.msra.mxu0 %v3077
      %3707 = vmatprep.subr.bf16.mxu0 %v3082
      %3708 = vmatpush1.bf16.msra.mxu0 %v3081
      %3709 = vmatprep.subr.bf16.mxu0 %v3086
      %3710 = vmatpush1.bf16.msra.mxu0 %v3085
      %3711 = vmatprep.subr.bf16.mxu0 %v3090
      %3712 = vmatpush1.bf16.msra.mxu0 %v3089
      %3713 = vmatprep.subr.bf16.mxu0 %v3094
      %3714 = vmatpush1.bf16.msra.mxu0 %v3093
      %3715 = vmatprep.subr.bf16.mxu0 %v3098
      %3716 = vmatpush1.bf16.msra.mxu0 %v3097
      %3717 = vmatprep.subr.bf16.mxu0 %v3102
      %3718 = vmatpush1.bf16.msra.mxu0 %v3101
      %3719 = vmatprep.subr.bf16.mxu0 %v3106
      %3720 = vmatpush1.bf16.msra.mxu0 %v3105
      %3721 = vmatprep.subr.bf16.mxu0 %v3110
      %3722 = vmatpush1.bf16.msra.mxu0 %v3109
      %3723 = vmatprep.subr.bf16.mxu0 %v3114
      %3724 = vmatpush1.bf16.msra.mxu0 %v3113
      %3725 = vmatprep.mubr.bf16.mxu0 %v2453
      %3726 = vmatmul.mubr.bf16.gmra.mrb[0].mxu0 %v2452
      %v3727 = vpop.f32.mrb[0].mxu0
      %v3728 = vadd.f32 %v2658, %v3727
      %v3729 = vpop.f32.mrb[0].mxu0
      %v3730 = vadd.f32 %v2662, %v3729
      %v3731 = vpop.f32.mrb[0].mxu0
      %v3732 = vadd.f32 %v2658, %v3731
      %v3733 = vpop.f32.mrb[0].mxu0
      %v3734 = vadd.f32 %v2662, %v3733
      %3735 = vmatprep.mubr.bf16.mxu0 %v2457
      %3736 = vmatmul.mubr.bf16.gmra.mrb[0].mxu0 %v2456
      %v3737 = vpop.f32.mrb[0].mxu0
      %v3738 = vadd.f32 %v2658, %v3737
      %v3739 = vpop.f32.mrb[0].mxu0
      %v3740 = vadd.f32 %v2662, %v3739
      %v3741 = vpop.f32.mrb[0].mxu0
      %v3742 = vadd.f32 %v2658, %v3741
      %v3743 = vpop.f32.mrb[0].mxu0
      %v3744 = vadd.f32 %v2662, %v3743
      %3745 = vmatprep.mubr.bf16.mxu0 %v2461
      %3746 = vmatmul.mubr.bf16.gmra.mrb[0].mxu0 %v2460
      %v3747 = vpop.f32.mrb[0].mxu0
      %v3748 = vadd.f32 %v2658, %v3747
      %v3749 = vpop.f32.mrb[0].mxu0
      %v3750 = vadd.f32 %v2662, %v3749
      %v3751 = vpop.f32.mrb[0].mxu0
      %v3752 = vadd.f32 %v2658, %v3751
      %v3753 = vpop.f32.mrb[0].mxu0
      %v3754 = vadd.f32 %v2662, %v3753
      %3755 = vmatprep.mubr.bf16.mxu0 %v2465
      %3756 = vmatmul.mubr.bf16.gmra.mrb[0].mxu0 %v2464
      %v3757 = vpop.f32.mrb[0].mxu0
      %v3758 = vadd.f32 %v2658, %v3757
      %v3759 = vpop.f32.mrb[0].mxu0
      %v3760 = vadd.f32 %v2662, %v3759
      %v3761 = vpop.f32.mrb[0].mxu0
      %v3762 = vadd.f32 %v2658, %v3761
      %v3763 = vpop.f32.mrb[0].mxu0
      %v3764 = vadd.f32 %v2662, %v3763
      %3765 = vmatprep.mubr.bf16.mxu0 %v2469
      %3766 = vmatmul.mubr.bf16.gmra.mrb[0].mxu0 %v2468
      %v3767 = vpop.f32.mrb[0].mxu0
      %v3768 = vadd.f32 %v2658, %v3767
      %v3769 = vpop.f32.mrb[0].mxu0
      %v3770 = vadd.f32 %v2662, %v3769
      %v3771 = vpop.f32.mrb[0].mxu0
      %v3772 = vadd.f32 %v2658, %v3771
      %v3773 = vpop.f32.mrb[0].mxu0
      %v3774 = vadd.f32 %v2662, %v3773
      %3775 = vmatprep.mubr.bf16.mxu0 %v2473
      %3776 = vmatmul.mubr.bf16.gmra.mrb[0].mxu0 %v2472
      %v3777 = vpop.f32.mrb[0].mxu0
      %v3778 = vadd.f32 %v2658, %v3777
      %v3779 = vpop.f32.mrb[0].mxu0
      %v3780 = vadd.f32 %v2662, %v3779
      %v3781 = vpop.f32.mrb[0].mxu0
      %v3782 = vadd.f32 %v2658, %v3781
      %v3783 = vpop.f32.mrb[0].mxu0
      %v3784 = vadd.f32 %v2662, %v3783
      %3785 = vmatprep.mubr.bf16.mxu0 %v2477
      %3786 = vmatmul.mubr.bf16.gmra.mrb[0].mxu0 %v2476
      %v3787 = vpop.f32.mrb[0].mxu0
      %v3788 = vadd.f32 %v2658, %v3787
      %v3789 = vpop.f32.mrb[0].mxu0
      %v3790 = vadd.f32 %v2662, %v3789
      %v3791 = vpop.f32.mrb[0].mxu0
      %v3792 = vadd.f32 %v2658, %v3791
      %v3793 = vpop.f32.mrb[0].mxu0
      %v3794 = vadd.f32 %v2662, %v3793
      %3795 = vmatprep.mubr.bf16.mxu0 %v2481
      %3796 = vmatmul.mubr.bf16.gmra.mrb[0].mxu0 %v2480
      %v3797 = vpop.f32.mrb[0].mxu0
      %v3798 = vadd.f32 %v2658, %v3797
      %v3799 = vpop.f32.mrb[0].mxu0
      %v3800 = vadd.f32 %v2662, %v3799
      %v3801 = vpop.f32.mrb[0].mxu0
      %v3802 = vadd.f32 %v2658, %v3801
      %v3803 = vpop.f32.mrb[0].mxu0
      %v3804 = vadd.f32 %v2662, %v3803
      %3805 = vmatprep.mubr.bf16.mxu0 %v2485
      %3806 = vmatmul.mubr.bf16.gmra.mrb[0].mxu0 %v2484
      %v3807 = vpop.f32.mrb[0].mxu0
      %v3808 = vadd.f32 %v2658, %v3807
      %v3809 = vpop.f32.mrb[0].mxu0
      %v3810 = vadd.f32 %v2662, %v3809
      %v3811 = vpop.f32.mrb[0].mxu0
      %v3812 = vadd.f32 %v2658, %v3811
      %v3813 = vpop.f32.mrb[0].mxu0
      %v3814 = vadd.f32 %v2662, %v3813
      %3815 = vmatprep.mubr.bf16.mxu0 %v2489
      %3816 = vmatmul.mubr.bf16.gmra.mrb[0].mxu0 %v2488
      %v3817 = vpop.f32.mrb[0].mxu0
      %v3818 = vadd.f32 %v2658, %v3817
      %v3819 = vpop.f32.mrb[0].mxu0
      %v3820 = vadd.f32 %v2662, %v3819
      %v3821 = vpop.f32.mrb[0].mxu0
      %v3822 = vadd.f32 %v2658, %v3821
      %v3823 = vpop.f32.mrb[0].mxu0
      %v3824 = vadd.f32 %v2662, %v3823
      %3825 = vmatprep.mubr.bf16.mxu0 %v2493
      %3826 = vmatmul.mubr.bf16.gmra.mrb[0].mxu0 %v2492
      %v3827 = vpop.f32.mrb[0].mxu0
      %v3828 = vadd.f32 %v2658, %v3827
      %v3829 = vpop.f32.mrb[0].mxu0
      %v3830 = vadd.f32 %v2662, %v3829
      %v3831 = vpop.f32.mrb[0].mxu0
      %v3832 = vadd.f32 %v2658, %v3831
      %v3833 = vpop.f32.mrb[0].mxu0
      %v3834 = vadd.f32 %v2662, %v3833
      %3835 = vmatprep.mubr.bf16.mxu0 %v2497
      %3836 = vmatmul.mubr.bf16.gmra.mrb[0].mxu0 %v2496
      %v3837 = vpop.f32.mrb[0].mxu0
      %v3838 = vadd.f32 %v2658, %v3837
      %v3839 = vpop.f32.mrb[0].mxu0
      %v3840 = vadd.f32 %v2662, %v3839
      %v3841 = vpop.f32.mrb[0].mxu0
      %v3842 = vadd.f32 %v2658, %v3841
      %v3843 = vpop.f32.mrb[0].mxu0
      %v3844 = vadd.f32 %v2662, %v3843
      %3845 = vmatprep.mubr.bf16.mxu0 %v2501
      %3846 = vmatmul.mubr.bf16.gmra.mrb[0].mxu0 %v2500
      %v3847 = vpop.f32.mrb[0].mxu0
      %v3848 = vadd.f32 %v2658, %v3847
      %v3849 = vpop.f32.mrb[0].mxu0
      %v3850 = vadd.f32 %v2662, %v3849
      %v3851 = vpop.f32.mrb[0].mxu0
      %v3852 = vadd.f32 %v2658, %v3851
      %v3853 = vpop.f32.mrb[0].mxu0
      %v3854 = vadd.f32 %v2662, %v3853
      %3855 = vmatprep.mubr.bf16.mxu0 %v2505
      %3856 = vmatmul.mubr.bf16.gmra.mrb[0].mxu0 %v2504
      %v3857 = vpop.f32.mrb[0].mxu0
      %v3858 = vadd.f32 %v2658, %v3857
      %v3859 = vpop.f32.mrb[0].mxu0
      %v3860 = vadd.f32 %v2662, %v3859
      %v3861 = vpop.f32.mrb[0].mxu0
      %v3862 = vadd.f32 %v2658, %v3861
      %v3863 = vpop.f32.mrb[0].mxu0
      %v3864 = vadd.f32 %v2662, %v3863
      %3865 = vmatprep.mubr.bf16.mxu0 %v2509
      %3866 = vmatmul.mubr.bf16.gmra.mrb[0].mxu0 %v2508
      %v3867 = vpop.f32.mrb[0].mxu0
      %v3868 = vadd.f32 %v2658, %v3867
      %v3869 = vpop.f32.mrb[0].mxu0
      %v3870 = vadd.f32 %v2662, %v3869
      %v3871 = vpop.f32.mrb[0].mxu0
      %v3872 = vadd.f32 %v2658, %v3871
      %v3873 = vpop.f32.mrb[0].mxu0
      %v3874 = vadd.f32 %v2662, %v3873
      %3875 = vmatprep.mubr.bf16.mxu0 %v2513
      %3876 = vmatmul.mubr.bf16.gmra.mrb[0].mxu0 %v2512
      %v3877 = vpop.f32.mrb[0].mxu0
      %v3878 = vadd.f32 %v2658, %v3877
      %v3879 = vpop.f32.mrb[0].mxu0
      %v3880 = vadd.f32 %v2662, %v3879
      %v3881 = vpop.f32.mrb[0].mxu0
      %v3882 = vadd.f32 %v2658, %v3881
      %v3883 = vpop.f32.mrb[0].mxu0
      %v3884 = vadd.f32 %v2662, %v3883
      %3885 = vdwg.mxu0
      %3886 = vmatprep.subr.bf16.mxu0 %v3118
      %3887 = vmatpush1.bf16.msra.mxu0 %v3117
      %3888 = vmatprep.subr.bf16.mxu0 %v3122
      %3889 = vmatpush1.bf16.msra.mxu0 %v3121
      %3890 = vmatprep.subr.bf16.mxu0 %v3126
      %3891 = vmatpush1.bf16.msra.mxu0 %v3125
      %3892 = vmatprep.subr.bf16.mxu0 %v3130
      %3893 = vmatpush1.bf16.msra.mxu0 %v3129
      %3894 = vmatprep.subr.bf16.mxu0 %v3134
      %3895 = vmatpush1.bf16.msra.mxu0 %v3133
      %3896 = vmatprep.subr.bf16.mxu0 %v3138
      %3897 = vmatpush1.bf16.msra.mxu0 %v3137
      %3898 = vmatprep.subr.bf16.mxu0 %v3142
      %3899 = vmatpush1.bf16.msra.mxu0 %v3141
      %3900 = vmatprep.subr.bf16.mxu0 %v3146
      %3901 = vmatpush1.bf16.msra.mxu0 %v3145
      %3902 = vmatprep.subr.bf16.mxu0 %v3150
      %3903 = vmatpush1.bf16.msra.mxu0 %v3149
      %3904 = vmatprep.subr.bf16.mxu0 %v3154
      %3905 = vmatpush1.bf16.msra.mxu0 %v3153
      %3906 = vmatprep.subr.bf16.mxu0 %v3158
      %3907 = vmatpush1.bf16.msra.mxu0 %v3157
      %3908 = vmatprep.subr.bf16.mxu0 %v3162
      %3909 = vmatpush1.bf16.msra.mxu0 %v3161
      %3910 = vmatprep.subr.bf16.mxu0 %v3166
      %3911 = vmatpush1.bf16.msra.mxu0 %v3165
      %3912 = vmatprep.subr.bf16.mxu0 %v3170
      %3913 = vmatpush1.bf16.msra.mxu0 %v3169
      %3914 = vmatprep.subr.bf16.mxu0 %v3174
      %3915 = vmatpush1.bf16.msra.mxu0 %v3173
      %3916 = vmatprep.subr.bf16.mxu0 %v3178
      %3917 = vmatpush1.bf16.msra.mxu0 %v3177
      %3918 = vmatprep.mubr.bf16.mxu0 %v2455
      %3919 = vmatmul.mubr.bf16.gmra.mrb[0].mxu0 %v2454
      %v3920 = vpop.f32.mrb[0].mxu0
      %v3921 = vadd.f32 %v3728, %v3920
      %v3922 = vpop.f32.mrb[0].mxu0
      %v3923 = vadd.f32 %v3730, %v3922
      %v3924 = vpop.f32.mrb[0].mxu0
      %v3925 = vadd.f32 %v3732, %v3924
      %v3926 = vpop.f32.mrb[0].mxu0
      %v3927 = vadd.f32 %v3734, %v3926
      %3928 = vmatprep.mubr.bf16.mxu0 %v2459
      %3929 = vmatmul.mubr.bf16.gmra.mrb[0].mxu0 %v2458
      %v3930 = vpop.f32.mrb[0].mxu0
      %v3931 = vadd.f32 %v3738, %v3930
      %v3932 = vpop.f32.mrb[0].mxu0
      %v3933 = vadd.f32 %v3740, %v3932
      %v3934 = vpop.f32.mrb[0].mxu0
      %v3935 = vadd.f32 %v3742, %v3934
      %v3936 = vpop.f32.mrb[0].mxu0
      %v3937 = vadd.f32 %v3744, %v3936
      %3938 = vmatprep.mubr.bf16.mxu0 %v2463
      %3939 = vmatmul.mubr.bf16.gmra.mrb[0].mxu0 %v2462
      %v3940 = vpop.f32.mrb[0].mxu0
      %v3941 = vadd.f32 %v3748, %v3940
      %v3942 = vpop.f32.mrb[0].mxu0
      %v3943 = vadd.f32 %v3750, %v3942
      %v3944 = vpop.f32.mrb[0].mxu0
      %v3945 = vadd.f32 %v3752, %v3944
      %v3946 = vpop.f32.mrb[0].mxu0
      %v3947 = vadd.f32 %v3754, %v3946
      %3948 = vmatprep.mubr.bf16.mxu0 %v2467
      %3949 = vmatmul.mubr.bf16.gmra.mrb[0].mxu0 %v2466
      %v3950 = vpop.f32.mrb[0].mxu0
      %v3951 = vadd.f32 %v3758, %v3950
      %v3952 = vpop.f32.mrb[0].mxu0
      %v3953 = vadd.f32 %v3760, %v3952
      %v3954 = vpop.f32.mrb[0].mxu0
      %v3955 = vadd.f32 %v3762, %v3954
      %v3956 = vpop.f32.mrb[0].mxu0
      %v3957 = vadd.f32 %v3764, %v3956
      %3958 = vmatprep.mubr.bf16.mxu0 %v2471
      %3959 = vmatmul.mubr.bf16.gmra.mrb[0].mxu0 %v2470
      %v3960 = vpop.f32.mrb[0].mxu0
      %v3961 = vadd.f32 %v3768, %v3960
      %v3962 = vpop.f32.mrb[0].mxu0
      %v3963 = vadd.f32 %v3770, %v3962
      %v3964 = vpop.f32.mrb[0].mxu0
      %v3965 = vadd.f32 %v3772, %v3964
      %v3966 = vpop.f32.mrb[0].mxu0
      %v3967 = vadd.f32 %v3774, %v3966
      %3968 = vmatprep.mubr.bf16.mxu0 %v2475
      %3969 = vmatmul.mubr.bf16.gmra.mrb[0].mxu0 %v2474
      %v3970 = vpop.f32.mrb[0].mxu0
      %v3971 = vadd.f32 %v3778, %v3970
      %v3972 = vpop.f32.mrb[0].mxu0
      %v3973 = vadd.f32 %v3780, %v3972
      %v3974 = vpop.f32.mrb[0].mxu0
      %v3975 = vadd.f32 %v3782, %v3974
      %v3976 = vpop.f32.mrb[0].mxu0
      %v3977 = vadd.f32 %v3784, %v3976
      %3978 = vmatprep.mubr.bf16.mxu0 %v2479
      %3979 = vmatmul.mubr.bf16.gmra.mrb[0].mxu0 %v2478
      %v3980 = vpop.f32.mrb[0].mxu0
      %v3981 = vadd.f32 %v3788, %v3980
      %v3982 = vpop.f32.mrb[0].mxu0
      %v3983 = vadd.f32 %v3790, %v3982
      %v3984 = vpop.f32.mrb[0].mxu0
      %v3985 = vadd.f32 %v3792, %v3984
      %v3986 = vpop.f32.mrb[0].mxu0
      %v3987 = vadd.f32 %v3794, %v3986
      %3988 = vmatprep.mubr.bf16.mxu0 %v2483
      %3989 = vmatmul.mubr.bf16.gmra.mrb[0].mxu0 %v2482
      %v3990 = vpop.f32.mrb[0].mxu0
      %v3991 = vadd.f32 %v3798, %v3990
      %v3992 = vpop.f32.mrb[0].mxu0
      %v3993 = vadd.f32 %v3800, %v3992
      %v3994 = vpop.f32.mrb[0].mxu0
      %v3995 = vadd.f32 %v3802, %v3994
      %v3996 = vpop.f32.mrb[0].mxu0
      %v3997 = vadd.f32 %v3804, %v3996
      %3998 = vmatprep.mubr.bf16.mxu0 %v2487
      %3999 = vmatmul.mubr.bf16.gmra.mrb[0].mxu0 %v2486
      %v4000 = vpop.f32.mrb[0].mxu0
      %v4001 = vadd.f32 %v3808, %v4000
      %v4002 = vpop.f32.mrb[0].mxu0
      %v4003 = vadd.f32 %v3810, %v4002
      %v4004 = vpop.f32.mrb[0].mxu0
      %v4005 = vadd.f32 %v3812, %v4004
      %v4006 = vpop.f32.mrb[0].mxu0
      %v4007 = vadd.f32 %v3814, %v4006
      %4008 = vmatprep.mubr.bf16.mxu0 %v2491
      %4009 = vmatmul.mubr.bf16.gmra.mrb[0].mxu0 %v2490
      %v4010 = vpop.f32.mrb[0].mxu0
      %v4011 = vadd.f32 %v3818, %v4010
      %v4012 = vpop.f32.mrb[0].mxu0
      %v4013 = vadd.f32 %v3820, %v4012
      %v4014 = vpop.f32.mrb[0].mxu0
      %v4015 = vadd.f32 %v3822, %v4014
      %v4016 = vpop.f32.mrb[0].mxu0
      %v4017 = vadd.f32 %v3824, %v4016
      %4018 = vmatprep.mubr.bf16.mxu0 %v2495
      %4019 = vmatmul.mubr.bf16.gmra.mrb[0].mxu0 %v2494
      %v4020 = vpop.f32.mrb[0].mxu0
      %v4021 = vadd.f32 %v3828, %v4020
      %v4022 = vpop.f32.mrb[0].mxu0
      %v4023 = vadd.f32 %v3830, %v4022
      %v4024 = vpop.f32.mrb[0].mxu0
      %v4025 = vadd.f32 %v3832, %v4024
      %v4026 = vpop.f32.mrb[0].mxu0
      %v4027 = vadd.f32 %v3834, %v4026
      %4028 = vmatprep.mubr.bf16.mxu0 %v2499
      %4029 = vmatmul.mubr.bf16.gmra.mrb[0].mxu0 %v2498
      %v4030 = vpop.f32.mrb[0].mxu0
      %v4031 = vadd.f32 %v3838, %v4030
      %v4032 = vpop.f32.mrb[0].mxu0
      %v4033 = vadd.f32 %v3840, %v4032
      %v4034 = vpop.f32.mrb[0].mxu0
      %v4035 = vadd.f32 %v3842, %v4034
      %v4036 = vpop.f32.mrb[0].mxu0
      %v4037 = vadd.f32 %v3844, %v4036
      %4038 = vmatprep.mubr.bf16.mxu0 %v2503
      %4039 = vmatmul.mubr.bf16.gmra.mrb[0].mxu0 %v2502
      %v4040 = vpop.f32.mrb[0].mxu0
      %v4041 = vadd.f32 %v3848, %v4040
      %v4042 = vpop.f32.mrb[0].mxu0
      %v4043 = vadd.f32 %v3850, %v4042
      %v4044 = vpop.f32.mrb[0].mxu0
      %v4045 = vadd.f32 %v3852, %v4044
      %v4046 = vpop.f32.mrb[0].mxu0
      %v4047 = vadd.f32 %v3854, %v4046
      %4048 = vmatprep.mubr.bf16.mxu0 %v2507
      %4049 = vmatmul.mubr.bf16.gmra.mrb[0].mxu0 %v2506
      %v4050 = vpop.f32.mrb[0].mxu0
      %v4051 = vadd.f32 %v3858, %v4050
      %v4052 = vpop.f32.mrb[0].mxu0
      %v4053 = vadd.f32 %v3860, %v4052
      %v4054 = vpop.f32.mrb[0].mxu0
      %v4055 = vadd.f32 %v3862, %v4054
      %v4056 = vpop.f32.mrb[0].mxu0
      %v4057 = vadd.f32 %v3864, %v4056
      %4058 = vmatprep.mubr.bf16.mxu0 %v2511
      %4059 = vmatmul.mubr.bf16.gmra.mrb[0].mxu0 %v2510
      %v4060 = vpop.f32.mrb[0].mxu0
      %v4061 = vadd.f32 %v3868, %v4060
      %v4062 = vpop.f32.mrb[0].mxu0
      %v4063 = vadd.f32 %v3870, %v4062
      %v4064 = vpop.f32.mrb[0].mxu0
      %v4065 = vadd.f32 %v3872, %v4064
      %v4066 = vpop.f32.mrb[0].mxu0
      %v4067 = vadd.f32 %v3874, %v4066
      %4068 = vmatprep.mubr.bf16.mxu0 %v2515
      %4069 = vmatmul.mubr.bf16.gmra.mrb[0].mxu0 %v2514
      %v4070 = vpop.f32.mrb[0].mxu0
      %v4071 = vadd.f32 %v3878, %v4070
      %v4072 = vpop.f32.mrb[0].mxu0
      %v4073 = vadd.f32 %v3880, %v4072
      %v4074 = vpop.f32.mrb[0].mxu0
      %v4075 = vadd.f32 %v3882, %v4074
      %v4076 = vpop.f32.mrb[0].mxu0
      %v4077 = vadd.f32 %v3884, %v4076
      %4078 = vdwg.mxu0
      %v4079 = vmul.f32 %v3535, 0.2
      %v4080 = vmul.f32 %v3537, 0.2
      %v4081 = vmul.f32 %v3921, 0.2
      %v4082 = vmul.f32 %v3923, 0.2
      %v4083 = vmul.f32 %v3539, 0.2
      %v4084 = vmul.f32 %v3541, 0.2
      %v4085 = vmul.f32 %v3925, 0.2
      %v4086 = vmul.f32 %v3927, 0.2
      %v4087 = vmul.f32 %v3545, 0.2
      %v4088 = vmul.f32 %v3547, 0.2
      %v4089 = vmul.f32 %v3931, 0.2
      %v4090 = vmul.f32 %v3933, 0.2
      %v4091 = vmul.f32 %v3549, 0.2
      %v4092 = vmul.f32 %v3551, 0.2
      %v4093 = vmul.f32 %v3935, 0.2
      %v4094 = vmul.f32 %v3937, 0.2
      %v4095 = vmul.f32 %v3555, 0.2
      %v4096 = vmul.f32 %v3557, 0.2
      %v4097 = vmul.f32 %v3941, 0.2
      %v4098 = vmul.f32 %v3943, 0.2
      %v4099 = vmul.f32 %v3559, 0.2
      %v4100 = vmul.f32 %v3561, 0.2
      %v4101 = vmul.f32 %v3945, 0.2
      %v4102 = vmul.f32 %v3947, 0.2
      %v4103 = vmul.f32 %v3565, 0.2
      %v4104 = vmul.f32 %v3567, 0.2
      %v4105 = vmul.f32 %v3951, 0.2
      %v4106 = vmul.f32 %v3953, 0.2
      %v4107 = vmul.f32 %v3569, 0.2
      %v4108 = vmul.f32 %v3571, 0.2
      %v4109 = vmul.f32 %v3955, 0.2
      %v4110 = vmul.f32 %v3957, 0.2
      %v4111 = vmul.f32 %v3575, 0.2
      %v4112 = vmul.f32 %v3577, 0.2
      %v4113 = vmul.f32 %v3961, 0.2
      %v4114 = vmul.f32 %v3963, 0.2
      %v4115 = vmul.f32 %v3579, 0.2
      %v4116 = vmul.f32 %v3581, 0.2
      %v4117 = vmul.f32 %v3965, 0.2
      %v4118 = vmul.f32 %v3967, 0.2
      %v4119 = vmul.f32 %v3585, 0.2
      %v4120 = vmul.f32 %v3587, 0.2
      %v4121 = vmul.f32 %v3971, 0.2
      %v4122 = vmul.f32 %v3973, 0.2
      %v4123 = vmul.f32 %v3589, 0.2
      %v4124 = vmul.f32 %v3591, 0.2
      %v4125 = vmul.f32 %v3975, 0.2
      %v4126 = vmul.f32 %v3977, 0.2
      %v4127 = vmul.f32 %v3595, 0.2
      %v4128 = vmul.f32 %v3597, 0.2
      %v4129 = vmul.f32 %v3981, 0.2
      %v4130 = vmul.f32 %v3983, 0.2
      %v4131 = vmul.f32 %v3599, 0.2
      %v4132 = vmul.f32 %v3601, 0.2
      %v4133 = vmul.f32 %v3985, 0.2
      %v4134 = vmul.f32 %v3987, 0.2
      %v4135 = vmul.f32 %v3605, 0.2
      %v4136 = vmul.f32 %v3607, 0.2
      %v4137 = vmul.f32 %v3991, 0.2
      %v4138 = vmul.f32 %v3993, 0.2
      %v4139 = vmul.f32 %v3609, 0.2
      %v4140 = vmul.f32 %v3611, 0.2
      %v4141 = vmul.f32 %v3995, 0.2
      %v4142 = vmul.f32 %v3997, 0.2
      %v4143 = vmul.f32 %v3615, 0.2
      %v4144 = vmul.f32 %v3617, 0.2
      %v4145 = vmul.f32 %v4001, 0.2
      %v4146 = vmul.f32 %v4003, 0.2
      %v4147 = vmul.f32 %v3619, 0.2
      %v4148 = vmul.f32 %v3621, 0.2
      %v4149 = vmul.f32 %v4005, 0.2
      %v4150 = vmul.f32 %v4007, 0.2
      %v4151 = vmul.f32 %v3625, 0.2
      %v4152 = vmul.f32 %v3627, 0.2
      %v4153 = vmul.f32 %v4011, 0.2
      %v4154 = vmul.f32 %v4013, 0.2
      %v4155 = vmul.f32 %v3629, 0.2
      %v4156 = vmul.f32 %v3631, 0.2
      %v4157 = vmul.f32 %v4015, 0.2
      %v4158 = vmul.f32 %v4017, 0.2
      %v4159 = vmul.f32 %v3635, 0.2
      %v4160 = vmul.f32 %v3637, 0.2
      %v4161 = vmul.f32 %v4021, 0.2
      %v4162 = vmul.f32 %v4023, 0.2
      %v4163 = vmul.f32 %v3639, 0.2
      %v4164 = vmul.f32 %v3641, 0.2
      %v4165 = vmul.f32 %v4025, 0.2
      %v4166 = vmul.f32 %v4027, 0.2
      %v4167 = vmul.f32 %v3645, 0.2
      %v4168 = vmul.f32 %v3647, 0.2
      %v4169 = vmul.f32 %v4031, 0.2
      %v4170 = vmul.f32 %v4033, 0.2
      %v4171 = vmul.f32 %v3649, 0.2
      %v4172 = vmul.f32 %v3651, 0.2
      %v4173 = vmul.f32 %v4035, 0.2
      %v4174 = vmul.f32 %v4037, 0.2
      %v4175 = vmul.f32 %v3655, 0.2
      %v4176 = vmul.f32 %v3657, 0.2
      %v4177 = vmul.f32 %v4041, 0.2
      %v4178 = vmul.f32 %v4043, 0.2
      %v4179 = vmul.f32 %v3659, 0.2
      %v4180 = vmul.f32 %v3661, 0.2
      %v4181 = vmul.f32 %v4045, 0.2
      %v4182 = vmul.f32 %v4047, 0.2
      %v4183 = vmul.f32 %v3665, 0.2
      %v4184 = vmul.f32 %v3667, 0.2
      %v4185 = vmul.f32 %v4051, 0.2
      %v4186 = vmul.f32 %v4053, 0.2
      %v4187 = vmul.f32 %v3669, 0.2
      %v4188 = vmul.f32 %v3671, 0.2
      %v4189 = vmul.f32 %v4055, 0.2
      %v4190 = vmul.f32 %v4057, 0.2
      %v4191 = vmul.f32 %v3675, 0.2
      %v4192 = vmul.f32 %v3677, 0.2
      %v4193 = vmul.f32 %v4061, 0.2
      %v4194 = vmul.f32 %v4063, 0.2
      %v4195 = vmul.f32 %v3679, 0.2
      %v4196 = vmul.f32 %v3681, 0.2
      %v4197 = vmul.f32 %v4065, 0.2
      %v4198 = vmul.f32 %v4067, 0.2
      %v4199 = vmul.f32 %v3685, 0.2
      %v4200 = vmul.f32 %v3687, 0.2
      %v4201 = vmul.f32 %v4071, 0.2
      %v4202 = vmul.f32 %v4073, 0.2
      %v4203 = vmul.f32 %v3689, 0.2
      %v4204 = vmul.f32 %v3691, 0.2
      %v4205 = vmul.f32 %v4075, 0.2
      %v4206 = vmul.f32 %v4077, 0.2
      %v4207 = vmax.f32 %v3535, %v4079
      %v4208 = vmax.f32 %v3537, %v4080
      %v4209 = vmax.f32 %v3921, %v4081
      %v4210 = vmax.f32 %v3923, %v4082
      %v4211 = vmax.f32 %v3539, %v4083
      %v4212 = vmax.f32 %v3541, %v4084
      %v4213 = vmax.f32 %v3925, %v4085
      %v4214 = vmax.f32 %v3927, %v4086
      %v4215 = vmax.f32 %v3545, %v4087
      %v4216 = vmax.f32 %v3547, %v4088
      %v4217 = vmax.f32 %v3931, %v4089
      %v4218 = vmax.f32 %v3933, %v4090
      %v4219 = vmax.f32 %v3549, %v4091
      %v4220 = vmax.f32 %v3551, %v4092
      %v4221 = vmax.f32 %v3935, %v4093
      %v4222 = vmax.f32 %v3937, %v4094
      %v4223 = vmax.f32 %v3555, %v4095
      %v4224 = vmax.f32 %v3557, %v4096
      %v4225 = vmax.f32 %v3941, %v4097
      %v4226 = vmax.f32 %v3943, %v4098
      %v4227 = vmax.f32 %v3559, %v4099
      %v4228 = vmax.f32 %v3561, %v4100
      %v4229 = vmax.f32 %v3945, %v4101
      %v4230 = vmax.f32 %v3947, %v4102
      %v4231 = vmax.f32 %v3565, %v4103
      %v4232 = vmax.f32 %v3567, %v4104
      %v4233 = vmax.f32 %v3951, %v4105
      %v4234 = vmax.f32 %v3953, %v4106
      %v4235 = vmax.f32 %v3569, %v4107
      %v4236 = vmax.f32 %v3571, %v4108
      %v4237 = vmax.f32 %v3955, %v4109
      %v4238 = vmax.f32 %v3957, %v4110
      %v4239 = vmax.f32 %v3575, %v4111
      %v4240 = vmax.f32 %v3577, %v4112
      %v4241 = vmax.f32 %v3961, %v4113
      %v4242 = vmax.f32 %v3963, %v4114
      %v4243 = vmax.f32 %v3579, %v4115
      %v4244 = vmax.f32 %v3581, %v4116
      %v4245 = vmax.f32 %v3965, %v4117
      %v4246 = vmax.f32 %v3967, %v4118
      %v4247 = vmax.f32 %v3585, %v4119
      %v4248 = vmax.f32 %v3587, %v4120
      %v4249 = vmax.f32 %v3971, %v4121
      %v4250 = vmax.f32 %v3973, %v4122
      %v4251 = vmax.f32 %v3589, %v4123
      %v4252 = vmax.f32 %v3591, %v4124
      %v4253 = vmax.f32 %v3975, %v4125
      %v4254 = vmax.f32 %v3977, %v4126
      %v4255 = vmax.f32 %v3595, %v4127
      %v4256 = vmax.f32 %v3597, %v4128
      %v4257 = vmax.f32 %v3981, %v4129
      %v4258 = vmax.f32 %v3983, %v4130
      %v4259 = vmax.f32 %v3599, %v4131
      %v4260 = vmax.f32 %v3601, %v4132
      %v4261 = vmax.f32 %v3985, %v4133
      %v4262 = vmax.f32 %v3987, %v4134
      %v4263 = vmax.f32 %v3605, %v4135
      %v4264 = vmax.f32 %v3607, %v4136
      %v4265 = vmax.f32 %v3991, %v4137
      %v4266 = vmax.f32 %v3993, %v4138
      %v4267 = vmax.f32 %v3609, %v4139
      %v4268 = vmax.f32 %v3611, %v4140
      %v4269 = vmax.f32 %v3995, %v4141
      %v4270 = vmax.f32 %v3997, %v4142
      %v4271 = vmax.f32 %v3615, %v4143
      %v4272 = vmax.f32 %v3617, %v4144
      %v4273 = vmax.f32 %v4001, %v4145
      %v4274 = vmax.f32 %v4003, %v4146
      %v4275 = vmax.f32 %v3619, %v4147
      %v4276 = vmax.f32 %v3621, %v4148
      %v4277 = vmax.f32 %v4005, %v4149
      %v4278 = vmax.f32 %v4007, %v4150
      %v4279 = vmax.f32 %v3625, %v4151
      %v4280 = vmax.f32 %v3627, %v4152
      %v4281 = vmax.f32 %v4011, %v4153
      %v4282 = vmax.f32 %v4013, %v4154
      %v4283 = vmax.f32 %v3629, %v4155
      %v4284 = vmax.f32 %v3631, %v4156
      %v4285 = vmax.f32 %v4015, %v4157
      %v4286 = vmax.f32 %v4017, %v4158
      %v4287 = vmax.f32 %v3635, %v4159
      %v4288 = vmax.f32 %v3637, %v4160
      %v4289 = vmax.f32 %v4021, %v4161
      %v4290 = vmax.f32 %v4023, %v4162
      %v4291 = vmax.f32 %v3639, %v4163
      %v4292 = vmax.f32 %v3641, %v4164
      %v4293 = vmax.f32 %v4025, %v4165
      %v4294 = vmax.f32 %v4027, %v4166
      %v4295 = vmax.f32 %v3645, %v4167
      %v4296 = vmax.f32 %v3647, %v4168
      %v4297 = vmax.f32 %v4031, %v4169
      %v4298 = vmax.f32 %v4033, %v4170
      %v4299 = vmax.f32 %v3649, %v4171
      %v4300 = vmax.f32 %v3651, %v4172
      %v4301 = vmax.f32 %v4035, %v4173
      %v4302 = vmax.f32 %v4037, %v4174
      %v4303 = vmax.f32 %v3655, %v4175
      %v4304 = vmax.f32 %v3657, %v4176
      %v4305 = vmax.f32 %v4041, %v4177
      %v4306 = vmax.f32 %v4043, %v4178
      %v4307 = vmax.f32 %v3659, %v4179
      %v4308 = vmax.f32 %v3661, %v4180
      %v4309 = vmax.f32 %v4045, %v4181
      %v4310 = vmax.f32 %v4047, %v4182
      %v4311 = vmax.f32 %v3665, %v4183
      %v4312 = vmax.f32 %v3667, %v4184
      %v4313 = vmax.f32 %v4051, %v4185
      %v4314 = vmax.f32 %v4053, %v4186
      %v4315 = vmax.f32 %v3669, %v4187
      %v4316 = vmax.f32 %v3671, %v4188
      %v4317 = vmax.f32 %v4055, %v4189
      %v4318 = vmax.f32 %v4057, %v4190
      %v4319 = vmax.f32 %v3675, %v4191
      %v4320 = vmax.f32 %v3677, %v4192
      %v4321 = vmax.f32 %v4061, %v4193
      %v4322 = vmax.f32 %v4063, %v4194
      %v4323 = vmax.f32 %v3679, %v4195
      %v4324 = vmax.f32 %v3681, %v4196
      %v4325 = vmax.f32 %v4065, %v4197
      %v4326 = vmax.f32 %v4067, %v4198
      %v4327 = vmax.f32 %v3685, %v4199
      %v4328 = vmax.f32 %v3687, %v4200
      %v4329 = vmax.f32 %v4071, %v4201
      %v4330 = vmax.f32 %v4073, %v4202
      %v4331 = vmax.f32 %v3689, %v4203
      %v4332 = vmax.f32 %v3691, %v4204
      %v4333 = vmax.f32 %v4075, %v4205
      %v4334 = vmax.f32 %v4077, %v4206
      %v4335 = vpack.c.bf16 %v4211, %v4207
      %v4336 = vpack.c.bf16 %v4212, %v4208
      %v4337 = vpack.c.bf16 %v4213, %v4209
      %v4338 = vpack.c.bf16 %v4214, %v4210
      %v4339 = vpack.c.bf16 %v4219, %v4215
      %v4340 = vpack.c.bf16 %v4220, %v4216
      %v4341 = vpack.c.bf16 %v4221, %v4217
      %v4342 = vpack.c.bf16 %v4222, %v4218
      %v4343 = vpack.c.bf16 %v4227, %v4223
      %v4344 = vpack.c.bf16 %v4228, %v4224
      %v4345 = vpack.c.bf16 %v4229, %v4225
      %v4346 = vpack.c.bf16 %v4230, %v4226
      %v4347 = vpack.c.bf16 %v4235, %v4231
      %v4348 = vpack.c.bf16 %v4236, %v4232
      %v4349 = vpack.c.bf16 %v4237, %v4233
      %v4350 = vpack.c.bf16 %v4238, %v4234
      %v4351 = vpack.c.bf16 %v4243, %v4239
      %v4352 = vpack.c.bf16 %v4244, %v4240
      %v4353 = vpack.c.bf16 %v4245, %v4241
      %v4354 = vpack.c.bf16 %v4246, %v4242
      %v4355 = vpack.c.bf16 %v4251, %v4247
      %v4356 = vpack.c.bf16 %v4252, %v4248
      %v4357 = vpack.c.bf16 %v4253, %v4249
      %v4358 = vpack.c.bf16 %v4254, %v4250
      %v4359 = vpack.c.bf16 %v4259, %v4255
      %v4360 = vpack.c.bf16 %v4260, %v4256
      %v4361 = vpack.c.bf16 %v4261, %v4257
      %v4362 = vpack.c.bf16 %v4262, %v4258
      %v4363 = vpack.c.bf16 %v4267, %v4263
      %v4364 = vpack.c.bf16 %v4268, %v4264
      %v4365 = vpack.c.bf16 %v4269, %v4265
      %v4366 = vpack.c.bf16 %v4270, %v4266
      %v4367 = vpack.c.bf16 %v4275, %v4271
      %v4368 = vpack.c.bf16 %v4276, %v4272
      %v4369 = vpack.c.bf16 %v4277, %v4273
      %v4370 = vpack.c.bf16 %v4278, %v4274
      %v4371 = vpack.c.bf16 %v4283, %v4279
      %v4372 = vpack.c.bf16 %v4284, %v4280
      %v4373 = vpack.c.bf16 %v4285, %v4281
      %v4374 = vpack.c.bf16 %v4286, %v4282
      %v4375 = vpack.c.bf16 %v4291, %v4287
      %v4376 = vpack.c.bf16 %v4292, %v4288
      %v4377 = vpack.c.bf16 %v4293, %v4289
      %v4378 = vpack.c.bf16 %v4294, %v4290
      %v4379 = vpack.c.bf16 %v4299, %v4295
      %v4380 = vpack.c.bf16 %v4300, %v4296
      %v4381 = vpack.c.bf16 %v4301, %v4297
      %v4382 = vpack.c.bf16 %v4302, %v4298
      %v4383 = vpack.c.bf16 %v4307, %v4303
      %v4384 = vpack.c.bf16 %v4308, %v4304
      %v4385 = vpack.c.bf16 %v4309, %v4305
      %v4386 = vpack.c.bf16 %v4310, %v4306
      %v4387 = vpack.c.bf16 %v4315, %v4311
      %v4388 = vpack.c.bf16 %v4316, %v4312
      %v4389 = vpack.c.bf16 %v4317, %v4313
      %v4390 = vpack.c.bf16 %v4318, %v4314
      %v4391 = vpack.c.bf16 %v4323, %v4319
      %v4392 = vpack.c.bf16 %v4324, %v4320
      %v4393 = vpack.c.bf16 %v4325, %v4321
      %v4394 = vpack.c.bf16 %v4326, %v4322
      %v4395 = vpack.c.bf16 %v4331, %v4327
      %v4396 = vpack.c.bf16 %v4332, %v4328
      %v4397 = vpack.c.bf16 %v4333, %v4329
      %v4398 = vpack.c.bf16 %v4334, %v4330
      %v4399 = vld [vmem:[%s5] sm:$0xf]
      %v4400 = vld [vmem:[%s5 + $0x4] sm:$0xf]
      %v4401 = vld [vmem:[%s5 + $0x8] sm:$0xf]
      %v4402 = vld [vmem:[%s5 + $0xc] sm:$0xf]
      %v4403 = vld [vmem:[%s5 + $0x10] sm:$0xf]
      %v4404 = vld [vmem:[%s5 + $0x14] sm:$0xf]
      %v4405 = vld [vmem:[%s5 + $0x18] sm:$0xf]
      %v4406 = vld [vmem:[%s5 + $0x1c] sm:$0xf]
      %v4407 = vld [vmem:[%s5 + $0x20] sm:$0xf]
      %v4408 = vld [vmem:[%s5 + $0x24] sm:$0xf]
      %v4409 = vld [vmem:[%s5 + $0x28] sm:$0xf]
      %v4410 = vld [vmem:[%s5 + $0x2c] sm:$0xf]
      %v4411 = vld [vmem:[%s5 + $0x30] sm:$0xf]
      %v4412 = vld [vmem:[%s5 + $0x34] sm:$0xf]
      %v4413 = vld [vmem:[%s5 + $0x38] sm:$0xf]
      %v4414 = vld [vmem:[%s5 + $0x3c] sm:$0xf]
      %v4415 = vld [vmem:[%s5 + $0x40] sm:$0xf]
      %v4416 = vld [vmem:[%s5 + $0x44] sm:$0xf]
      %v4417 = vld [vmem:[%s5 + $0x48] sm:$0xf]
      %v4418 = vld [vmem:[%s5 + $0x4c] sm:$0xf]
      %v4419 = vld [vmem:[%s5 + $0x50] sm:$0xf]
      %v4420 = vld [vmem:[%s5 + $0x54] sm:$0xf]
      %v4421 = vld [vmem:[%s5 + $0x58] sm:$0xf]
      %v4422 = vld [vmem:[%s5 + $0x5c] sm:$0xf]
      %v4423 = vld [vmem:[%s5 + $0x60] sm:$0xf]
      %v4424 = vld [vmem:[%s5 + $0x64] sm:$0xf]
      %v4425 = vld [vmem:[%s5 + $0x68] sm:$0xf]
      %v4426 = vld [vmem:[%s5 + $0x6c] sm:$0xf]
      %v4427 = vld [vmem:[%s5 + $0x70] sm:$0xf]
      %v4428 = vld [vmem:[%s5 + $0x74] sm:$0xf]
      %v4429 = vld [vmem:[%s5 + $0x78] sm:$0xf]
      %v4430 = vld [vmem:[%s5 + $0x7c] sm:$0xf]
      %v4431 = vld [vmem:[%s5 + $0x80] sm:$0xf]
      %v4432 = vld [vmem:[%s5 + $0x84] sm:$0xf]
      %v4433 = vld [vmem:[%s5 + $0x88] sm:$0xf]
      %v4434 = vld [vmem:[%s5 + $0x8c] sm:$0xf]
      %v4435 = vld [vmem:[%s5 + $0x90] sm:$0xf]
      %v4436 = vld [vmem:[%s5 + $0x94] sm:$0xf]
      %v4437 = vld [vmem:[%s5 + $0x98] sm:$0xf]
      %v4438 = vld [vmem:[%s5 + $0x9c] sm:$0xf]
      %v4439 = vld [vmem:[%s5 + $0xa0] sm:$0xf]
      %v4440 = vld [vmem:[%s5 + $0xa4] sm:$0xf]
      %v4441 = vld [vmem:[%s5 + $0xa8] sm:$0xf]
      %v4442 = vld [vmem:[%s5 + $0xac] sm:$0xf]
      %v4443 = vld [vmem:[%s5 + $0xb0] sm:$0xf]
      %v4444 = vld [vmem:[%s5 + $0xb4] sm:$0xf]
      %v4445 = vld [vmem:[%s5 + $0xb8] sm:$0xf]
      %v4446 = vld [vmem:[%s5 + $0xbc] sm:$0xf]
      %v4447 = vld [vmem:[%s5 + $0xc0] sm:$0xf]
      %v4448 = vld [vmem:[%s5 + $0xc4] sm:$0xf]
      %v4449 = vld [vmem:[%s5 + $0xc8] sm:$0xf]
      %v4450 = vld [vmem:[%s5 + $0xcc] sm:$0xf]
      %v4451 = vld [vmem:[%s5 + $0xd0] sm:$0xf]
      %v4452 = vld [vmem:[%s5 + $0xd4] sm:$0xf]
      %v4453 = vld [vmem:[%s5 + $0xd8] sm:$0xf]
      %v4454 = vld [vmem:[%s5 + $0xdc] sm:$0xf]
      %v4455 = vld [vmem:[%s5 + $0xe0] sm:$0xf]
      %v4456 = vld [vmem:[%s5 + $0xe4] sm:$0xf]
      %v4457 = vld [vmem:[%s5 + $0xe8] sm:$0xf]
      %v4458 = vld [vmem:[%s5 + $0xec] sm:$0xf]
      %v4459 = vld [vmem:[%s5 + $0xf0] sm:$0xf]
      %v4460 = vld [vmem:[%s5 + $0xf4] sm:$0xf]
      %v4461 = vld [vmem:[%s5 + $0xf8] sm:$0xf]
      %v4462 = vld [vmem:[%s5 + $0xfc] sm:$0xf]
      %v4463 = vld [vmem:[%s6 + $0x4] ss:$0 sm:$0xff]
      %v4528 = vunpack.c.l.b16 %v4399
      %v4529 = vunpack.c.l.b16 %v4400
      %v4530 = vunpack.c.l.b16 %v4401
      %v4531 = vunpack.c.l.b16 %v4402
      %v4532 = vunpack.c.l.b16 %v4403
      %v4533 = vunpack.c.l.b16 %v4404
      %v4534 = vunpack.c.l.b16 %v4405
      %v4535 = vunpack.c.l.b16 %v4406
      %v4536 = vunpack.c.l.b16 %v4407
      %v4537 = vunpack.c.l.b16 %v4408
      %v4538 = vunpack.c.l.b16 %v4409
      %v4539 = vunpack.c.l.b16 %v4410
      %v4540 = vunpack.c.l.b16 %v4411
      %v4541 = vunpack.c.l.b16 %v4412
      %v4542 = vunpack.c.l.b16 %v4413
      %v4543 = vunpack.c.l.b16 %v4414
      %v4544 = vunpack.c.l.b16 %v4415
      %v4545 = vunpack.c.l.b16 %v4416
      %v4546 = vunpack.c.l.b16 %v4417
      %v4547 = vunpack.c.l.b16 %v4418
      %v4548 = vunpack.c.l.b16 %v4419
      %v4549 = vunpack.c.l.b16 %v4420
      %v4550 = vunpack.c.l.b16 %v4421
      %v4551 = vunpack.c.l.b16 %v4422
      %v4552 = vunpack.c.l.b16 %v4423
      %v4553 = vunpack.c.l.b16 %v4424
      %v4554 = vunpack.c.l.b16 %v4425
      %v4555 = vunpack.c.l.b16 %v4426
      %v4556 = vunpack.c.l.b16 %v4427
      %v4557 = vunpack.c.l.b16 %v4428
      %v4558 = vunpack.c.l.b16 %v4429
      %v4559 = vunpack.c.l.b16 %v4430
      %v4560 = vunpack.c.l.b16 %v4431
      %v4561 = vunpack.c.l.b16 %v4432
      %v4562 = vunpack.c.l.b16 %v4433
      %v4563 = vunpack.c.l.b16 %v4434
      %v4564 = vunpack.c.l.b16 %v4435
      %v4565 = vunpack.c.l.b16 %v4436
      %v4566 = vunpack.c.l.b16 %v4437
      %v4567 = vunpack.c.l.b16 %v4438
      %v4568 = vunpack.c.l.b16 %v4439
      %v4569 = vunpack.c.l.b16 %v4440
      %v4570 = vunpack.c.l.b16 %v4441
      %v4571 = vunpack.c.l.b16 %v4442
      %v4572 = vunpack.c.l.b16 %v4443
      %v4573 = vunpack.c.l.b16 %v4444
      %v4574 = vunpack.c.l.b16 %v4445
      %v4575 = vunpack.c.l.b16 %v4446
      %v4576 = vunpack.c.l.b16 %v4447
      %v4577 = vunpack.c.l.b16 %v4448
      %v4578 = vunpack.c.l.b16 %v4449
      %v4579 = vunpack.c.l.b16 %v4450
      %v4580 = vunpack.c.l.b16 %v4451
      %v4581 = vunpack.c.l.b16 %v4452
      %v4582 = vunpack.c.l.b16 %v4453
      %v4583 = vunpack.c.l.b16 %v4454
      %v4584 = vunpack.c.l.b16 %v4455
      %v4585 = vunpack.c.l.b16 %v4456
      %v4586 = vunpack.c.l.b16 %v4457
      %v4587 = vunpack.c.l.b16 %v4458
      %v4588 = vunpack.c.l.b16 %v4459
      %v4589 = vunpack.c.l.b16 %v4460
      %v4590 = vunpack.c.l.b16 %v4461
      %v4591 = vunpack.c.l.b16 %v4462
      %v4592 = vpack.c.b16 %v4529, %v4528
      %v4593 = vpack.c.b16 %v4531, %v4530
      %v4594 = vpack.c.b16 %v4533, %v4532
      %v4595 = vpack.c.b16 %v4535, %v4534
      %v4596 = vpack.c.b16 %v4537, %v4536
      %v4597 = vpack.c.b16 %v4539, %v4538
      %v4598 = vpack.c.b16 %v4541, %v4540
      %v4599 = vpack.c.b16 %v4543, %v4542
      %v4600 = vpack.c.b16 %v4545, %v4544
      %v4601 = vpack.c.b16 %v4547, %v4546
      %v4602 = vpack.c.b16 %v4549, %v4548
      %v4603 = vpack.c.b16 %v4551, %v4550
      %v4604 = vpack.c.b16 %v4553, %v4552
      %v4605 = vpack.c.b16 %v4555, %v4554
      %v4606 = vpack.c.b16 %v4557, %v4556
      %v4607 = vpack.c.b16 %v4559, %v4558
      %v4608 = vpack.c.b16 %v4561, %v4560
      %v4609 = vpack.c.b16 %v4563, %v4562
      %v4610 = vpack.c.b16 %v4565, %v4564
      %v4611 = vpack.c.b16 %v4567, %v4566
      %v4612 = vpack.c.b16 %v4569, %v4568
      %v4613 = vpack.c.b16 %v4571, %v4570
      %v4614 = vpack.c.b16 %v4573, %v4572
      %v4615 = vpack.c.b16 %v4575, %v4574
      %v4616 = vpack.c.b16 %v4577, %v4576
      %v4617 = vpack.c.b16 %v4579, %v4578
      %v4618 = vpack.c.b16 %v4581, %v4580
      %v4619 = vpack.c.b16 %v4583, %v4582
      %v4620 = vpack.c.b16 %v4585, %v4584
      %v4621 = vpack.c.b16 %v4587, %v4586
      %v4622 = vpack.c.b16 %v4589, %v4588
      %v4623 = vpack.c.b16 %v4591, %v4590
      %4656 = vmatprep.subr.bf16.mxu0 0
      %4657 = vmatpush1.bf16.msra.mxu0 %v4592
      %4658 = vmatprep.subr.bf16.mxu0 0
      %4659 = vmatpush1.bf16.msra.mxu0 %v4593
      %4660 = vmatprep.subr.bf16.mxu0 0
      %4661 = vmatpush1.bf16.msra.mxu0 %v4594
      %4662 = vmatprep.subr.bf16.mxu0 0
      %4663 = vmatpush1.bf16.msra.mxu0 %v4595
      %4664 = vmatprep.subr.bf16.mxu0 0
      %4665 = vmatpush1.bf16.msra.mxu0 %v4596
      %4666 = vmatprep.subr.bf16.mxu0 0
      %4667 = vmatpush1.bf16.msra.mxu0 %v4597
      %4668 = vmatprep.subr.bf16.mxu0 0
      %4669 = vmatpush1.bf16.msra.mxu0 %v4598
      %4670 = vmatprep.subr.bf16.mxu0 0
      %4671 = vmatpush1.bf16.msra.mxu0 %v4599
      %4672 = vmatprep.subr.bf16.mxu0 0
      %4673 = vmatpush1.bf16.msra.mxu0 %v4600
      %4674 = vmatprep.subr.bf16.mxu0 0
      %4675 = vmatpush1.bf16.msra.mxu0 %v4601
      %4676 = vmatprep.subr.bf16.mxu0 0
      %4677 = vmatpush1.bf16.msra.mxu0 %v4602
      %4678 = vmatprep.subr.bf16.mxu0 0
      %4679 = vmatpush1.bf16.msra.mxu0 %v4603
      %4680 = vmatprep.subr.bf16.mxu0 0
      %4681 = vmatpush1.bf16.msra.mxu0 %v4604
      %4682 = vmatprep.subr.bf16.mxu0 0
      %4683 = vmatpush1.bf16.msra.mxu0 %v4605
      %4684 = vmatprep.subr.bf16.mxu0 0
      %4685 = vmatpush1.bf16.msra.mxu0 %v4606
      %4686 = vmatprep.subr.bf16.mxu0 0
      %4687 = vmatpush1.bf16.msra.mxu0 %v4607
      %4688 = vmatprep.mubr.bf16.mxu0 %v4336
      %4689 = vmatmul.mubr.bf16.gmra.mrb[0].mxu0 %v4335
      %v4690 = vpop.f32.mrb[0].mxu0
      %v4691 = vadd.f32 %v4463, %v4690
      %v4692 = vpop.f32.mrb[0].mxu0
      %v4693 = vpop.f32.mrb[0].mxu0
      %v4694 = vadd.f32 %v4463, %v4693
      %v4695 = vpop.f32.mrb[0].mxu0
      %4696 = vmatprep.mubr.bf16.mxu0 %v4340
      %4697 = vmatmul.mubr.bf16.gmra.mrb[0].mxu0 %v4339
      %v4698 = vpop.f32.mrb[0].mxu0
      %v4699 = vadd.f32 %v4463, %v4698
      %v4700 = vpop.f32.mrb[0].mxu0
      %v4701 = vpop.f32.mrb[0].mxu0
      %v4702 = vadd.f32 %v4463, %v4701
      %v4703 = vpop.f32.mrb[0].mxu0
      %4704 = vmatprep.mubr.bf16.mxu0 %v4344
      %4705 = vmatmul.mubr.bf16.gmra.mrb[0].mxu0 %v4343
      %v4706 = vpop.f32.mrb[0].mxu0
      %v4707 = vadd.f32 %v4463, %v4706
      %v4708 = vpop.f32.mrb[0].mxu0
      %v4709 = vpop.f32.mrb[0].mxu0
      %v4710 = vadd.f32 %v4463, %v4709
      %v4711 = vpop.f32.mrb[0].mxu0
      %4712 = vmatprep.mubr.bf16.mxu0 %v4348
      %4713 = vmatmul.mubr.bf16.gmra.mrb[0].mxu0 %v4347
      %v4714 = vpop.f32.mrb[0].mxu0
      %v4715 = vadd.f32 %v4463, %v4714
      %v4716 = vpop.f32.mrb[0].mxu0
      %v4717 = vpop.f32.mrb[0].mxu0
      %v4718 = vadd.f32 %v4463, %v4717
      %v4719 = vpop.f32.mrb[0].mxu0
      %4720 = vmatprep.mubr.bf16.mxu0 %v4352
      %4721 = vmatmul.mubr.bf16.gmra.mrb[0].mxu0 %v4351
      %v4722 = vpop.f32.mrb[0].mxu0
      %v4723 = vadd.f32 %v4463, %v4722
      %v4724 = vpop.f32.mrb[0].mxu0
      %v4725 = vpop.f32.mrb[0].mxu0
      %v4726 = vadd.f32 %v4463, %v4725
      %v4727 = vpop.f32.mrb[0].mxu0
      %4728 = vmatprep.mubr.bf16.mxu0 %v4356
      %4729 = vmatmul.mubr.bf16.gmra.mrb[0].mxu0 %v4355
      %v4730 = vpop.f32.mrb[0].mxu0
      %v4731 = vadd.f32 %v4463, %v4730
      %v4732 = vpop.f32.mrb[0].mxu0
      %v4733 = vpop.f32.mrb[0].mxu0
      %v4734 = vadd.f32 %v4463, %v4733
      %v4735 = vpop.f32.mrb[0].mxu0
      %4736 = vmatprep.mubr.bf16.mxu0 %v4360
      %4737 = vmatmul.mubr.bf16.gmra.mrb[0].mxu0 %v4359
      %v4738 = vpop.f32.mrb[0].mxu0
      %v4739 = vadd.f32 %v4463, %v4738
      %v4740 = vpop.f32.mrb[0].mxu0
      %v4741 = vpop.f32.mrb[0].mxu0
      %v4742 = vadd.f32 %v4463, %v4741
      %v4743 = vpop.f32.mrb[0].mxu0
      %4744 = vmatprep.mubr.bf16.mxu0 %v4364
      %4745 = vmatmul.mubr.bf16.gmra.mrb[0].mxu0 %v4363
      %v4746 = vpop.f32.mrb[0].mxu0
      %v4747 = vadd.f32 %v4463, %v4746
      %v4748 = vpop.f32.mrb[0].mxu0
      %v4749 = vpop.f32.mrb[0].mxu0
      %v4750 = vadd.f32 %v4463, %v4749
      %v4751 = vpop.f32.mrb[0].mxu0
      %4752 = vmatprep.mubr.bf16.mxu0 %v4368
      %4753 = vmatmul.mubr.bf16.gmra.mrb[0].mxu0 %v4367
      %v4754 = vpop.f32.mrb[0].mxu0
      %v4755 = vadd.f32 %v4463, %v4754
      %v4756 = vpop.f32.mrb[0].mxu0
      %v4757 = vpop.f32.mrb[0].mxu0
      %v4758 = vadd.f32 %v4463, %v4757
      %v4759 = vpop.f32.mrb[0].mxu0
      %4760 = vmatprep.mubr.bf16.mxu0 %v4372
      %4761 = vmatmul.mubr.bf16.gmra.mrb[0].mxu0 %v4371
      %v4762 = vpop.f32.mrb[0].mxu0
      %v4763 = vadd.f32 %v4463, %v4762
      %v4764 = vpop.f32.mrb[0].mxu0
      %v4765 = vpop.f32.mrb[0].mxu0
      %v4766 = vadd.f32 %v4463, %v4765
      %v4767 = vpop.f32.mrb[0].mxu0
      %4768 = vmatprep.mubr.bf16.mxu0 %v4376
      %4769 = vmatmul.mubr.bf16.gmra.mrb[0].mxu0 %v4375
      %v4770 = vpop.f32.mrb[0].mxu0
      %v4771 = vadd.f32 %v4463, %v4770
      %v4772 = vpop.f32.mrb[0].mxu0
      %v4773 = vpop.f32.mrb[0].mxu0
      %v4774 = vadd.f32 %v4463, %v4773
      %v4775 = vpop.f32.mrb[0].mxu0
      %4776 = vmatprep.mubr.bf16.mxu0 %v4380
      %4777 = vmatmul.mubr.bf16.gmra.mrb[0].mxu0 %v4379
      %v4778 = vpop.f32.mrb[0].mxu0
      %v4779 = vadd.f32 %v4463, %v4778
      %v4780 = vpop.f32.mrb[0].mxu0
      %v4781 = vpop.f32.mrb[0].mxu0
      %v4782 = vadd.f32 %v4463, %v4781
      %v4783 = vpop.f32.mrb[0].mxu0
      %4784 = vmatprep.mubr.bf16.mxu0 %v4384
      %4785 = vmatmul.mubr.bf16.gmra.mrb[0].mxu0 %v4383
      %v4786 = vpop.f32.mrb[0].mxu0
      %v4787 = vadd.f32 %v4463, %v4786
      %v4788 = vpop.f32.mrb[0].mxu0
      %v4789 = vpop.f32.mrb[0].mxu0
      %v4790 = vadd.f32 %v4463, %v4789
      %v4791 = vpop.f32.mrb[0].mxu0
      %4792 = vmatprep.mubr.bf16.mxu0 %v4388
      %4793 = vmatmul.mubr.bf16.gmra.mrb[0].mxu0 %v4387
      %v4794 = vpop.f32.mrb[0].mxu0
      %v4795 = vadd.f32 %v4463, %v4794
      %v4796 = vpop.f32.mrb[0].mxu0
      %v4797 = vpop.f32.mrb[0].mxu0
      %v4798 = vadd.f32 %v4463, %v4797
      %v4799 = vpop.f32.mrb[0].mxu0
      %4800 = vmatprep.mubr.bf16.mxu0 %v4392
      %4801 = vmatmul.mubr.bf16.gmra.mrb[0].mxu0 %v4391
      %v4802 = vpop.f32.mrb[0].mxu0
      %v4803 = vadd.f32 %v4463, %v4802
      %v4804 = vpop.f32.mrb[0].mxu0
      %v4805 = vpop.f32.mrb[0].mxu0
      %v4806 = vadd.f32 %v4463, %v4805
      %v4807 = vpop.f32.mrb[0].mxu0
      %4808 = vmatprep.mubr.bf16.mxu0 %v4396
      %4809 = vmatmul.mubr.bf16.gmra.mrb[0].mxu0 %v4395
      %v4810 = vpop.f32.mrb[0].mxu0
      %v4811 = vadd.f32 %v4463, %v4810
      %v4812 = vpop.f32.mrb[0].mxu0
      %v4813 = vpop.f32.mrb[0].mxu0
      %v4814 = vadd.f32 %v4463, %v4813
      %v4815 = vpop.f32.mrb[0].mxu0
      %4816 = vdwg.mxu0
      %4817 = vmatprep.subr.bf16.mxu0 0
      %4818 = vmatpush1.bf16.msra.mxu0 %v4608
      %4819 = vmatprep.subr.bf16.mxu0 0
      %4820 = vmatpush1.bf16.msra.mxu0 %v4609
      %4821 = vmatprep.subr.bf16.mxu0 0
      %4822 = vmatpush1.bf16.msra.mxu0 %v4610
      %4823 = vmatprep.subr.bf16.mxu0 0
      %4824 = vmatpush1.bf16.msra.mxu0 %v4611
      %4825 = vmatprep.subr.bf16.mxu0 0
      %4826 = vmatpush1.bf16.msra.mxu0 %v4612
      %4827 = vmatprep.subr.bf16.mxu0 0
      %4828 = vmatpush1.bf16.msra.mxu0 %v4613
      %4829 = vmatprep.subr.bf16.mxu0 0
      %4830 = vmatpush1.bf16.msra.mxu0 %v4614
      %4831 = vmatprep.subr.bf16.mxu0 0
      %4832 = vmatpush1.bf16.msra.mxu0 %v4615
      %4833 = vmatprep.subr.bf16.mxu0 0
      %4834 = vmatpush1.bf16.msra.mxu0 %v4616
      %4835 = vmatprep.subr.bf16.mxu0 0
      %4836 = vmatpush1.bf16.msra.mxu0 %v4617
      %4837 = vmatprep.subr.bf16.mxu0 0
      %4838 = vmatpush1.bf16.msra.mxu0 %v4618
      %4839 = vmatprep.subr.bf16.mxu0 0
      %4840 = vmatpush1.bf16.msra.mxu0 %v4619
      %4841 = vmatprep.subr.bf16.mxu0 0
      %4842 = vmatpush1.bf16.msra.mxu0 %v4620
      %4843 = vmatprep.subr.bf16.mxu0 0
      %4844 = vmatpush1.bf16.msra.mxu0 %v4621
      %4845 = vmatprep.subr.bf16.mxu0 0
      %4846 = vmatpush1.bf16.msra.mxu0 %v4622
      %4847 = vmatprep.subr.bf16.mxu0 0
      %4848 = vmatpush1.bf16.msra.mxu0 %v4623
      %4849 = vmatprep.mubr.bf16.mxu0 %v4338
      %4850 = vmatmul.mubr.bf16.gmra.mrb[0].mxu0 %v4337
      %v4851 = vpop.f32.mrb[0].mxu0
      %v4852 = vadd.f32 %v4691, %v4851
      %v4853 = vpop.f32.mrb[0].mxu0
      %v4854 = vpop.f32.mrb[0].mxu0
      %v4855 = vadd.f32 %v4694, %v4854
      %v4856 = vpop.f32.mrb[0].mxu0
      %4857 = vmatprep.mubr.bf16.mxu0 %v4342
      %4858 = vmatmul.mubr.bf16.gmra.mrb[0].mxu0 %v4341
      %v4859 = vpop.f32.mrb[0].mxu0
      %v4860 = vadd.f32 %v4699, %v4859
      %v4861 = vpop.f32.mrb[0].mxu0
      %v4862 = vpop.f32.mrb[0].mxu0
      %v4863 = vadd.f32 %v4702, %v4862
      %v4864 = vpop.f32.mrb[0].mxu0
      %4865 = vmatprep.mubr.bf16.mxu0 %v4346
      %4866 = vmatmul.mubr.bf16.gmra.mrb[0].mxu0 %v4345
      %v4867 = vpop.f32.mrb[0].mxu0
      %v4868 = vadd.f32 %v4707, %v4867
      %v4869 = vpop.f32.mrb[0].mxu0
      %v4870 = vpop.f32.mrb[0].mxu0
      %v4871 = vadd.f32 %v4710, %v4870
      %v4872 = vpop.f32.mrb[0].mxu0
      %4873 = vmatprep.mubr.bf16.mxu0 %v4350
      %4874 = vmatmul.mubr.bf16.gmra.mrb[0].mxu0 %v4349
      %v4875 = vpop.f32.mrb[0].mxu0
      %v4876 = vadd.f32 %v4715, %v4875
      %v4877 = vpop.f32.mrb[0].mxu0
      %v4878 = vpop.f32.mrb[0].mxu0
      %v4879 = vadd.f32 %v4718, %v4878
      %v4880 = vpop.f32.mrb[0].mxu0
      %4881 = vmatprep.mubr.bf16.mxu0 %v4354
      %4882 = vmatmul.mubr.bf16.gmra.mrb[0].mxu0 %v4353
      %v4883 = vpop.f32.mrb[0].mxu0
      %v4884 = vadd.f32 %v4723, %v4883
      %v4885 = vpop.f32.mrb[0].mxu0
      %v4886 = vpop.f32.mrb[0].mxu0
      %v4887 = vadd.f32 %v4726, %v4886
      %v4888 = vpop.f32.mrb[0].mxu0
      %4889 = vmatprep.mubr.bf16.mxu0 %v4358
      %4890 = vmatmul.mubr.bf16.gmra.mrb[0].mxu0 %v4357
      %v4891 = vpop.f32.mrb[0].mxu0
      %v4892 = vadd.f32 %v4731, %v4891
      %v4893 = vpop.f32.mrb[0].mxu0
      %v4894 = vpop.f32.mrb[0].mxu0
      %v4895 = vadd.f32 %v4734, %v4894
      %v4896 = vpop.f32.mrb[0].mxu0
      %4897 = vmatprep.mubr.bf16.mxu0 %v4362
      %4898 = vmatmul.mubr.bf16.gmra.mrb[0].mxu0 %v4361
      %v4899 = vpop.f32.mrb[0].mxu0
      %v4900 = vadd.f32 %v4739, %v4899
      %v4901 = vpop.f32.mrb[0].mxu0
      %v4902 = vpop.f32.mrb[0].mxu0
      %v4903 = vadd.f32 %v4742, %v4902
      %v4904 = vpop.f32.mrb[0].mxu0
      %4905 = vmatprep.mubr.bf16.mxu0 %v4366
      %4906 = vmatmul.mubr.bf16.gmra.mrb[0].mxu0 %v4365
      %v4907 = vpop.f32.mrb[0].mxu0
      %v4908 = vadd.f32 %v4747, %v4907
      %v4909 = vpop.f32.mrb[0].mxu0
      %v4910 = vpop.f32.mrb[0].mxu0
      %v4911 = vadd.f32 %v4750, %v4910
      %v4912 = vpop.f32.mrb[0].mxu0
      %4913 = vmatprep.mubr.bf16.mxu0 %v4370
      %4914 = vmatmul.mubr.bf16.gmra.mrb[0].mxu0 %v4369
      %v4915 = vpop.f32.mrb[0].mxu0
      %v4916 = vadd.f32 %v4755, %v4915
      %v4917 = vpop.f32.mrb[0].mxu0
      %v4918 = vpop.f32.mrb[0].mxu0
      %v4919 = vadd.f32 %v4758, %v4918
      %v4920 = vpop.f32.mrb[0].mxu0
      %4921 = vmatprep.mubr.bf16.mxu0 %v4374
      %4922 = vmatmul.mubr.bf16.gmra.mrb[0].mxu0 %v4373
      %v4923 = vpop.f32.mrb[0].mxu0
      %v4924 = vadd.f32 %v4763, %v4923
      %v4925 = vpop.f32.mrb[0].mxu0
      %v4926 = vpop.f32.mrb[0].mxu0
      %v4927 = vadd.f32 %v4766, %v4926
      %v4928 = vpop.f32.mrb[0].mxu0
      %4929 = vmatprep.mubr.bf16.mxu0 %v4378
      %4930 = vmatmul.mubr.bf16.gmra.mrb[0].mxu0 %v4377
      %v4931 = vpop.f32.mrb[0].mxu0
      %v4932 = vadd.f32 %v4771, %v4931
      %v4933 = vpop.f32.mrb[0].mxu0
      %v4934 = vpop.f32.mrb[0].mxu0
      %v4935 = vadd.f32 %v4774, %v4934
      %v4936 = vpop.f32.mrb[0].mxu0
      %4937 = vmatprep.mubr.bf16.mxu0 %v4382
      %4938 = vmatmul.mubr.bf16.gmra.mrb[0].mxu0 %v4381
      %v4939 = vpop.f32.mrb[0].mxu0
      %v4940 = vadd.f32 %v4779, %v4939
      %v4941 = vpop.f32.mrb[0].mxu0
      %v4942 = vpop.f32.mrb[0].mxu0
      %v4943 = vadd.f32 %v4782, %v4942
      %v4944 = vpop.f32.mrb[0].mxu0
      %4945 = vmatprep.mubr.bf16.mxu0 %v4386
      %4946 = vmatmul.mubr.bf16.gmra.mrb[0].mxu0 %v4385
      %v4947 = vpop.f32.mrb[0].mxu0
      %v4948 = vadd.f32 %v4787, %v4947
      %v4949 = vpop.f32.mrb[0].mxu0
      %v4950 = vpop.f32.mrb[0].mxu0
      %v4951 = vadd.f32 %v4790, %v4950
      %v4952 = vpop.f32.mrb[0].mxu0
      %4953 = vmatprep.mubr.bf16.mxu0 %v4390
      %4954 = vmatmul.mubr.bf16.gmra.mrb[0].mxu0 %v4389
      %v4955 = vpop.f32.mrb[0].mxu0
      %v4956 = vadd.f32 %v4795, %v4955
      %v4957 = vpop.f32.mrb[0].mxu0
      %v4958 = vpop.f32.mrb[0].mxu0
      %v4959 = vadd.f32 %v4798, %v4958
      %v4960 = vpop.f32.mrb[0].mxu0
      %4961 = vmatprep.mubr.bf16.mxu0 %v4394
      %4962 = vmatmul.mubr.bf16.gmra.mrb[0].mxu0 %v4393
      %v4963 = vpop.f32.mrb[0].mxu0
      %v4964 = vadd.f32 %v4803, %v4963
      %v4965 = vpop.f32.mrb[0].mxu0
      %v4966 = vpop.f32.mrb[0].mxu0
      %v4967 = vadd.f32 %v4806, %v4966
      %v4968 = vpop.f32.mrb[0].mxu0
      %4969 = vmatprep.mubr.bf16.mxu0 %v4398
      %4970 = vmatmul.mubr.bf16.gmra.mrb[0].mxu0 %v4397
      %v4971 = vpop.f32.mrb[0].mxu0
      %v4972 = vadd.f32 %v4811, %v4971
      %v4973 = vpop.f32.mrb[0].mxu0
      %v4974 = vpop.f32.mrb[0].mxu0
      %v4975 = vadd.f32 %v4814, %v4974
      %v4976 = vpop.f32.mrb[0].mxu0
      %4977 = vdwg.mxu0
      %v4978 = vxor.u32 %v4852, 2147483648
      %v4979 = vxor.u32 %v4855, 2147483648
      %v4980 = vxor.u32 %v4860, 2147483648
      %v4981 = vxor.u32 %v4863, 2147483648
      %v4982 = vxor.u32 %v4868, 2147483648
      %v4983 = vxor.u32 %v4871, 2147483648
      %v4984 = vxor.u32 %v4876, 2147483648
      %v4985 = vxor.u32 %v4879, 2147483648
      %v4986 = vxor.u32 %v4884, 2147483648
      %v4987 = vxor.u32 %v4887, 2147483648
      %v4988 = vxor.u32 %v4892, 2147483648
      %v4989 = vxor.u32 %v4895, 2147483648
      %v4990 = vxor.u32 %v4900, 2147483648
      %v4991 = vxor.u32 %v4903, 2147483648
      %v4992 = vxor.u32 %v4908, 2147483648
      %v4993 = vxor.u32 %v4911, 2147483648
      %v4994 = vxor.u32 %v4916, 2147483648
      %v4995 = vxor.u32 %v4919, 2147483648
      %v4996 = vxor.u32 %v4924, 2147483648
      %v4997 = vxor.u32 %v4927, 2147483648
      %v4998 = vxor.u32 %v4932, 2147483648
      %v4999 = vxor.u32 %v4935, 2147483648
      %v5000 = vxor.u32 %v4940, 2147483648
      %v5001 = vxor.u32 %v4943, 2147483648
      %v5002 = vxor.u32 %v4948, 2147483648
      %v5003 = vxor.u32 %v4951, 2147483648
      %v5004 = vxor.u32 %v4956, 2147483648
      %v5005 = vxor.u32 %v4959, 2147483648
      %v5006 = vxor.u32 %v4964, 2147483648
      %v5007 = vxor.u32 %v4967, 2147483648
      %v5008 = vxor.u32 %v4972, 2147483648
      %v5009 = vxor.u32 %v4975, 2147483648
      %v5010 = vmul.f32 %v4978, 1.442695
      %v5011 = vpow.pop %v5010
      %v5012 = vmul.f32 %v4979, 1.442695
      %v5013 = vpow.pop %v5012
      %v5014 = vmul.f32 %v4980, 1.442695
      %v5015 = vpow.pop %v5014
      %v5016 = vmul.f32 %v4981, 1.442695
      %v5017 = vpow.pop %v5016
      %v5018 = vmul.f32 %v4982, 1.442695
      %v5019 = vpow.pop %v5018
      %v5020 = vmul.f32 %v4983, 1.442695
      %v5021 = vpow.pop %v5020
      %v5022 = vmul.f32 %v4984, 1.442695
      %v5023 = vpow.pop %v5022
      %v5024 = vmul.f32 %v4985, 1.442695
      %v5025 = vpow.pop %v5024
      %v5026 = vmul.f32 %v4986, 1.442695
      %v5027 = vpow.pop %v5026
      %v5028 = vmul.f32 %v4987, 1.442695
      %v5029 = vpow.pop %v5028
      %v5030 = vmul.f32 %v4988, 1.442695
      %v5031 = vpow.pop %v5030
      %v5032 = vmul.f32 %v4989, 1.442695
      %v5033 = vpow.pop %v5032
      %v5034 = vmul.f32 %v4990, 1.442695
      %v5035 = vpow.pop %v5034
      %v5036 = vmul.f32 %v4991, 1.442695
      %v5037 = vpow.pop %v5036
      %v5038 = vmul.f32 %v4992, 1.442695
      %v5039 = vpow.pop %v5038
      %v5040 = vmul.f32 %v4993, 1.442695
      %v5041 = vpow.pop %v5040
      %v5042 = vmul.f32 %v4994, 1.442695
      %v5043 = vpow.pop %v5042
      %v5044 = vmul.f32 %v4995, 1.442695
      %v5045 = vpow.pop %v5044
      %v5046 = vmul.f32 %v4996, 1.442695
      %v5047 = vpow.pop %v5046
      %v5048 = vmul.f32 %v4997, 1.442695
      %v5049 = vpow.pop %v5048
      %v5050 = vmul.f32 %v4998, 1.442695
      %v5051 = vpow.pop %v5050
      %v5052 = vmul.f32 %v4999, 1.442695
      %v5053 = vpow.pop %v5052
      %v5054 = vmul.f32 %v5000, 1.442695
      %v5055 = vpow.pop %v5054
      %v5056 = vmul.f32 %v5001, 1.442695
      %v5057 = vpow.pop %v5056
      %v5058 = vmul.f32 %v5002, 1.442695
      %v5059 = vpow.pop %v5058
      %v5060 = vmul.f32 %v5003, 1.442695
      %v5061 = vpow.pop %v5060
      %v5062 = vmul.f32 %v5004, 1.442695
      %v5063 = vpow.pop %v5062
      %v5064 = vmul.f32 %v5005, 1.442695
      %v5065 = vpow.pop %v5064
      %v5066 = vmul.f32 %v5006, 1.442695
      %v5067 = vpow.pop %v5066
      %v5068 = vmul.f32 %v5007, 1.442695
      %v5069 = vpow.pop %v5068
      %v5070 = vmul.f32 %v5008, 1.442695
      %v5071 = vpow.pop %v5070
      %v5072 = vmul.f32 %v5009, 1.442695
      %v5073 = vpow.pop %v5072
      %v5074 = vadd.f32 %v5011, 1.0
      %v5075 = vadd.f32 %v5013, 1.0
      %v5076 = vadd.f32 %v5015, 1.0
      %v5077 = vadd.f32 %v5017, 1.0
      %v5078 = vadd.f32 %v5019, 1.0
      %v5079 = vadd.f32 %v5021, 1.0
      %v5080 = vadd.f32 %v5023, 1.0
      %v5081 = vadd.f32 %v5025, 1.0
      %v5082 = vadd.f32 %v5027, 1.0
      %v5083 = vadd.f32 %v5029, 1.0
      %v5084 = vadd.f32 %v5031, 1.0
      %v5085 = vadd.f32 %v5033, 1.0
      %v5086 = vadd.f32 %v5035, 1.0
      %v5087 = vadd.f32 %v5037, 1.0
      %v5088 = vadd.f32 %v5039, 1.0
      %v5089 = vadd.f32 %v5041, 1.0
      %v5090 = vadd.f32 %v5043, 1.0
      %v5091 = vadd.f32 %v5045, 1.0
      %v5092 = vadd.f32 %v5047, 1.0
      %v5093 = vadd.f32 %v5049, 1.0
      %v5094 = vadd.f32 %v5051, 1.0
      %v5095 = vadd.f32 %v5053, 1.0
      %v5096 = vadd.f32 %v5055, 1.0
      %v5097 = vadd.f32 %v5057, 1.0
      %v5098 = vadd.f32 %v5059, 1.0
      %v5099 = vadd.f32 %v5061, 1.0
      %v5100 = vadd.f32 %v5063, 1.0
      %v5101 = vadd.f32 %v5065, 1.0
      %v5102 = vadd.f32 %v5067, 1.0
      %v5103 = vadd.f32 %v5069, 1.0
      %v5104 = vadd.f32 %v5071, 1.0
      %v5105 = vadd.f32 %v5073, 1.0
      %v5106 = vrcp.pop %v5074
      %v5107 = vmul.f32 1.0, %v5106
      %v5108 = vrcp.pop %v5075
      %v5109 = vmul.f32 1.0, %v5108
      %v5110 = vrcp.pop %v5076
      %v5111 = vmul.f32 1.0, %v5110
      %v5112 = vrcp.pop %v5077
      %v5113 = vmul.f32 1.0, %v5112
      %v5114 = vrcp.pop %v5078
      %v5115 = vmul.f32 1.0, %v5114
      %v5116 = vrcp.pop %v5079
      %v5117 = vmul.f32 1.0, %v5116
      %v5118 = vrcp.pop %v5080
      %v5119 = vmul.f32 1.0, %v5118
      %v5120 = vrcp.pop %v5081
      %v5121 = vmul.f32 1.0, %v5120
      %v5122 = vrcp.pop %v5082
      %v5123 = vmul.f32 1.0, %v5122
      %v5124 = vrcp.pop %v5083
      %v5125 = vmul.f32 1.0, %v5124
      %v5126 = vrcp.pop %v5084
      %v5127 = vmul.f32 1.0, %v5126
      %v5128 = vrcp.pop %v5085
      %v5129 = vmul.f32 1.0, %v5128
      %v5130 = vrcp.pop %v5086
      %v5131 = vmul.f32 1.0, %v5130
      %v5132 = vrcp.pop %v5087
      %v5133 = vmul.f32 1.0, %v5132
      %v5134 = vrcp.pop %v5088
      %v5135 = vmul.f32 1.0, %v5134
      %v5136 = vrcp.pop %v5089
      %v5137 = vmul.f32 1.0, %v5136
      %v5138 = vrcp.pop %v5090
      %v5139 = vmul.f32 1.0, %v5138
      %v5140 = vrcp.pop %v5091
      %v5141 = vmul.f32 1.0, %v5140
      %v5142 = vrcp.pop %v5092
      %v5143 = vmul.f32 1.0, %v5142
      %v5144 = vrcp.pop %v5093
      %v5145 = vmul.f32 1.0, %v5144
      %v5146 = vrcp.pop %v5094
      %v5147 = vmul.f32 1.0, %v5146
      %v5148 = vrcp.pop %v5095
      %v5149 = vmul.f32 1.0, %v5148
      %v5150 = vrcp.pop %v5096
      %v5151 = vmul.f32 1.0, %v5150
      %v5152 = vrcp.pop %v5097
      %v5153 = vmul.f32 1.0, %v5152
      %v5154 = vrcp.pop %v5098
      %v5155 = vmul.f32 1.0, %v5154
      %v5156 = vrcp.pop %v5099
      %v5157 = vmul.f32 1.0, %v5156
      %v5158 = vrcp.pop %v5100
      %v5159 = vmul.f32 1.0, %v5158
      %v5160 = vrcp.pop %v5101
      %v5161 = vmul.f32 1.0, %v5160
      %v5162 = vrcp.pop %v5102
      %v5163 = vmul.f32 1.0, %v5162
      %v5164 = vrcp.pop %v5103
      %v5165 = vmul.f32 1.0, %v5164
      %v5166 = vrcp.pop %v5104
      %v5167 = vmul.f32 1.0, %v5166
      %v5168 = vrcp.pop %v5105
      %v5169 = vmul.f32 1.0, %v5168
      %vm5170 = vcmask 64512
      %5171 = vst.msk [vmem:[%s280] sm:$0xff] %vm5170, %v5107
      %5172 = vst.msk [vmem:[%s280 + $0x8] sm:$0xff] %vm5170, %v5109
      %5173 = vst.msk [vmem:[%s280 + $0x10] sm:$0xff] %vm5170, %v5111
      %5174 = vst.msk [vmem:[%s280 + $0x18] sm:$0xff] %vm5170, %v5113
      %5175 = vst.msk [vmem:[%s280 + $0x20] sm:$0xff] %vm5170, %v5115
      %5176 = vst.msk [vmem:[%s280 + $0x28] sm:$0xff] %vm5170, %v5117
      %5177 = vst.msk [vmem:[%s280 + $0x30] sm:$0xff] %vm5170, %v5119
      %5178 = vst.msk [vmem:[%s280 + $0x38] sm:$0xff] %vm5170, %v5121
      %5179 = vst.msk [vmem:[%s280 + $0x40] sm:$0xff] %vm5170, %v5123
      %5180 = vst.msk [vmem:[%s280 + $0x48] sm:$0xff] %vm5170, %v5125
      %5181 = vst.msk [vmem:[%s280 + $0x50] sm:$0xff] %vm5170, %v5127
      %5182 = vst.msk [vmem:[%s280 + $0x58] sm:$0xff] %vm5170, %v5129
      %5183 = vst.msk [vmem:[%s280 + $0x60] sm:$0xff] %vm5170, %v5131
      %5184 = vst.msk [vmem:[%s280 + $0x68] sm:$0xff] %vm5170, %v5133
      %5185 = vst.msk [vmem:[%s280 + $0x70] sm:$0xff] %vm5170, %v5135
      %5186 = vst.msk [vmem:[%s280 + $0x78] sm:$0xff] %vm5170, %v5137
      %5187 = vst.msk [vmem:[%s280 + $0x80] sm:$0xff] %vm5170, %v5139
      %5188 = vst.msk [vmem:[%s280 + $0x88] sm:$0xff] %vm5170, %v5141
      %5189 = vst.msk [vmem:[%s280 + $0x90] sm:$0xff] %vm5170, %v5143
      %5190 = vst.msk [vmem:[%s280 + $0x98] sm:$0xff] %vm5170, %v5145
      %5191 = vst.msk [vmem:[%s280 + $0xa0] sm:$0xff] %vm5170, %v5147
      %5192 = vst.msk [vmem:[%s280 + $0xa8] sm:$0xff] %vm5170, %v5149
      %5193 = vst.msk [vmem:[%s280 + $0xb0] sm:$0xff] %vm5170, %v5151
      %5194 = vst.msk [vmem:[%s280 + $0xb8] sm:$0xff] %vm5170, %v5153
      %5195 = vst.msk [vmem:[%s280 + $0xc0] sm:$0xff] %vm5170, %v5155
      %5196 = vst.msk [vmem:[%s280 + $0xc8] sm:$0xff] %vm5170, %v5157
      %5197 = vst.msk [vmem:[%s280 + $0xd0] sm:$0xff] %vm5170, %v5159
      %5198 = vst.msk [vmem:[%s280 + $0xd8] sm:$0xff] %vm5170, %v5161
      %5199 = vst.msk [vmem:[%s280 + $0xe0] sm:$0xff] %vm5170, %v5163
      %5200 = vst.msk [vmem:[%s280 + $0xe8] sm:$0xff] %vm5170, %v5165
      %5201 = vst.msk [vmem:[%s280 + $0xf0] sm:$0xff] %vm5170, %v5167
      %5202 = vst.msk [vmem:[%s280 + $0xf8] sm:$0xff] %vm5170, %v5169
      %s5203 = smul.u32 32, %s18
      %p5204 = scmp.lt.s32.totalorder %s5203, 63
      %s5205 = scalar_select %p5204, %s5203, 63
      %s5206 = smul.addr %s5205, 8
      %s5207 = scalar_lea.vmem %s7, %s5206
      // Predicated region
      $region49: #{cnnpred_forward.1} parent=47 // pred_check
        %p5208 = pneg %p188
      $region50: #{cnnpred_forward.1} parent=47 // pred_check_branch
        %5210 = sbr.rel (%p5208) target = $region52
      $region51: #{cnnpred_forward.1} parent=47 // pred_region
        %s5211 = smul.u32 32, %s18
      $region52: #{cnnpred_forward.1} parent=47 // pred_fallthru
        _
    $region48: #{cnnpred_forward.1} parent=5 // pred_fallthru
      _
    %p5212 = scmp.le.s32.totalorder 2, %s13
    // Predicated region
    $region53: #{cnnpred_forward.1} parent=5 // pred_check
      %p5213 = pneg %p5212
    $region54: #{cnnpred_forward.1} parent=5 // pred_check_branch
      %5215 = sbr.rel (%p5213) target = $region56
    $region55: #{cnnpred_forward.1} parent=5 // pred_region
      %s5216 = ssub.s32 %s13, 2
      // Predicated region
      $region57: #{cnnpred_forward.1} parent=55 // pred_check
        %p5217 = pneg %p194
      $region58: #{cnnpred_forward.1} parent=55 // pred_check_branch
        %5219 = sbr.rel (%p5217) target = $region60
      $region59: #{cnnpred_forward.1} parent=55 // pred_region
        %s5220 = smul.u32 32, %s19
        %p5221 = scmp.lt.s32.totalorder %s5220, 63
        %s5222 = scalar_select %p5221, %s5220, 63
        %s5223 = smul.addr %s5222, 8
        %s5224 = scalar_lea.vmem %s7, %s5223
      $region60: #{cnnpred_forward.1} parent=55 // pred_fallthru
        _
    $region56: #{cnnpred_forward.1} parent=5 // pred_fallthru
      _
  $region6: #{cnnpred_forward.1} parent=0 // loop_footer
    %s17 = sadd.s32 1, %s13
  $region7: #{cnnpred_forward.1} parent=0 // loop_footer_branch
    %12 = sbr.rel target = $region3
  $region8: #{cnnpred_forward.1} parent=0 // loop_exit
    _

</llo_original>
